<compile_context>
chip_gen: v7x
topology: tpu7x:2x2x1
jax: 0.10.0
libtpu: 0.0.40
codegen_flags: <defaults>
</compile_context>

<pallas_src>
import functools
import math

import jax
import jax.numpy as jnp
from jax import lax
from jax.experimental import pallas as pl
from jax.experimental.pallas import tpu as pltpu

# -------------------- small synthetic configuration --------------------
B = 2              # batch
C_IN = 3           # image channels (NCHW)
IMG = 32           # image spatial size
PATCH = 8          # patch size -> 4x4 = 16 patches
N_PATCH = (IMG // PATCH) ** 2
PATCH_DIM = C_IN * PATCH * PATCH          # 192
VIS_WIDTH = 128    # vision embed width
N_CLS = 8          # number of classes
N_CTX = 4          # learned context tokens
SPACE_DIM = 4      # SuPr subspace dimension (S) — closed-form 4x4 inverse below
SEQ = 16           # text sequence length
CTX_DIM = 128      # text transformer width
EMBED = 128        # joint embedding dim D
CE_WEIGHT = 0.7    # cfg.TRAINER.SUPR.LAMBDA
COS_EPS = 1e-7     # torch.nn.CosineSimilarity eps
LN_EPS = 1e-5      # ln_final eps
NORM_EPS = 1e-12   # guard for L2 normalisation
LOGIT_PAD = 128    # lane-dense padded logits width


# ============================ helpers ============================

def _adjugate_det_4x4(m):
    """Batched closed-form adjugate + determinant of a 4x4 matrix.

    m[i][j] are (C, 1) float32 arrays.  Returns (adj, det) such that
    inverse[i][j] == adj[i][j] / det (gluInvertMatrix cofactor expansion).
    All elementwise — runs on the VPU, no linear-algebra round trip.
    """
    a00, a01, a02, a03 = m[0]
    a10, a11, a12, a13 = m[1]
    a20, a21, a22, a23 = m[2]
    a30, a31, a32, a33 = m[3]

    b00 = (a11*a22*a33 - a11*a23*a32 - a21*a12*a33
           + a21*a13*a32 + a31*a12*a23 - a31*a13*a22)
    b01 = (-a01*a22*a33 + a01*a23*a32 + a21*a02*a33
           - a21*a03*a32 - a31*a02*a23 + a31*a03*a22)
    b02 = (a01*a12*a33 - a01*a13*a32 - a11*a02*a33
           + a11*a03*a32 + a31*a02*a13 - a31*a03*a12)
    b03 = (-a01*a12*a23 + a01*a13*a22 + a11*a02*a23
           - a11*a03*a22 - a21*a02*a13 + a21*a03*a12)
    b10 = (-a10*a22*a33 + a10*a23*a32 + a20*a12*a33
           - a20*a13*a32 - a30*a12*a23 + a30*a13*a22)
    b11 = (a00*a22*a33 - a00*a23*a32 - a20*a02*a33
           + a20*a03*a32 + a30*a02*a23 - a30*a03*a22)
    b12 = (-a00*a12*a33 + a00*a13*a32 + a10*a02*a33
           - a10*a03*a32 - a30*a02*a13 + a30*a03*a12)
    b13 = (a00*a12*a23 - a00*a13*a22 - a10*a02*a23
           + a10*a03*a22 + a20*a02*a13 - a20*a03*a12)
    b20 = (a10*a21*a33 - a10*a23*a31 - a20*a11*a33
           + a20*a13*a31 + a30*a11*a23 - a30*a13*a21)
    b21 = (-a00*a21*a33 + a00*a23*a31 + a20*a01*a33
           - a20*a03*a31 - a30*a01*a23 + a30*a03*a21)
    b22 = (a00*a11*a33 - a00*a13*a31 - a10*a01*a33
           + a10*a03*a31 + a30*a01*a13 - a30*a03*a11)
    b23 = (-a00*a11*a23 + a00*a13*a21 + a10*a01*a23
           - a10*a03*a21 - a20*a01*a13 + a20*a03*a11)
    b30 = (-a10*a21*a32 + a10*a22*a31 + a20*a11*a32
           - a20*a12*a31 - a30*a11*a22 + a30*a12*a21)
    b31 = (a00*a21*a32 - a00*a22*a31 - a20*a01*a32
           + a20*a02*a31 + a30*a01*a22 - a30*a02*a21)
    b32 = (-a00*a11*a32 + a00*a12*a31 + a10*a01*a32
           - a10*a02*a31 - a30*a01*a12 + a30*a02*a11)
    b33 = (a00*a11*a22 - a00*a12*a21 - a10*a01*a22
           + a10*a02*a21 + a20*a01*a12 - a20*a02*a11)

    det = a00*b00 + a01*b10 + a02*b20 + a03*b30
    adj = [[b00, b01, b02, b03],
           [b10, b11, b12, b13],
           [b20, b21, b22, b23],
           [b30, b31, b32, b33]]
    return adj, det


# ============================ the fused kernel ============================

def _fused_forward_kernel(scale_ref, eot_ref, ctx_ref, cspace_ref, prefix_ref,
                          suffix_ref, pos_ref, ln_w_ref, ln_b_ref, tproj_ref,
                          patches_ref, w_patch_ref, w_vproj_ref, out_ref,
                          *, ce_weight):
    n_cls, n_suf, ctx_dim = suffix_ref.shape
    n_ctx = ctx_ref.shape[0]
    s_dim = cspace_ref.shape[0]
    seq = pos_ref.shape[0]
    bsz, n_patch, patch_dim = patches_ref.shape
    d = tproj_ref.shape[1]
    s1 = s_dim + 1

    # ---------------- text path (all classes & subspace rows at once) ----------------
    ctx = ctx_ref[...]                                    # (n_ctx, cd)
    cspace = cspace_ref[...]                              # (s, n_ctx, cd)
    prefix = prefix_ref[...]                              # (c, cd)
    suffix = suffix_ref[...]                              # (c, n_suf, cd)
    pos = pos_ref[...]                                    # (seq, cd)

    # EOT one-hot built in-kernel from the prefetched indices.
    onehot = (lax.broadcasted_iota(jnp.int32, (n_cls, seq), 1)
              == eot_ref[...]).astype(jnp.float32)        # (c, seq)

    # mean over seq of (prompts + pos) without materialising the (C,S+1,SEQ,CD) prompts.
    sum_fix = prefix + jnp.sum(suffix, axis=1)            # (c, cd)
    sum_ctx_rows = jnp.concatenate(
        [jnp.sum(ctx, axis=0, keepdims=True),
         jnp.sum(cspace, axis=1)], axis=0)                # (s+1, cd)
    mean_prompts = (sum_fix[:, None, :]
                    + sum_ctx_rows[None, :, :]) * (1.0 / seq)   # (c, s+1, cd)
    mean_pos = jnp.mean(pos, axis=0, keepdims=True)       # (1, cd)

    # eot gather of (prompts + pos): split the one-hot over prefix / ctx / suffix regions.
    e_pre = onehot[:, 0:1] * prefix                       # (c, cd)
    ctx_rows = jnp.concatenate([ctx[None], cspace], axis=0)       # (s+1, n_ctx, cd)
    oh_ctx = onehot[:, 1:1 + n_ctx]                       # (c, n_ctx)
    e_ctx = jnp.sum(oh_ctx[:, None, :, None] * ctx_rows[None, :, :, :],
                    axis=2)                               # (c, s+1, cd)
    oh_suf = onehot[:, 1 + n_ctx:]                        # (c, n_suf)
    e_suf = jnp.sum(oh_suf[:, :, None] * suffix, axis=1)  # (c, cd)
    e_pos = jnp.dot(onehot, pos, preferred_element_type=jnp.float32)   # (c, cd)

    # TODO(synk): crude token-mixing stand-in for the CLIP text transformer.
    x = (e_ctx + mean_prompts
         + (e_pre + e_suf + e_pos)[:, None, :]
         + mean_pos[None, :, :])                          # (c, s+1, cd)

    # ln_final
    mu = jnp.mean(x, axis=-1, keepdims=True)
    var = jnp.mean(jnp.square(x - mu), axis=-1, keepdims=True)
    x = (x - mu) * lax.rsqrt(var + LN_EPS)
    x = x * ln_w_ref[...] + ln_b_ref[...]

    # ONE batched text projection: (C*(S+1), 128) @ (128, D), bf16 operands, f32 accum.
    x2 = x.reshape(n_cls * s1, ctx_dim)
    tf = jnp.dot(x2.astype(jnp.bfloat16),
                 tproj_ref[...].astype(jnp.bfloat16),
                 preferred_element_type=jnp.float32)      # (c*(s+1), d)
    tf = tf.reshape(n_cls, s1, d)

    # ---------------- image path (patch embed -> mean pool -> projection) ----------------
    pt = patches_ref[...].reshape(bsz * n_patch, patch_dim)
    tok = jnp.dot(pt.astype(jnp.bfloat16),
                  w_patch_ref[...].astype(jnp.bfloat16),
                  preferred_element_type=jnp.float32)     # (b*p, vis)
    pooled = jnp.mean(tok.reshape(bsz, n_patch, tok.shape[-1]), axis=1)   # (b, vis)
    img = jnp.dot(pooled.astype(jnp.bfloat16),
                  w_vproj_ref[...].astype(jnp.bfloat16),
                  preferred_element_type=jnp.float32)     # (b, d)

    # ---------------- SuPr head ----------------
    img_n = img / jnp.maximum(
        jnp.sqrt(jnp.sum(img * img, axis=-1, keepdims=True)), NORM_EPS)   # (b, d)
    txt_n = tf / jnp.maximum(
        jnp.sqrt(jnp.sum(tf * tf, axis=-1, keepdims=True)), NORM_EPS)     # (c, s+1, d)
    point = txt_n[:, 0, :]                                # (c, d)
    zs = txt_n[:, 1:, :]                                  # (c, s, d)

    # Gram entries via lane reductions (f32, VPU/XLU); closed-form 4x4 adjugate inverse.
    zrows = [zs[:, i, :] for i in range(s_dim)]           # (c, d) each
    gm = [[None] * s_dim for _ in range(s_dim)]
    for i in range(s_dim):
        for j in range(i, s_dim):
            gij = jnp.sum(zrows[i] * zrows[j], axis=-1, keepdims=True)    # (c, 1)
            gm[i][j] = gij
            gm[j][i] = gij
    # NOTE: no ridge term — matches the primary (non-except) torch.linalg.inv branch.
    adj, det = _adjugate_det_4x4(gm)

    # gamma = Z @ q^T, one MXU matmul contracting over D=128.
    zs_flat = zs.reshape(n_cls * s_dim, d)                # (c*s, d)
    gamma = jnp.einsum('nd,bd->nb', zs_flat, img_n,
                       preferred_element_type=jnp.float32)
    gamma = gamma.reshape(n_cls, s_dim, bsz)              # (c, s, b)
    grows = [gamma[:, i, :] for i in range(s_dim)]        # (c, b) each

    # proj . q == ||proj||^2 == gamma^T G^{-1} gamma  (q is unit norm)
    quad = jnp.zeros((n_cls, bsz), jnp.float32)
    for i in range(s_dim):
        for j in range(s_dim):
            quad = quad + adj[i][j] * (grows[i] * grows[j])
    quad = quad / det                                     # (c, b)

    n_proj = jnp.sqrt(jnp.maximum(quad, 0.0))             # (c, b)
    n_img = jnp.sqrt(jnp.sum(img_n * img_n, axis=-1))     # (b,)
    cos = quad / jnp.maximum(n_proj * n_img[None, :], COS_EPS)

    scale = scale_ref[0]
    logits = (scale * cos).T                              # (b, c)
    logits_point = scale * jnp.einsum('bd,cd->bc', img_n, point,
                                      preferred_element_type=jnp.float32)
    mix = ce_weight * logits + (1.0 - ce_weight) * logits_point           # (b, c)

    # lane-dense output slab: pad class dim to 128 lanes.
    pad = out_ref.shape[1] - n_cls
    out_ref[...] = jnp.concatenate(
        [mix, jnp.zeros((bsz, pad), jnp.float32)], axis=-1)


# ============================ wrapper ============================

def patchify(image_nchw):
    """NCHW -> (B, num_patches, C*patch*patch).  Pure-JAX layout glue."""
    b, c, h, w = image_nchw.shape
    x = image_nchw.reshape(b, c, h // PATCH, PATCH, w // PATCH, PATCH)
    x = x.transpose(0, 2, 4, 1, 3, 5)
    return x.reshape(b, (h // PATCH) * (w // PATCH), c * PATCH * PATCH)


def custom_clip_forward(image, p):
    """CustomCLIP.forward(image) — eval branch — one fused pallas_call."""
    eot = jnp.argmax(p['tokenized_prompts'], axis=-1).astype(jnp.int32)
    eot = eot.reshape(N_CLS, 1)
    scale = jnp.exp(p['logit_scale']).reshape(1).astype(jnp.float32)
    patches = patchify(image.astype(jnp.float32))
    prefix = p['token_prefix'].reshape(N_CLS, CTX_DIM)

    kernel = functools.partial(_fused_forward_kernel, ce_weight=CE_WEIGHT)
    padded = pl.pallas_call(
        kernel,
        out_shape=jax.ShapeDtypeStruct((B, LOGIT_PAD), jnp.float32),
        grid=(1,),
        in_specs=[
            pl.BlockSpec(memory_space=pltpu.MemorySpace.SMEM),                    # scale
            pl.BlockSpec((N_CLS, 1), lambda i: (0, 0)),                           # eot
            pl.BlockSpec((N_CTX, CTX_DIM), lambda i: (0, 0)),                     # ctx
            pl.BlockSpec((SPACE_DIM, N_CTX, CTX_DIM), lambda i: (0, 0, 0)),       # ctx_space
            pl.BlockSpec((N_CLS, CTX_DIM), lambda i: (0, 0)),                     # prefix
            pl.BlockSpec((N_CLS, SEQ - 1 - N_CTX, CTX_DIM), lambda i: (0, 0, 0)), # suffix
            pl.BlockSpec((SEQ, CTX_DIM), lambda i: (0, 0)),                       # pos emb
            pl.BlockSpec((1, CTX_DIM), lambda i: (0, 0)),                         # ln_w
            pl.BlockSpec((1, CTX_DIM), lambda i: (0, 0)),                         # ln_b
            pl.BlockSpec((CTX_DIM, EMBED), lambda i: (0, 0)),                     # text_proj
            pl.BlockSpec((B, N_PATCH, PATCH_DIM), lambda i: (0, 0, 0)),           # patches
            pl.BlockSpec((PATCH_DIM, VIS_WIDTH), lambda i: (0, 0)),               # w_patch
            pl.BlockSpec((VIS_WIDTH, EMBED), lambda i: (0, 0)),                   # w_vproj
        ],
        out_specs=pl.BlockSpec((B, LOGIT_PAD), lambda i: (0, 0)),
    )(scale, eot, p['ctx'], p['ctx_space'], prefix, p['token_suffix'],
      p['pos_emb'], p['ln_w'], p['ln_b'], p['text_proj'],
      patches, p['w_patch'], p['w_vproj'])
    return padded[:, :N_CLS]


# ============================ pure-JAX reference ============================

def reference_forward(image, p):
    """Pure-JAX mirror (same stand-ins & matmul precision), naive formulation:
    full prompt materialisation, gather, jnp.linalg.inv, explicit projection."""
    s1 = SPACE_DIM + 1
    ctx = p['ctx']
    ctx_e = jnp.broadcast_to(ctx[None], (N_CLS,) + ctx.shape)
    all_ctx = [ctx_e] + [jnp.broadcast_to(p['ctx_space'][i][None],
                                          (N_CLS,) + ctx.shape)
                         for i in range(SPACE_DIM)]
    ctx_stack = jnp.stack(all_ctx, axis=1)                # (C, S+1, N_CTX, CD)
    prefix_e = jnp.broadcast_to(p['token_prefix'][:, None],
                                (N_CLS, s1) + p['token_prefix'].shape[1:])
    suffix_e = jnp.broadcast_to(p['token_suffix'][:, None],
                                (N_CLS, s1) + p['token_suffix'].shape[1:])
    prompts = jnp.concatenate([prefix_e, ctx_stack, suffix_e], axis=2)

    eot = jnp.argmax(p['tokenized_prompts'], axis=-1)
    pos = p['pos_emb']
    x_all = prompts + pos[None, None, :, :]
    x_eot = prompts[jnp.arange(N_CLS), :, eot, :] + pos[eot][:, None, :]
    x = x_eot + jnp.mean(x_all, axis=2)
    mu = jnp.mean(x, axis=-1, keepdims=True)
    var = jnp.mean(jnp.square(x - mu), axis=-1, keepdims=True)
    x = (x - mu) * lax.rsqrt(var + LN_EPS)
    x = x * p['ln_w'] + p['ln_b']
    text_features = jnp.einsum('crk,kd->crd', x.astype(jnp.bfloat16),
                               p['text_proj'].astype(jnp.bfloat16),
                               preferred_element_type=jnp.float32)

    patches = patchify(image.astype(jnp.float32))
    tok = jnp.dot(patches.reshape(-1, PATCH_DIM).astype(jnp.bfloat16),
                  p['w_patch'].astype(jnp.bfloat16),
                  preferred_element_type=jnp.float32).reshape(B, N_PATCH, VIS_WIDTH)
    image_features = jnp.dot(tok.mean(axis=1).astype(jnp.bfloat16),
                             p['w_vproj'].astype(jnp.bfloat16),
                             preferred_element_type=jnp.float32)

    img_n = image_features / jnp.maximum(
        jnp.linalg.norm(image_features, axis=-1, keepdims=True), NORM_EPS)
    txt_n = text_features / jnp.maximum(
        jnp.linalg.norm(text_features, axis=-1, keepdims=True), NORM_EPS)
    point = txt_n[:, 0, :]
    zs = txt_n[:, 1:, :]
    g = jnp.einsum('csd,ctd->cst', zs, zs)
    g_inv = jnp.linalg.inv(g)
    zsi = jnp.einsum('cst,ctd->csd', g_inv, zs)
    beta = jnp.einsum('csd,bd->csb', zsi, img_n)
    proj = jnp.einsum('csd,csb->bcd', zs, beta)
    num = jnp.sum(img_n[:, None, :] * proj, axis=-1)
    denom = jnp.maximum(jnp.linalg.norm(img_n, axis=-1)[:, None]
                        * jnp.linalg.norm(proj, axis=-1), COS_EPS)
    scale = jnp.exp(p['logit_scale'])
    logits = scale * num / denom
    logits_point = scale * img_n @ point.T
    return CE_WEIGHT * logits + (1.0 - CE_WEIGHT) * logits_point


# ============================ parameters & main ============================

def init_params(key):
    ks = jax.random.split(key, 10)
    eot_idx = jnp.array([6, 7, 8, 9, 6, 7, 8, 9], dtype=jnp.int32)
    tok = jnp.zeros((N_CLS, SEQ), jnp.int32).at[jnp.arange(N_CLS), eot_idx].set(49407)
    return {
        # ctx / ctx_space use a larger std so the synthetic subspace is well conditioned
        'ctx': jax.random.normal(ks[0], (N_CTX, CTX_DIM), jnp.float32),
        'ctx_space': jax.random.normal(ks[1], (SPACE_DIM, N_CTX, CTX_DIM), jnp.float32),
        'token_prefix': 0.02 * jax.random.normal(ks[2], (N_CLS, 1, CTX_DIM), jnp.float32),
        'token_suffix': 0.02 * jax.random.normal(ks[3], (N_CLS, SEQ - 1 - N_CTX, CTX_DIM),
                                                 jnp.float32),
        'pos_emb': 0.01 * jax.random.normal(ks[4], (SEQ, CTX_DIM), jnp.float32),
        'ln_w': jnp.ones((1, CTX_DIM), jnp.float32),
        'ln_b': jnp.zeros((1, CTX_DIM), jnp.float32),
        'text_proj': jax.random.normal(ks[5], (CTX_DIM, EMBED), jnp.float32)
                     / math.sqrt(CTX_DIM),
        'w_patch': jax.random.normal(ks[6], (PATCH_DIM, VIS_WIDTH), jnp.float32)
                   / math.sqrt(PATCH_DIM),
        'w_vproj': jax.random.normal(ks[7], (VIS_WIDTH, EMBED), jnp.float32)
                   / math.sqrt(VIS_WIDTH),
        'logit_scale': jnp.asarray(math.log(1.0 / 0.07), jnp.float32),
        'tokenized_prompts': tok,
    }


if __name__ == "__main__":
    key = jax.random.PRNGKey(0)
    pkey, ikey = jax.random.split(key)
    params = init_params(pkey)
    image = jax.random.normal(ikey, (B, C_IN, IMG, IMG), jnp.float32)  # NCHW

    forward = jax.jit(custom_clip_forward)
    out = jax.block_until_ready(forward(image, params))

    ref = jax.block_until_ready(reference_forward(image, params))
    assert out.shape == (B, N_CLS), out.shape
    assert bool(jnp.all(jnp.isfinite(out))), "non-finite logits"
    max_diff = float(jnp.max(jnp.abs(out - ref)))
    assert max_diff < 5e-2, f"mismatch vs pure-JAX reference: {max_diff}"

    print("KERNEL_OK")
</pallas_src>

<mosaic_0001>
module attributes {stable_mosaic.version = 11 : i64} {
  func.func @_fused_forward_kernel(%arg0: i32, %arg1: memref<1xf32, #tpu.memory_space<smem>>, %arg2: memref<8x1xi32, #tpu.memory_space<vmem>>, %arg3: memref<4x128xf32, #tpu.memory_space<vmem>>, %arg4: memref<4x4x128xf32, #tpu.memory_space<vmem>>, %arg5: memref<8x128xf32, #tpu.memory_space<vmem>>, %arg6: memref<8x11x128xf32, #tpu.memory_space<vmem>>, %arg7: memref<16x128xf32, #tpu.memory_space<vmem>>, %arg8: memref<1x128xf32, #tpu.memory_space<vmem>>, %arg9: memref<1x128xf32, #tpu.memory_space<vmem>>, %arg10: memref<128x128xf32, #tpu.memory_space<vmem>>, %arg11: memref<2x16x192xf32, #tpu.memory_space<vmem>>, %arg12: memref<192x128xf32, #tpu.memory_space<vmem>>, %arg13: memref<128x128xf32, #tpu.memory_space<vmem>>, %arg14: memref<2x128xf32, #tpu.memory_space<vmem>>) attributes {dimension_semantics = [#tpu.dimension_semantics<arbitrary>], iteration_bounds = array<i64: 1>, scalar_prefetch = 0 : i64, scratch_operands = 0 : i64, tpu.core_type = #tpu.core_type<tc>, window_params = [{transform_indices = @transform_0, window_bounds = array<i64: 1>}, {pipeline_mode = #tpu.pipeline_mode<synchronous>, transform_indices = @transform_1, window_bounds = array<i64: 8, 1>}, {pipeline_mode = #tpu.pipeline_mode<synchronous>, transform_indices = @transform_2, window_bounds = array<i64: 4, 128>}, {pipeline_mode = #tpu.pipeline_mode<synchronous>, transform_indices = @transform_3, window_bounds = array<i64: 4, 4, 128>}, {pipeline_mode = #tpu.pipeline_mode<synchronous>, transform_indices = @transform_4, window_bounds = array<i64: 8, 128>}, {pipeline_mode = #tpu.pipeline_mode<synchronous>, transform_indices = @transform_5, window_bounds = array<i64: 8, 11, 128>}, {pipeline_mode = #tpu.pipeline_mode<synchronous>, transform_indices = @transform_6, window_bounds = array<i64: 16, 128>}, {pipeline_mode = #tpu.pipeline_mode<synchronous>, transform_indices = @transform_7, window_bounds = array<i64: 1, 128>}, {pipeline_mode = #tpu.pipeline_mode<synchronous>, transform_indices = @transform_8, window_bounds = array<i64: 1, 128>}, {pipeline_mode = #tpu.pipeline_mode<synchronous>, transform_indices = @transform_9, window_bounds = array<i64: 128, 128>}, {pipeline_mode = #tpu.pipeline_mode<synchronous>, transform_indices = @transform_10, window_bounds = array<i64: 2, 16, 192>}, {pipeline_mode = #tpu.pipeline_mode<synchronous>, transform_indices = @transform_11, window_bounds = array<i64: 192, 128>}, {pipeline_mode = #tpu.pipeline_mode<synchronous>, transform_indices = @transform_12, window_bounds = array<i64: 128, 128>}, {pipeline_mode = #tpu.pipeline_mode<synchronous>, transform_indices = @transform_13, window_bounds = array<i64: 2, 128>}]} {
    %c0 = arith.constant 0 : index
    %c0_0 = arith.constant 0 : index
    %0 = vector.load %arg3[%c0, %c0_0] : memref<4x128xf32, #tpu.memory_space<vmem>>, vector<4x128xf32>
    %c0_1 = arith.constant 0 : index
    %c0_2 = arith.constant 0 : index
    %c0_3 = arith.constant 0 : index
    %1 = vector.load %arg4[%c0_1, %c0_2, %c0_3] : memref<4x4x128xf32, #tpu.memory_space<vmem>>, vector<4x4x128xf32>
    %c0_4 = arith.constant 0 : index
    %c0_5 = arith.constant 0 : index
    %2 = vector.load %arg5[%c0_4, %c0_5] : memref<8x128xf32, #tpu.memory_space<vmem>>, vector<8x128xf32>
    %c0_6 = arith.constant 0 : index
    %c0_7 = arith.constant 0 : index
    %c0_8 = arith.constant 0 : index
    %3 = vector.load %arg6[%c0_6, %c0_7, %c0_8] : memref<8x11x128xf32, #tpu.memory_space<vmem>>, vector<8x11x128xf32>
    %c0_9 = arith.constant 0 : index
    %c0_10 = arith.constant 0 : index
    %4 = vector.load %arg7[%c0_9, %c0_10] : memref<16x128xf32, #tpu.memory_space<vmem>>, vector<16x128xf32>
    %5 = tpu.iota {dimensions = array<i32: 1>} : vector<8x16xi32>
    %c0_11 = arith.constant 0 : index
    %c0_12 = arith.constant 0 : index
    %6 = vector.load %arg2[%c0_11, %c0_12] : memref<8x1xi32, #tpu.memory_space<vmem>>, vector<8x1xi32>
    %7 = vector.broadcast %6 : vector<8x1xi32> to vector<8x16xi32>
    %8 = arith.cmpi eq, %5, %7 : vector<8x16xi32>
    %9 = arith.extui %8 : vector<8x16xi1> to vector<8x16xi32>
    %10 = arith.sitofp %9 : vector<8x16xi32> to vector<8x16xf32>
    %cst = arith.constant dense<0.000000e+00> : vector<8x128xf32>
    %11 = vector.multi_reduction <add>, %3, %cst [1] : vector<8x11x128xf32> to vector<8x128xf32>
    %12 = arith.addf %2, %11 : vector<8x128xf32>
    %cst_13 = arith.constant dense<0.000000e+00> : vector<128xf32>
    %13 = vector.multi_reduction <add>, %0, %cst_13 [0] : vector<4x128xf32> to vector<128xf32>
    %14 = vector.shape_cast %13 : vector<128xf32> to vector<1x128xf32>
    %cst_14 = arith.constant dense<0.000000e+00> : vector<4x128xf32>
    %15 = vector.multi_reduction <add>, %1, %cst_14 [1] : vector<4x4x128xf32> to vector<4x128xf32>
    %16 = tpu.concatenate %14, %15 in 0 : vector<1x128xf32>, vector<4x128xf32> -> vector<5x128xf32>
    %17 = vector.shape_cast %12 : vector<8x128xf32> to vector<8x1x128xf32>
    %18 = vector.shape_cast %16 : vector<5x128xf32> to vector<1x5x128xf32>
    %19 = vector.broadcast %17 : vector<8x1x128xf32> to vector<8x5x128xf32>
    %20 = vector.broadcast %18 : vector<1x5x128xf32> to vector<8x5x128xf32>
    %21 = arith.addf %19, %20 : vector<8x5x128xf32>
    %cst_15 = arith.constant 6.250000e-02 : f32
    %22 = vector.broadcast %cst_15 : f32 to vector<8x5x128xf32>
    %23 = arith.mulf %21, %22 : vector<8x5x128xf32>
    %cst_16 = arith.constant dense<0.000000e+00> : vector<128xf32>
    %24 = vector.multi_reduction <add>, %4, %cst_16 [0] : vector<16x128xf32> to vector<128xf32>
    %25 = vector.shape_cast %24 : vector<128xf32> to vector<1x128xf32>
    %cst_17 = arith.constant 1.600000e+01 : f32
    %26 = vector.broadcast %cst_17 : f32 to vector<1x128xf32>
    %27 = arith.divf %25, %26 : vector<1x128xf32>
    %28 = vector.extract_strided_slice %10 {offsets = [0, 0], sizes = [8, 1], strides = [1, 1]} : vector<8x16xf32> to vector<8x1xf32>
    %29 = vector.broadcast %28 : vector<8x1xf32> to vector<8x128xf32>
    %30 = arith.mulf %29, %2 : vector<8x128xf32>
    %31 = vector.shape_cast %0 : vector<4x128xf32> to vector<1x4x128xf32>
    %32 = tpu.concatenate %31, %1 in 0 : vector<1x4x128xf32>, vector<4x4x128xf32> -> vector<5x4x128xf32>
    %33 = vector.extract_strided_slice %10 {offsets = [0, 1], sizes = [8, 4], strides = [1, 1]} : vector<8x16xf32> to vector<8x4xf32>
    %34 = vector.shape_cast %33 : vector<8x4xf32> to vector<8x1x4x1xf32>
    %35 = vector.shape_cast %32 : vector<5x4x128xf32> to vector<1x5x4x128xf32>
    %36 = vector.broadcast %34 : vector<8x1x4x1xf32> to vector<8x5x4x128xf32>
    %37 = vector.broadcast %35 : vector<1x5x4x128xf32> to vector<8x5x4x128xf32>
    %38 = arith.mulf %36, %37 : vector<8x5x4x128xf32>
    %cst_18 = arith.constant dense<0.000000e+00> : vector<8x5x128xf32>
    %39 = vector.multi_reduction <add>, %38, %cst_18 [2] : vector<8x5x4x128xf32> to vector<8x5x128xf32>
    %40 = vector.extract_strided_slice %10 {offsets = [0, 5], sizes = [8, 11], strides = [1, 1]} : vector<8x16xf32> to vector<8x11xf32>
    %41 = vector.shape_cast %40 : vector<8x11xf32> to vector<8x11x1xf32>
    %42 = vector.broadcast %41 : vector<8x11x1xf32> to vector<8x11x128xf32>
    %43 = arith.mulf %42, %3 : vector<8x11x128xf32>
    %cst_19 = arith.constant dense<0.000000e+00> : vector<8x128xf32>
    %44 = vector.multi_reduction <add>, %43, %cst_19 [1] : vector<8x11x128xf32> to vector<8x128xf32>
    %cst_20 = arith.constant dense<0.000000e+00> : vector<8x128xf32>
    %45 = tpu.matmul %10, %4, %cst_20 {dimension_numbers = #tpu.dot_dimension_numbers<[1], [0], [0], [1], [0, 0, 1, 1], [], []>} : vector<8x16xf32>, vector<16x128xf32>, vector<8x128xf32> -> vector<8x128xf32>
    %46 = arith.addf %39, %23 : vector<8x5x128xf32>
    %47 = arith.addf %30, %44 : vector<8x128xf32>
    %48 = arith.addf %47, %45 : vector<8x128xf32>
    %49 = vector.shape_cast %48 : vector<8x128xf32> to vector<8x1x128xf32>
    %50 = vector.broadcast %49 : vector<8x1x128xf32> to vector<8x5x128xf32>
    %51 = arith.addf %46, %50 : vector<8x5x128xf32>
    %52 = vector.shape_cast %27 : vector<1x128xf32> to vector<1x1x128xf32>
    %53 = vector.broadcast %52 : vector<1x1x128xf32> to vector<8x5x128xf32>
    %54 = arith.addf %51, %53 : vector<8x5x128xf32>
    %cst_21 = arith.constant dense<0.000000e+00> : vector<8x5xf32>
    %55 = vector.multi_reduction <add>, %54, %cst_21 [2] : vector<8x5x128xf32> to vector<8x5xf32>
    %56 = vector.shape_cast %55 : vector<8x5xf32> to vector<8x5x1xf32>
    %cst_22 = arith.constant 1.280000e+02 : f32
    %57 = vector.broadcast %cst_22 : f32 to vector<8x5x1xf32>
    %58 = arith.divf %56, %57 : vector<8x5x1xf32>
    %59 = vector.broadcast %58 : vector<8x5x1xf32> to vector<8x5x128xf32>
    %60 = arith.subf %54, %59 : vector<8x5x128xf32>
    %61 = arith.mulf %60, %60 : vector<8x5x128xf32>
    %cst_23 = arith.constant dense<0.000000e+00> : vector<8x5xf32>
    %62 = vector.multi_reduction <add>, %61, %cst_23 [2] : vector<8x5x128xf32> to vector<8x5xf32>
    %63 = vector.shape_cast %62 : vector<8x5xf32> to vector<8x5x1xf32>
    %cst_24 = arith.constant 1.280000e+02 : f32
    %64 = vector.broadcast %cst_24 : f32 to vector<8x5x1xf32>
    %65 = arith.divf %63, %64 : vector<8x5x1xf32>
    %66 = vector.broadcast %58 : vector<8x5x1xf32> to vector<8x5x128xf32>
    %67 = arith.subf %54, %66 : vector<8x5x128xf32>
    %cst_25 = arith.constant 9.99999974E-6 : f32
    %68 = vector.broadcast %cst_25 : f32 to vector<8x5x1xf32>
    %69 = arith.addf %65, %68 : vector<8x5x1xf32>
    %70 = math.rsqrt %69 : vector<8x5x1xf32>
    %71 = vector.broadcast %70 : vector<8x5x1xf32> to vector<8x5x128xf32>
    %72 = arith.mulf %67, %71 : vector<8x5x128xf32>
    %c0_26 = arith.constant 0 : index
    %c0_27 = arith.constant 0 : index
    %73 = vector.load %arg8[%c0_26, %c0_27] : memref<1x128xf32, #tpu.memory_space<vmem>>, vector<1x128xf32>
    %74 = vector.shape_cast %73 : vector<1x128xf32> to vector<1x1x128xf32>
    %75 = vector.broadcast %74 : vector<1x1x128xf32> to vector<8x5x128xf32>
    %76 = arith.mulf %72, %75 : vector<8x5x128xf32>
    %c0_28 = arith.constant 0 : index
    %c0_29 = arith.constant 0 : index
    %77 = vector.load %arg9[%c0_28, %c0_29] : memref<1x128xf32, #tpu.memory_space<vmem>>, vector<1x128xf32>
    %78 = vector.shape_cast %77 : vector<1x128xf32> to vector<1x1x128xf32>
    %79 = vector.broadcast %78 : vector<1x1x128xf32> to vector<8x5x128xf32>
    %80 = arith.addf %76, %79 : vector<8x5x128xf32>
    %81 = vector.shape_cast %80 : vector<8x5x128xf32> to vector<40x128xf32>
    %82 = arith.truncf %81 : vector<40x128xf32> to vector<40x128xbf16>
    %c0_30 = arith.constant 0 : index
    %c0_31 = arith.constant 0 : index
    %83 = vector.load %arg10[%c0_30, %c0_31] : memref<128x128xf32, #tpu.memory_space<vmem>>, vector<128x128xf32>
    %84 = arith.truncf %83 : vector<128x128xf32> to vector<128x128xbf16>
    %cst_32 = arith.constant dense<0.000000e+00> : vector<40x128xf32>
    %85 = tpu.matmul %82, %84, %cst_32 {dimension_numbers = #tpu.dot_dimension_numbers<[1], [0], [0], [1], [0, 0, 1, 1], [], []>} : vector<40x128xbf16>, vector<128x128xbf16>, vector<40x128xf32> -> vector<40x128xf32>
    %86 = vector.shape_cast %85 : vector<40x128xf32> to vector<8x5x128xf32>
    %c0_33 = arith.constant 0 : index
    %c0_34 = arith.constant 0 : index
    %c0_35 = arith.constant 0 : index
    %87 = vector.load %arg11[%c0_33, %c0_34, %c0_35] : memref<2x16x192xf32, #tpu.memory_space<vmem>>, vector<2x16x192xf32>
    %88 = vector.shape_cast %87 : vector<2x16x192xf32> to vector<32x192xf32>
    %89 = arith.truncf %88 : vector<32x192xf32> to vector<32x192xbf16>
    %c0_36 = arith.constant 0 : index
    %c0_37 = arith.constant 0 : index
    %90 = vector.load %arg12[%c0_36, %c0_37] : memref<192x128xf32, #tpu.memory_space<vmem>>, vector<192x128xf32>
    %91 = arith.truncf %90 : vector<192x128xf32> to vector<192x128xbf16>
    %cst_38 = arith.constant dense<0.000000e+00> : vector<32x128xf32>
    %92 = tpu.matmul %89, %91, %cst_38 {dimension_numbers = #tpu.dot_dimension_numbers<[1], [0], [0], [1], [0, 0, 1, 1], [], []>} : vector<32x192xbf16>, vector<192x128xbf16>, vector<32x128xf32> -> vector<32x128xf32>
    %93 = vector.shape_cast %92 : vector<32x128xf32> to vector<2x16x128xf32>
    %cst_39 = arith.constant dense<0.000000e+00> : vector<2x128xf32>
    %94 = vector.multi_reduction <add>, %93, %cst_39 [1] : vector<2x16x128xf32> to vector<2x128xf32>
    %cst_40 = arith.constant 1.600000e+01 : f32
    %95 = vector.broadcast %cst_40 : f32 to vector<2x128xf32>
    %96 = arith.divf %94, %95 : vector<2x128xf32>
    %97 = arith.truncf %96 : vector<2x128xf32> to vector<2x128xbf16>
    %c0_41 = arith.constant 0 : index
    %c0_42 = arith.constant 0 : index
    %98 = vector.load %arg13[%c0_41, %c0_42] : memref<128x128xf32, #tpu.memory_space<vmem>>, vector<128x128xf32>
    %99 = arith.truncf %98 : vector<128x128xf32> to vector<128x128xbf16>
    %cst_43 = arith.constant dense<0.000000e+00> : vector<2x128xf32>
    %100 = tpu.matmul %97, %99, %cst_43 {dimension_numbers = #tpu.dot_dimension_numbers<[1], [0], [0], [1], [0, 0, 1, 1], [], []>} : vector<2x128xbf16>, vector<128x128xbf16>, vector<2x128xf32> -> vector<2x128xf32>
    %101 = arith.mulf %100, %100 : vector<2x128xf32>
    %cst_44 = arith.constant dense<0.000000e+00> : vector<2xf32>
    %102 = vector.multi_reduction <add>, %101, %cst_44 [1] : vector<2x128xf32> to vector<2xf32>
    %103 = vector.shape_cast %102 : vector<2xf32> to vector<2x1xf32>
    %104 = math.sqrt %103 : vector<2x1xf32>
    %cst_45 = arith.constant 9.99999996E-13 : f32
    %105 = vector.broadcast %cst_45 : f32 to vector<2x1xf32>
    %106 = arith.maximumf %104, %105 : vector<2x1xf32>
    %107 = vector.broadcast %106 : vector<2x1xf32> to vector<2x128xf32>
    %108 = arith.divf %100, %107 : vector<2x128xf32>
    %109 = arith.mulf %86, %86 : vector<8x5x128xf32>
    %cst_46 = arith.constant dense<0.000000e+00> : vector<8x5xf32>
    %110 = vector.multi_reduction <add>, %109, %cst_46 [2] : vector<8x5x128xf32> to vector<8x5xf32>
    %111 = vector.shape_cast %110 : vector<8x5xf32> to vector<8x5x1xf32>
    %112 = math.sqrt %111 : vector<8x5x1xf32>
    %cst_47 = arith.constant 9.99999996E-13 : f32
    %113 = vector.broadcast %cst_47 : f32 to vector<8x5x1xf32>
    %114 = arith.maximumf %112, %113 : vector<8x5x1xf32>
    %115 = vector.broadcast %114 : vector<8x5x1xf32> to vector<8x5x128xf32>
    %116 = arith.divf %86, %115 : vector<8x5x128xf32>
    %117 = vector.extract_strided_slice %116 {offsets = [0, 0, 0], sizes = [8, 1, 128], strides = [1, 1, 1]} : vector<8x5x128xf32> to vector<8x1x128xf32>
    %118 = vector.shape_cast %117 : vector<8x1x128xf32> to vector<8x128xf32>
    %119 = vector.extract_strided_slice %116 {offsets = [0, 1, 0], sizes = [8, 4, 128], strides = [1, 1, 1]} : vector<8x5x128xf32> to vector<8x4x128xf32>
    %120 = vector.extract_strided_slice %119 {offsets = [0, 0, 0], sizes = [8, 1, 128], strides = [1, 1, 1]} : vector<8x4x128xf32> to vector<8x1x128xf32>
    %121 = vector.shape_cast %120 : vector<8x1x128xf32> to vector<8x128xf32>
    %122 = vector.extract_strided_slice %119 {offsets = [0, 1, 0], sizes = [8, 1, 128], strides = [1, 1, 1]} : vector<8x4x128xf32> to vector<8x1x128xf32>
    %123 = vector.shape_cast %122 : vector<8x1x128xf32> to vector<8x128xf32>
    %124 = vector.extract_strided_slice %119 {offsets = [0, 2, 0], sizes = [8, 1, 128], strides = [1, 1, 1]} : vector<8x4x128xf32> to vector<8x1x128xf32>
    %125 = vector.shape_cast %124 : vector<8x1x128xf32> to vector<8x128xf32>
    %126 = vector.extract_strided_slice %119 {offsets = [0, 3, 0], sizes = [8, 1, 128], strides = [1, 1, 1]} : vector<8x4x128xf32> to vector<8x1x128xf32>
    %127 = vector.shape_cast %126 : vector<8x1x128xf32> to vector<8x128xf32>
    %128 = arith.mulf %121, %121 : vector<8x128xf32>
    %cst_48 = arith.constant dense<0.000000e+00> : vector<8xf32>
    %129 = vector.multi_reduction <add>, %128, %cst_48 [1] : vector<8x128xf32> to vector<8xf32>
    %130 = vector.shape_cast %129 : vector<8xf32> to vector<8x1xf32>
    %131 = arith.mulf %121, %123 : vector<8x128xf32>
    %cst_49 = arith.constant dense<0.000000e+00> : vector<8xf32>
    %132 = vector.multi_reduction <add>, %131, %cst_49 [1] : vector<8x128xf32> to vector<8xf32>
    %133 = vector.shape_cast %132 : vector<8xf32> to vector<8x1xf32>
    %134 = arith.mulf %121, %125 : vector<8x128xf32>
    %cst_50 = arith.constant dense<0.000000e+00> : vector<8xf32>
    %135 = vector.multi_reduction <add>, %134, %cst_50 [1] : vector<8x128xf32> to vector<8xf32>
    %136 = vector.shape_cast %135 : vector<8xf32> to vector<8x1xf32>
    %137 = arith.mulf %121, %127 : vector<8x128xf32>
    %cst_51 = arith.constant dense<0.000000e+00> : vector<8xf32>
    %138 = vector.multi_reduction <add>, %137, %cst_51 [1] : vector<8x128xf32> to vector<8xf32>
    %139 = vector.shape_cast %138 : vector<8xf32> to vector<8x1xf32>
    %140 = arith.mulf %123, %123 : vector<8x128xf32>
    %cst_52 = arith.constant dense<0.000000e+00> : vector<8xf32>
    %141 = vector.multi_reduction <add>, %140, %cst_52 [1] : vector<8x128xf32> to vector<8xf32>
    %142 = vector.shape_cast %141 : vector<8xf32> to vector<8x1xf32>
    %143 = arith.mulf %123, %125 : vector<8x128xf32>
    %cst_53 = arith.constant dense<0.000000e+00> : vector<8xf32>
    %144 = vector.multi_reduction <add>, %143, %cst_53 [1] : vector<8x128xf32> to vector<8xf32>
    %145 = vector.shape_cast %144 : vector<8xf32> to vector<8x1xf32>
    %146 = arith.mulf %123, %127 : vector<8x128xf32>
    %cst_54 = arith.constant dense<0.000000e+00> : vector<8xf32>
    %147 = vector.multi_reduction <add>, %146, %cst_54 [1] : vector<8x128xf32> to vector<8xf32>
    %148 = vector.shape_cast %147 : vector<8xf32> to vector<8x1xf32>
    %149 = arith.mulf %125, %125 : vector<8x128xf32>
    %cst_55 = arith.constant dense<0.000000e+00> : vector<8xf32>
    %150 = vector.multi_reduction <add>, %149, %cst_55 [1] : vector<8x128xf32> to vector<8xf32>
    %151 = vector.shape_cast %150 : vector<8xf32> to vector<8x1xf32>
    %152 = arith.mulf %125, %127 : vector<8x128xf32>
    %cst_56 = arith.constant dense<0.000000e+00> : vector<8xf32>
    %153 = vector.multi_reduction <add>, %152, %cst_56 [1] : vector<8x128xf32> to vector<8xf32>
    %154 = vector.shape_cast %153 : vector<8xf32> to vector<8x1xf32>
    %155 = arith.mulf %127, %127 : vector<8x128xf32>
    %cst_57 = arith.constant dense<0.000000e+00> : vector<8xf32>
    %156 = vector.multi_reduction <add>, %155, %cst_57 [1] : vector<8x128xf32> to vector<8xf32>
    %157 = vector.shape_cast %156 : vector<8xf32> to vector<8x1xf32>
    %158 = arith.mulf %142, %151 : vector<8x1xf32>
    %159 = arith.mulf %158, %157 : vector<8x1xf32>
    %160 = arith.mulf %142, %154 : vector<8x1xf32>
    %161 = arith.mulf %160, %154 : vector<8x1xf32>
    %162 = arith.subf %159, %161 : vector<8x1xf32>
    %163 = arith.mulf %145, %145 : vector<8x1xf32>
    %164 = arith.mulf %163, %157 : vector<8x1xf32>
    %165 = arith.subf %162, %164 : vector<8x1xf32>
    %166 = arith.mulf %145, %148 : vector<8x1xf32>
    %167 = arith.mulf %166, %154 : vector<8x1xf32>
    %168 = arith.addf %165, %167 : vector<8x1xf32>
    %169 = arith.mulf %148, %145 : vector<8x1xf32>
    %170 = arith.mulf %169, %154 : vector<8x1xf32>
    %171 = arith.addf %168, %170 : vector<8x1xf32>
    %172 = arith.mulf %148, %148 : vector<8x1xf32>
    %173 = arith.mulf %172, %151 : vector<8x1xf32>
    %174 = arith.subf %171, %173 : vector<8x1xf32>
    %cst_58 = arith.constant 0.000000e+00 : f32
    %175 = vector.broadcast %cst_58 : f32 to vector<8x1xf32>
    %176 = arith.subf %175, %133 : vector<8x1xf32>
    %177 = arith.mulf %176, %151 : vector<8x1xf32>
    %178 = arith.mulf %177, %157 : vector<8x1xf32>
    %179 = arith.mulf %133, %154 : vector<8x1xf32>
    %180 = arith.mulf %179, %154 : vector<8x1xf32>
    %181 = arith.addf %178, %180 : vector<8x1xf32>
    %182 = arith.mulf %145, %136 : vector<8x1xf32>
    %183 = arith.mulf %182, %157 : vector<8x1xf32>
    %184 = arith.addf %181, %183 : vector<8x1xf32>
    %185 = arith.mulf %145, %139 : vector<8x1xf32>
    %186 = arith.mulf %185, %154 : vector<8x1xf32>
    %187 = arith.subf %184, %186 : vector<8x1xf32>
    %188 = arith.mulf %148, %136 : vector<8x1xf32>
    %189 = arith.mulf %188, %154 : vector<8x1xf32>
    %190 = arith.subf %187, %189 : vector<8x1xf32>
    %191 = arith.mulf %148, %139 : vector<8x1xf32>
    %192 = arith.mulf %191, %151 : vector<8x1xf32>
    %193 = arith.addf %190, %192 : vector<8x1xf32>
    %194 = arith.mulf %133, %145 : vector<8x1xf32>
    %195 = arith.mulf %194, %157 : vector<8x1xf32>
    %196 = arith.mulf %133, %148 : vector<8x1xf32>
    %197 = arith.mulf %196, %154 : vector<8x1xf32>
    %198 = arith.subf %195, %197 : vector<8x1xf32>
    %199 = arith.mulf %142, %136 : vector<8x1xf32>
    %200 = arith.mulf %199, %157 : vector<8x1xf32>
    %201 = arith.subf %198, %200 : vector<8x1xf32>
    %202 = arith.mulf %142, %139 : vector<8x1xf32>
    %203 = arith.mulf %202, %154 : vector<8x1xf32>
    %204 = arith.addf %201, %203 : vector<8x1xf32>
    %205 = arith.mulf %148, %136 : vector<8x1xf32>
    %206 = arith.mulf %205, %148 : vector<8x1xf32>
    %207 = arith.addf %204, %206 : vector<8x1xf32>
    %208 = arith.mulf %148, %139 : vector<8x1xf32>
    %209 = arith.mulf %208, %145 : vector<8x1xf32>
    %210 = arith.subf %207, %209 : vector<8x1xf32>
    %cst_59 = arith.constant 0.000000e+00 : f32
    %211 = vector.broadcast %cst_59 : f32 to vector<8x1xf32>
    %212 = arith.subf %211, %133 : vector<8x1xf32>
    %213 = arith.mulf %212, %145 : vector<8x1xf32>
    %214 = arith.mulf %213, %154 : vector<8x1xf32>
    %215 = arith.mulf %133, %148 : vector<8x1xf32>
    %216 = arith.mulf %215, %151 : vector<8x1xf32>
    %217 = arith.addf %214, %216 : vector<8x1xf32>
    %218 = arith.mulf %142, %136 : vector<8x1xf32>
    %219 = arith.mulf %218, %154 : vector<8x1xf32>
    %220 = arith.addf %217, %219 : vector<8x1xf32>
    %221 = arith.mulf %142, %139 : vector<8x1xf32>
    %222 = arith.mulf %221, %151 : vector<8x1xf32>
    %223 = arith.subf %220, %222 : vector<8x1xf32>
    %224 = arith.mulf %145, %136 : vector<8x1xf32>
    %225 = arith.mulf %224, %148 : vector<8x1xf32>
    %226 = arith.subf %223, %225 : vector<8x1xf32>
    %227 = arith.mulf %145, %139 : vector<8x1xf32>
    %228 = arith.mulf %227, %145 : vector<8x1xf32>
    %229 = arith.addf %226, %228 : vector<8x1xf32>
    %cst_60 = arith.constant 0.000000e+00 : f32
    %230 = vector.broadcast %cst_60 : f32 to vector<8x1xf32>
    %231 = arith.subf %230, %133 : vector<8x1xf32>
    %232 = arith.mulf %231, %151 : vector<8x1xf32>
    %233 = arith.mulf %232, %157 : vector<8x1xf32>
    %234 = arith.mulf %133, %154 : vector<8x1xf32>
    %235 = arith.mulf %234, %154 : vector<8x1xf32>
    %236 = arith.addf %233, %235 : vector<8x1xf32>
    %237 = arith.mulf %136, %145 : vector<8x1xf32>
    %238 = arith.mulf %237, %157 : vector<8x1xf32>
    %239 = arith.addf %236, %238 : vector<8x1xf32>
    %240 = arith.mulf %136, %148 : vector<8x1xf32>
    %241 = arith.mulf %240, %154 : vector<8x1xf32>
    %242 = arith.subf %239, %241 : vector<8x1xf32>
    %243 = arith.mulf %139, %145 : vector<8x1xf32>
    %244 = arith.mulf %243, %154 : vector<8x1xf32>
    %245 = arith.subf %242, %244 : vector<8x1xf32>
    %246 = arith.mulf %139, %148 : vector<8x1xf32>
    %247 = arith.mulf %246, %151 : vector<8x1xf32>
    %248 = arith.addf %245, %247 : vector<8x1xf32>
    %249 = arith.mulf %130, %151 : vector<8x1xf32>
    %250 = arith.mulf %249, %157 : vector<8x1xf32>
    %251 = arith.mulf %130, %154 : vector<8x1xf32>
    %252 = arith.mulf %251, %154 : vector<8x1xf32>
    %253 = arith.subf %250, %252 : vector<8x1xf32>
    %254 = arith.mulf %136, %136 : vector<8x1xf32>
    %255 = arith.mulf %254, %157 : vector<8x1xf32>
    %256 = arith.subf %253, %255 : vector<8x1xf32>
    %257 = arith.mulf %136, %139 : vector<8x1xf32>
    %258 = arith.mulf %257, %154 : vector<8x1xf32>
    %259 = arith.addf %256, %258 : vector<8x1xf32>
    %260 = arith.mulf %139, %136 : vector<8x1xf32>
    %261 = arith.mulf %260, %154 : vector<8x1xf32>
    %262 = arith.addf %259, %261 : vector<8x1xf32>
    %263 = arith.mulf %139, %139 : vector<8x1xf32>
    %264 = arith.mulf %263, %151 : vector<8x1xf32>
    %265 = arith.subf %262, %264 : vector<8x1xf32>
    %cst_61 = arith.constant 0.000000e+00 : f32
    %266 = vector.broadcast %cst_61 : f32 to vector<8x1xf32>
    %267 = arith.subf %266, %130 : vector<8x1xf32>
    %268 = arith.mulf %267, %145 : vector<8x1xf32>
    %269 = arith.mulf %268, %157 : vector<8x1xf32>
    %270 = arith.mulf %130, %148 : vector<8x1xf32>
    %271 = arith.mulf %270, %154 : vector<8x1xf32>
    %272 = arith.addf %269, %271 : vector<8x1xf32>
    %273 = arith.mulf %133, %136 : vector<8x1xf32>
    %274 = arith.mulf %273, %157 : vector<8x1xf32>
    %275 = arith.addf %272, %274 : vector<8x1xf32>
    %276 = arith.mulf %133, %139 : vector<8x1xf32>
    %277 = arith.mulf %276, %154 : vector<8x1xf32>
    %278 = arith.subf %275, %277 : vector<8x1xf32>
    %279 = arith.mulf %139, %136 : vector<8x1xf32>
    %280 = arith.mulf %279, %148 : vector<8x1xf32>
    %281 = arith.subf %278, %280 : vector<8x1xf32>
    %282 = arith.mulf %139, %139 : vector<8x1xf32>
    %283 = arith.mulf %282, %145 : vector<8x1xf32>
    %284 = arith.addf %281, %283 : vector<8x1xf32>
    %285 = arith.mulf %130, %145 : vector<8x1xf32>
    %286 = arith.mulf %285, %154 : vector<8x1xf32>
    %287 = arith.mulf %130, %148 : vector<8x1xf32>
    %288 = arith.mulf %287, %151 : vector<8x1xf32>
    %289 = arith.subf %286, %288 : vector<8x1xf32>
    %290 = arith.mulf %133, %136 : vector<8x1xf32>
    %291 = arith.mulf %290, %154 : vector<8x1xf32>
    %292 = arith.subf %289, %291 : vector<8x1xf32>
    %293 = arith.mulf %133, %139 : vector<8x1xf32>
    %294 = arith.mulf %293, %151 : vector<8x1xf32>
    %295 = arith.addf %292, %294 : vector<8x1xf32>
    %296 = arith.mulf %136, %136 : vector<8x1xf32>
    %297 = arith.mulf %296, %148 : vector<8x1xf32>
    %298 = arith.addf %295, %297 : vector<8x1xf32>
    %299 = arith.mulf %136, %139 : vector<8x1xf32>
    %300 = arith.mulf %299, %145 : vector<8x1xf32>
    %301 = arith.subf %298, %300 : vector<8x1xf32>
    %302 = arith.mulf %133, %145 : vector<8x1xf32>
    %303 = arith.mulf %302, %157 : vector<8x1xf32>
    %304 = arith.mulf %133, %154 : vector<8x1xf32>
    %305 = arith.mulf %304, %148 : vector<8x1xf32>
    %306 = arith.subf %303, %305 : vector<8x1xf32>
    %307 = arith.mulf %136, %142 : vector<8x1xf32>
    %308 = arith.mulf %307, %157 : vector<8x1xf32>
    %309 = arith.subf %306, %308 : vector<8x1xf32>
    %310 = arith.mulf %136, %148 : vector<8x1xf32>
    %311 = arith.mulf %310, %148 : vector<8x1xf32>
    %312 = arith.addf %309, %311 : vector<8x1xf32>
    %313 = arith.mulf %139, %142 : vector<8x1xf32>
    %314 = arith.mulf %313, %154 : vector<8x1xf32>
    %315 = arith.addf %312, %314 : vector<8x1xf32>
    %316 = arith.mulf %139, %148 : vector<8x1xf32>
    %317 = arith.mulf %316, %145 : vector<8x1xf32>
    %318 = arith.subf %315, %317 : vector<8x1xf32>
    %cst_62 = arith.constant 0.000000e+00 : f32
    %319 = vector.broadcast %cst_62 : f32 to vector<8x1xf32>
    %320 = arith.subf %319, %130 : vector<8x1xf32>
    %321 = arith.mulf %320, %145 : vector<8x1xf32>
    %322 = arith.mulf %321, %157 : vector<8x1xf32>
    %323 = arith.mulf %130, %154 : vector<8x1xf32>
    %324 = arith.mulf %323, %148 : vector<8x1xf32>
    %325 = arith.addf %322, %324 : vector<8x1xf32>
    %326 = arith.mulf %136, %133 : vector<8x1xf32>
    %327 = arith.mulf %326, %157 : vector<8x1xf32>
    %328 = arith.addf %325, %327 : vector<8x1xf32>
    %329 = arith.mulf %136, %139 : vector<8x1xf32>
    %330 = arith.mulf %329, %148 : vector<8x1xf32>
    %331 = arith.subf %328, %330 : vector<8x1xf32>
    %332 = arith.mulf %139, %133 : vector<8x1xf32>
    %333 = arith.mulf %332, %154 : vector<8x1xf32>
    %334 = arith.subf %331, %333 : vector<8x1xf32>
    %335 = arith.mulf %139, %139 : vector<8x1xf32>
    %336 = arith.mulf %335, %145 : vector<8x1xf32>
    %337 = arith.addf %334, %336 : vector<8x1xf32>
    %338 = arith.mulf %130, %142 : vector<8x1xf32>
    %339 = arith.mulf %338, %157 : vector<8x1xf32>
    %340 = arith.mulf %130, %148 : vector<8x1xf32>
    %341 = arith.mulf %340, %148 : vector<8x1xf32>
    %342 = arith.subf %339, %341 : vector<8x1xf32>
    %343 = arith.mulf %133, %133 : vector<8x1xf32>
    %344 = arith.mulf %343, %157 : vector<8x1xf32>
    %345 = arith.subf %342, %344 : vector<8x1xf32>
    %346 = arith.mulf %133, %139 : vector<8x1xf32>
    %347 = arith.mulf %346, %148 : vector<8x1xf32>
    %348 = arith.addf %345, %347 : vector<8x1xf32>
    %349 = arith.mulf %139, %133 : vector<8x1xf32>
    %350 = arith.mulf %349, %148 : vector<8x1xf32>
    %351 = arith.addf %348, %350 : vector<8x1xf32>
    %352 = arith.mulf %139, %139 : vector<8x1xf32>
    %353 = arith.mulf %352, %142 : vector<8x1xf32>
    %354 = arith.subf %351, %353 : vector<8x1xf32>
    %cst_63 = arith.constant 0.000000e+00 : f32
    %355 = vector.broadcast %cst_63 : f32 to vector<8x1xf32>
    %356 = arith.subf %355, %130 : vector<8x1xf32>
    %357 = arith.mulf %356, %142 : vector<8x1xf32>
    %358 = arith.mulf %357, %154 : vector<8x1xf32>
    %359 = arith.mulf %130, %148 : vector<8x1xf32>
    %360 = arith.mulf %359, %145 : vector<8x1xf32>
    %361 = arith.addf %358, %360 : vector<8x1xf32>
    %362 = arith.mulf %133, %133 : vector<8x1xf32>
    %363 = arith.mulf %362, %154 : vector<8x1xf32>
    %364 = arith.addf %361, %363 : vector<8x1xf32>
    %365 = arith.mulf %133, %139 : vector<8x1xf32>
    %366 = arith.mulf %365, %145 : vector<8x1xf32>
    %367 = arith.subf %364, %366 : vector<8x1xf32>
    %368 = arith.mulf %136, %133 : vector<8x1xf32>
    %369 = arith.mulf %368, %148 : vector<8x1xf32>
    %370 = arith.subf %367, %369 : vector<8x1xf32>
    %371 = arith.mulf %136, %139 : vector<8x1xf32>
    %372 = arith.mulf %371, %142 : vector<8x1xf32>
    %373 = arith.addf %370, %372 : vector<8x1xf32>
    %cst_64 = arith.constant 0.000000e+00 : f32
    %374 = vector.broadcast %cst_64 : f32 to vector<8x1xf32>
    %375 = arith.subf %374, %133 : vector<8x1xf32>
    %376 = arith.mulf %375, %145 : vector<8x1xf32>
    %377 = arith.mulf %376, %154 : vector<8x1xf32>
    %378 = arith.mulf %133, %151 : vector<8x1xf32>
    %379 = arith.mulf %378, %148 : vector<8x1xf32>
    %380 = arith.addf %377, %379 : vector<8x1xf32>
    %381 = arith.mulf %136, %142 : vector<8x1xf32>
    %382 = arith.mulf %381, %154 : vector<8x1xf32>
    %383 = arith.addf %380, %382 : vector<8x1xf32>
    %384 = arith.mulf %136, %145 : vector<8x1xf32>
    %385 = arith.mulf %384, %148 : vector<8x1xf32>
    %386 = arith.subf %383, %385 : vector<8x1xf32>
    %387 = arith.mulf %139, %142 : vector<8x1xf32>
    %388 = arith.mulf %387, %151 : vector<8x1xf32>
    %389 = arith.subf %386, %388 : vector<8x1xf32>
    %390 = arith.mulf %139, %145 : vector<8x1xf32>
    %391 = arith.mulf %390, %145 : vector<8x1xf32>
    %392 = arith.addf %389, %391 : vector<8x1xf32>
    %393 = arith.mulf %130, %145 : vector<8x1xf32>
    %394 = arith.mulf %393, %154 : vector<8x1xf32>
    %395 = arith.mulf %130, %151 : vector<8x1xf32>
    %396 = arith.mulf %395, %148 : vector<8x1xf32>
    %397 = arith.subf %394, %396 : vector<8x1xf32>
    %398 = arith.mulf %136, %133 : vector<8x1xf32>
    %399 = arith.mulf %398, %154 : vector<8x1xf32>
    %400 = arith.subf %397, %399 : vector<8x1xf32>
    %401 = arith.mulf %136, %136 : vector<8x1xf32>
    %402 = arith.mulf %401, %148 : vector<8x1xf32>
    %403 = arith.addf %400, %402 : vector<8x1xf32>
    %404 = arith.mulf %139, %133 : vector<8x1xf32>
    %405 = arith.mulf %404, %151 : vector<8x1xf32>
    %406 = arith.addf %403, %405 : vector<8x1xf32>
    %407 = arith.mulf %139, %136 : vector<8x1xf32>
    %408 = arith.mulf %407, %145 : vector<8x1xf32>
    %409 = arith.subf %406, %408 : vector<8x1xf32>
    %cst_65 = arith.constant 0.000000e+00 : f32
    %410 = vector.broadcast %cst_65 : f32 to vector<8x1xf32>
    %411 = arith.subf %410, %130 : vector<8x1xf32>
    %412 = arith.mulf %411, %142 : vector<8x1xf32>
    %413 = arith.mulf %412, %154 : vector<8x1xf32>
    %414 = arith.mulf %130, %145 : vector<8x1xf32>
    %415 = arith.mulf %414, %148 : vector<8x1xf32>
    %416 = arith.addf %413, %415 : vector<8x1xf32>
    %417 = arith.mulf %133, %133 : vector<8x1xf32>
    %418 = arith.mulf %417, %154 : vector<8x1xf32>
    %419 = arith.addf %416, %418 : vector<8x1xf32>
    %420 = arith.mulf %133, %136 : vector<8x1xf32>
    %421 = arith.mulf %420, %148 : vector<8x1xf32>
    %422 = arith.subf %419, %421 : vector<8x1xf32>
    %423 = arith.mulf %139, %133 : vector<8x1xf32>
    %424 = arith.mulf %423, %145 : vector<8x1xf32>
    %425 = arith.subf %422, %424 : vector<8x1xf32>
    %426 = arith.mulf %139, %136 : vector<8x1xf32>
    %427 = arith.mulf %426, %142 : vector<8x1xf32>
    %428 = arith.addf %425, %427 : vector<8x1xf32>
    %429 = arith.mulf %130, %142 : vector<8x1xf32>
    %430 = arith.mulf %429, %151 : vector<8x1xf32>
    %431 = arith.mulf %130, %145 : vector<8x1xf32>
    %432 = arith.mulf %431, %145 : vector<8x1xf32>
    %433 = arith.subf %430, %432 : vector<8x1xf32>
    %434 = arith.mulf %133, %133 : vector<8x1xf32>
    %435 = arith.mulf %434, %151 : vector<8x1xf32>
    %436 = arith.subf %433, %435 : vector<8x1xf32>
    %437 = arith.mulf %133, %136 : vector<8x1xf32>
    %438 = arith.mulf %437, %145 : vector<8x1xf32>
    %439 = arith.addf %436, %438 : vector<8x1xf32>
    %440 = arith.mulf %136, %133 : vector<8x1xf32>
    %441 = arith.mulf %440, %145 : vector<8x1xf32>
    %442 = arith.addf %439, %441 : vector<8x1xf32>
    %443 = arith.mulf %136, %136 : vector<8x1xf32>
    %444 = arith.mulf %443, %142 : vector<8x1xf32>
    %445 = arith.subf %442, %444 : vector<8x1xf32>
    %446 = arith.mulf %130, %174 : vector<8x1xf32>
    %447 = arith.mulf %133, %248 : vector<8x1xf32>
    %448 = arith.addf %446, %447 : vector<8x1xf32>
    %449 = arith.mulf %136, %318 : vector<8x1xf32>
    %450 = arith.addf %448, %449 : vector<8x1xf32>
    %451 = arith.mulf %139, %392 : vector<8x1xf32>
    %452 = arith.addf %450, %451 : vector<8x1xf32>
    %453 = vector.shape_cast %119 : vector<8x4x128xf32> to vector<32x128xf32>
    "tpu.trace_start"() <{level = 10 : i32, message = "nd,bd->nb"}> : () -> ()
    %cst_66 = arith.constant dense<0.000000e+00> : vector<32x2xf32>
    %454 = tpu.matmul %453, %108, %cst_66 {dimension_numbers = #tpu.dot_dimension_numbers<[1], [1], [0], [0], [0, 0, 1, 0], [], []>} : vector<32x128xf32>, vector<2x128xf32>, vector<32x2xf32> -> vector<32x2xf32>
    "tpu.trace_stop"() : () -> ()
    %455 = vector.shape_cast %454 : vector<32x2xf32> to vector<8x4x2xf32>
    %456 = vector.extract_strided_slice %455 {offsets = [0, 0, 0], sizes = [8, 1, 2], strides = [1, 1, 1]} : vector<8x4x2xf32> to vector<8x1x2xf32>
    %457 = vector.shape_cast %456 : vector<8x1x2xf32> to vector<8x2xf32>
    %458 = vector.extract_strided_slice %455 {offsets = [0, 1, 0], sizes = [8, 1, 2], strides = [1, 1, 1]} : vector<8x4x2xf32> to vector<8x1x2xf32>
    %459 = vector.shape_cast %458 : vector<8x1x2xf32> to vector<8x2xf32>
    %460 = vector.extract_strided_slice %455 {offsets = [0, 2, 0], sizes = [8, 1, 2], strides = [1, 1, 1]} : vector<8x4x2xf32> to vector<8x1x2xf32>
    %461 = vector.shape_cast %460 : vector<8x1x2xf32> to vector<8x2xf32>
    %462 = vector.extract_strided_slice %455 {offsets = [0, 3, 0], sizes = [8, 1, 2], strides = [1, 1, 1]} : vector<8x4x2xf32> to vector<8x1x2xf32>
    %463 = vector.shape_cast %462 : vector<8x1x2xf32> to vector<8x2xf32>
    %cst_67 = arith.constant 0.000000e+00 : f32
    %464 = vector.broadcast %cst_67 : f32 to vector<8x2xf32>
    %465 = arith.mulf %457, %457 : vector<8x2xf32>
    %466 = vector.broadcast %174 : vector<8x1xf32> to vector<8x2xf32>
    %467 = arith.mulf %466, %465 : vector<8x2xf32>
    %468 = arith.addf %464, %467 : vector<8x2xf32>
    %469 = arith.mulf %457, %459 : vector<8x2xf32>
    %470 = vector.broadcast %193 : vector<8x1xf32> to vector<8x2xf32>
    %471 = arith.mulf %470, %469 : vector<8x2xf32>
    %472 = arith.addf %468, %471 : vector<8x2xf32>
    %473 = arith.mulf %457, %461 : vector<8x2xf32>
    %474 = vector.broadcast %210 : vector<8x1xf32> to vector<8x2xf32>
    %475 = arith.mulf %474, %473 : vector<8x2xf32>
    %476 = arith.addf %472, %475 : vector<8x2xf32>
    %477 = arith.mulf %457, %463 : vector<8x2xf32>
    %478 = vector.broadcast %229 : vector<8x1xf32> to vector<8x2xf32>
    %479 = arith.mulf %478, %477 : vector<8x2xf32>
    %480 = arith.addf %476, %479 : vector<8x2xf32>
    %481 = arith.mulf %459, %457 : vector<8x2xf32>
    %482 = vector.broadcast %248 : vector<8x1xf32> to vector<8x2xf32>
    %483 = arith.mulf %482, %481 : vector<8x2xf32>
    %484 = arith.addf %480, %483 : vector<8x2xf32>
    %485 = arith.mulf %459, %459 : vector<8x2xf32>
    %486 = vector.broadcast %265 : vector<8x1xf32> to vector<8x2xf32>
    %487 = arith.mulf %486, %485 : vector<8x2xf32>
    %488 = arith.addf %484, %487 : vector<8x2xf32>
    %489 = arith.mulf %459, %461 : vector<8x2xf32>
    %490 = vector.broadcast %284 : vector<8x1xf32> to vector<8x2xf32>
    %491 = arith.mulf %490, %489 : vector<8x2xf32>
    %492 = arith.addf %488, %491 : vector<8x2xf32>
    %493 = arith.mulf %459, %463 : vector<8x2xf32>
    %494 = vector.broadcast %301 : vector<8x1xf32> to vector<8x2xf32>
    %495 = arith.mulf %494, %493 : vector<8x2xf32>
    %496 = arith.addf %492, %495 : vector<8x2xf32>
    %497 = arith.mulf %461, %457 : vector<8x2xf32>
    %498 = vector.broadcast %318 : vector<8x1xf32> to vector<8x2xf32>
    %499 = arith.mulf %498, %497 : vector<8x2xf32>
    %500 = arith.addf %496, %499 : vector<8x2xf32>
    %501 = arith.mulf %461, %459 : vector<8x2xf32>
    %502 = vector.broadcast %337 : vector<8x1xf32> to vector<8x2xf32>
    %503 = arith.mulf %502, %501 : vector<8x2xf32>
    %504 = arith.addf %500, %503 : vector<8x2xf32>
    %505 = arith.mulf %461, %461 : vector<8x2xf32>
    %506 = vector.broadcast %354 : vector<8x1xf32> to vector<8x2xf32>
    %507 = arith.mulf %506, %505 : vector<8x2xf32>
    %508 = arith.addf %504, %507 : vector<8x2xf32>
    %509 = arith.mulf %461, %463 : vector<8x2xf32>
    %510 = vector.broadcast %373 : vector<8x1xf32> to vector<8x2xf32>
    %511 = arith.mulf %510, %509 : vector<8x2xf32>
    %512 = arith.addf %508, %511 : vector<8x2xf32>
    %513 = arith.mulf %463, %457 : vector<8x2xf32>
    %514 = vector.broadcast %392 : vector<8x1xf32> to vector<8x2xf32>
    %515 = arith.mulf %514, %513 : vector<8x2xf32>
    %516 = arith.addf %512, %515 : vector<8x2xf32>
    %517 = arith.mulf %463, %459 : vector<8x2xf32>
    %518 = vector.broadcast %409 : vector<8x1xf32> to vector<8x2xf32>
    %519 = arith.mulf %518, %517 : vector<8x2xf32>
    %520 = arith.addf %516, %519 : vector<8x2xf32>
    %521 = arith.mulf %463, %461 : vector<8x2xf32>
    %522 = vector.broadcast %428 : vector<8x1xf32> to vector<8x2xf32>
    %523 = arith.mulf %522, %521 : vector<8x2xf32>
    %524 = arith.addf %520, %523 : vector<8x2xf32>
    %525 = arith.mulf %463, %463 : vector<8x2xf32>
    %526 = vector.broadcast %445 : vector<8x1xf32> to vector<8x2xf32>
    %527 = arith.mulf %526, %525 : vector<8x2xf32>
    %528 = arith.addf %524, %527 : vector<8x2xf32>
    %529 = vector.broadcast %452 : vector<8x1xf32> to vector<8x2xf32>
    %530 = arith.divf %528, %529 : vector<8x2xf32>
    %cst_68 = arith.constant 0.000000e+00 : f32
    %531 = vector.broadcast %cst_68 : f32 to vector<8x2xf32>
    %532 = arith.maximumf %530, %531 : vector<8x2xf32>
    %533 = math.sqrt %532 : vector<8x2xf32>
    %534 = arith.mulf %108, %108 : vector<2x128xf32>
    %cst_69 = arith.constant dense<0.000000e+00> : vector<2xf32>
    %535 = vector.multi_reduction <add>, %534, %cst_69 [1] : vector<2x128xf32> to vector<2xf32>
    %536 = math.sqrt %535 : vector<2xf32>
    %537 = vector.shape_cast %536 : vector<2xf32> to vector<1x2xf32>
    %538 = vector.broadcast %537 : vector<1x2xf32> to vector<8x2xf32>
    %539 = arith.mulf %533, %538 : vector<8x2xf32>
    %cst_70 = arith.constant 1.000000e-07 : f32
    %540 = vector.broadcast %cst_70 : f32 to vector<8x2xf32>
    %541 = arith.maximumf %539, %540 : vector<8x2xf32>
    %542 = arith.divf %530, %541 : vector<8x2xf32>
    %c0_71 = arith.constant 0 : index
    %543 = memref.load %arg1[%c0_71] : memref<1xf32, #tpu.memory_space<smem>>
    %544 = vector.broadcast %543 : f32 to vector<8x2xf32>
    %545 = arith.mulf %544, %542 : vector<8x2xf32>
    %546 = tpu.transpose %545, [1, 0] : vector<8x2xf32> -> vector<2x8xf32>
    "tpu.trace_start"() <{level = 10 : i32, message = "bd,cd->bc"}> : () -> ()
    %cst_72 = arith.constant dense<0.000000e+00> : vector<2x8xf32>
    %547 = tpu.matmul %108, %118, %cst_72 {dimension_numbers = #tpu.dot_dimension_numbers<[1], [1], [0], [0], [0, 0, 1, 0], [], []>} : vector<2x128xf32>, vector<8x128xf32>, vector<2x8xf32> -> vector<2x8xf32>
    "tpu.trace_stop"() : () -> ()
    %548 = vector.broadcast %543 : f32 to vector<2x8xf32>
    %549 = arith.mulf %548, %547 : vector<2x8xf32>
    %cst_73 = arith.constant 0.699999988 : f32
    %550 = vector.broadcast %cst_73 : f32 to vector<2x8xf32>
    %551 = arith.mulf %550, %546 : vector<2x8xf32>
    %cst_74 = arith.constant 3.000000e-01 : f32
    %552 = vector.broadcast %cst_74 : f32 to vector<2x8xf32>
    %553 = arith.mulf %552, %549 : vector<2x8xf32>
    %554 = arith.addf %551, %553 : vector<2x8xf32>
    %cst_75 = arith.constant 0.000000e+00 : f32
    %555 = vector.broadcast %cst_75 : f32 to vector<2x120xf32>
    %556 = tpu.concatenate %554, %555 in 1 : vector<2x8xf32>, vector<2x120xf32> -> vector<2x128xf32>
    %c0_76 = arith.constant 0 : index
    %c0_77 = arith.constant 0 : index
    %557 = vector.load %arg14[%c0_76, %c0_77] : memref<2x128xf32, #tpu.memory_space<vmem>>, vector<2x128xf32>
    tpu.vector_store %arg14[%c0_76, %c0_77], %556 {strides = array<i32>} : memref<2x128xf32, #tpu.memory_space<vmem>>, vector<2x128xf32>,
    return
  }
  func.func @transform_0(%arg0: i32) -> i32 {
    %c0_i32 = arith.constant 0 : i32
    %c0_i32_0 = arith.constant 0 : i32
    return %c0_i32 : i32
  }
  func.func @transform_1(%arg0: i32) -> (i32, i32) {
    %c0_i32 = arith.constant 0 : i32
    %c0_i32_0 = arith.constant 0 : i32
    %c0_i32_1 = arith.constant 0 : i32
    return %c0_i32, %c0_i32_0 : i32, i32
  }
  func.func @transform_2(%arg0: i32) -> (i32, i32) {
    %c0_i32 = arith.constant 0 : i32
    %c0_i32_0 = arith.constant 0 : i32
    %c0_i32_1 = arith.constant 0 : i32
    return %c0_i32, %c0_i32_0 : i32, i32
  }
  func.func @transform_3(%arg0: i32) -> (i32, i32, i32) {
    %c0_i32 = arith.constant 0 : i32
    %c0_i32_0 = arith.constant 0 : i32
    %c0_i32_1 = arith.constant 0 : i32
    %c0_i32_2 = arith.constant 0 : i32
    return %c0_i32, %c0_i32_0, %c0_i32_1 : i32, i32, i32
  }
  func.func @transform_4(%arg0: i32) -> (i32, i32) {
    %c0_i32 = arith.constant 0 : i32
    %c0_i32_0 = arith.constant 0 : i32
    %c0_i32_1 = arith.constant 0 : i32
    return %c0_i32, %c0_i32_0 : i32, i32
  }
  func.func @transform_5(%arg0: i32) -> (i32, i32, i32) {
    %c0_i32 = arith.constant 0 : i32
    %c0_i32_0 = arith.constant 0 : i32
    %c0_i32_1 = arith.constant 0 : i32
    %c0_i32_2 = arith.constant 0 : i32
    return %c0_i32, %c0_i32_0, %c0_i32_1 : i32, i32, i32
  }
  func.func @transform_6(%arg0: i32) -> (i32, i32) {
    %c0_i32 = arith.constant 0 : i32
    %c0_i32_0 = arith.constant 0 : i32
    %c0_i32_1 = arith.constant 0 : i32
    return %c0_i32, %c0_i32_0 : i32, i32
  }
  func.func @transform_7(%arg0: i32) -> (i32, i32) {
    %c0_i32 = arith.constant 0 : i32
    %c0_i32_0 = arith.constant 0 : i32
    %c0_i32_1 = arith.constant 0 : i32
    return %c0_i32, %c0_i32_0 : i32, i32
  }
  func.func @transform_8(%arg0: i32) -> (i32, i32) {
    %c0_i32 = arith.constant 0 : i32
    %c0_i32_0 = arith.constant 0 : i32
    %c0_i32_1 = arith.constant 0 : i32
    return %c0_i32, %c0_i32_0 : i32, i32
  }
  func.func @transform_9(%arg0: i32) -> (i32, i32) {
    %c0_i32 = arith.constant 0 : i32
    %c0_i32_0 = arith.constant 0 : i32
    %c0_i32_1 = arith.constant 0 : i32
    return %c0_i32, %c0_i32_0 : i32, i32
  }
  func.func @transform_10(%arg0: i32) -> (i32, i32, i32) {
    %c0_i32 = arith.constant 0 : i32
    %c0_i32_0 = arith.constant 0 : i32
    %c0_i32_1 = arith.constant 0 : i32
    %c0_i32_2 = arith.constant 0 : i32
    return %c0_i32, %c0_i32_0, %c0_i32_1 : i32, i32, i32
  }
  func.func @transform_11(%arg0: i32) -> (i32, i32) {
    %c0_i32 = arith.constant 0 : i32
    %c0_i32_0 = arith.constant 0 : i32
    %c0_i32_1 = arith.constant 0 : i32
    return %c0_i32, %c0_i32_0 : i32, i32
  }
  func.func @transform_12(%arg0: i32) -> (i32, i32) {
    %c0_i32 = arith.constant 0 : i32
    %c0_i32_0 = arith.constant 0 : i32
    %c0_i32_1 = arith.constant 0 : i32
    return %c0_i32, %c0_i32_0 : i32, i32
  }
  func.func @transform_13(%arg0: i32) -> (i32, i32) {
    %c0_i32 = arith.constant 0 : i32
    %c0_i32_0 = arith.constant 0 : i32
    %c0_i32_1 = arith.constant 0 : i32
    return %c0_i32, %c0_i32_0 : i32, i32
  }
}

</mosaic_0001>

<llo_original>
// kernel: custom_clip_forward.1
$region0: #{custom_clip_forward.1}
  #allocation0 [shape = 'u32[]', space=smem, size = 0x4, offset = 0x4, fixed_abs, tag = 'smem constant byte address 0x4 - core index']
  #allocation1 [shape = 'u32[144,128]{1,0:T(1,128)}', space=vmem, size = 0x12000, scoped, tag = 'internal scratch']
  #allocation2 [shape = 'f32[1]{0:T(128)S(6)}', space=smem, size = 0x200, scoped, tag = 'scoped memory for custom_clip_forward.1']
  %s0 = inlined_call_operand.<no memory space> [shape: f32[1], index: 0, kind: input, shape index: {}]
  %s1 = inlined_call_operand.vmem [shape: s32[8,1], index: 1, kind: input, shape index: {}]
  %s2 = inlined_call_operand.vmem [shape: f32[4,128], index: 2, kind: input, shape index: {}]
  %s3 = inlined_call_operand.vmem [shape: f32[4,4,128], index: 3, kind: input, shape index: {}]
  %s4 = inlined_call_operand.vmem [shape: f32[8,128], index: 4, kind: input, shape index: {}]
  %s5 = inlined_call_operand.vmem [shape: f32[8,11,128], index: 5, kind: input, shape index: {}]
  %s6 = inlined_call_operand.vmem [shape: f32[16,128], index: 6, kind: input, shape index: {}]
  %s7 = inlined_call_operand.vmem [shape: f32[1,128], index: 7, kind: input, shape index: {}]
  %s8 = inlined_call_operand.vmem [shape: f32[1,128], index: 8, kind: input, shape index: {}]
  %s9 = inlined_call_operand.vmem [shape: f32[128,128], index: 9, kind: input, shape index: {}]
  %s10 = inlined_call_operand.vmem [shape: f32[2,16,192], index: 10, kind: input, shape index: {}]
  %s11 = inlined_call_operand.vmem [shape: f32[192,128], index: 11, kind: input, shape index: {}]
  %s12 = inlined_call_operand.vmem [shape: f32[128,128], index: 12, kind: input, shape index: {}]
  %s13 = inlined_call_operand.hbm [shape: f32[2,128], index: 13, kind: output, shape index: {}]
  %s14 = sld [smem:[#allocation0]]
  $region62: #{custom_clip_forward.1} parent=0
    _
  %s16 = ssub.s32 1, %s14
  %s17 = scalar_select 0, %s16, %s14
  %18 = sst [smem:[#allocation2]] %s0
  $region1: #{custom_clip_forward.1} parent=0
    #allocation3 [shape = 'u8[1024]{0}', space=vmem, size = 0x400, scoped, tag = 'output window, operand 0, single buffered']
    #allocation4 [shape = 's32[1]{0}', space=sflag, size = 0x4, scoped, tag = 'scoped memory for custom_clip_forward.1']
    %19 = vsyncpa [#allocation4], 0
    // Predicated region
    $region2: #{custom_clip_forward.1} parent=1 // pred_check
      _
    $region3: #{custom_clip_forward.1} parent=1 // pred_check_branch
      %21 = sbr.rel (0) target = $region5
    $region4: #{custom_clip_forward.1} parent=1 // pred_region
      _
    $region5: #{custom_clip_forward.1} parent=1 // pred_fallthru
      _
    // Predicated region
    $region6: #{custom_clip_forward.1} parent=1 // pred_check
      _
    $region7: #{custom_clip_forward.1} parent=1 // pred_check_branch
      %23 = sbr.rel (0) target = $region9
    $region8: #{custom_clip_forward.1} parent=1 // pred_region
      _
    $region9: #{custom_clip_forward.1} parent=1 // pred_fallthru
      _
    // Predicated region
    $region10: #{custom_clip_forward.1} parent=1 // pred_check
      _
    $region11: #{custom_clip_forward.1} parent=1 // pred_check_branch
      %25 = sbr.rel (0) target = $region13
    $region12: #{custom_clip_forward.1} parent=1 // pred_region
      _
    $region13: #{custom_clip_forward.1} parent=1 // pred_fallthru
      _
    // Predicated region
    $region14: #{custom_clip_forward.1} parent=1 // pred_check
      _
    $region15: #{custom_clip_forward.1} parent=1 // pred_check_branch
      %27 = sbr.rel (0) target = $region17
    $region16: #{custom_clip_forward.1} parent=1 // pred_region
      _
    $region17: #{custom_clip_forward.1} parent=1 // pred_fallthru
      _
    // Predicated region
    $region18: #{custom_clip_forward.1} parent=1 // pred_check
      _
    $region19: #{custom_clip_forward.1} parent=1 // pred_check_branch
      %29 = sbr.rel (0) target = $region21
    $region20: #{custom_clip_forward.1} parent=1 // pred_region
      _
    $region21: #{custom_clip_forward.1} parent=1 // pred_fallthru
      _
    // Predicated region
    $region22: #{custom_clip_forward.1} parent=1 // pred_check
      _
    $region23: #{custom_clip_forward.1} parent=1 // pred_check_branch
      %31 = sbr.rel (0) target = $region25
    $region24: #{custom_clip_forward.1} parent=1 // pred_region
      _
    $region25: #{custom_clip_forward.1} parent=1 // pred_fallthru
      _
    // Predicated region
    $region26: #{custom_clip_forward.1} parent=1 // pred_check
      _
    $region27: #{custom_clip_forward.1} parent=1 // pred_check_branch
      %33 = sbr.rel (0) target = $region29
    $region28: #{custom_clip_forward.1} parent=1 // pred_region
      _
    $region29: #{custom_clip_forward.1} parent=1 // pred_fallthru
      _
    // Predicated region
    $region30: #{custom_clip_forward.1} parent=1 // pred_check
      _
    $region31: #{custom_clip_forward.1} parent=1 // pred_check_branch
      %35 = sbr.rel (0) target = $region33
    $region32: #{custom_clip_forward.1} parent=1 // pred_region
      _
    $region33: #{custom_clip_forward.1} parent=1 // pred_fallthru
      _
    // Predicated region
    $region34: #{custom_clip_forward.1} parent=1 // pred_check
      _
    $region35: #{custom_clip_forward.1} parent=1 // pred_check_branch
      %37 = sbr.rel (0) target = $region37
    $region36: #{custom_clip_forward.1} parent=1 // pred_region
      _
    $region37: #{custom_clip_forward.1} parent=1 // pred_fallthru
      _
    // Predicated region
    $region38: #{custom_clip_forward.1} parent=1 // pred_check
      _
    $region39: #{custom_clip_forward.1} parent=1 // pred_check_branch
      %39 = sbr.rel (0) target = $region41
    $region40: #{custom_clip_forward.1} parent=1 // pred_region
      _
    $region41: #{custom_clip_forward.1} parent=1 // pred_fallthru
      _
    // Predicated region
    $region42: #{custom_clip_forward.1} parent=1 // pred_check
      _
    $region43: #{custom_clip_forward.1} parent=1 // pred_check_branch
      %41 = sbr.rel (0) target = $region45
    $region44: #{custom_clip_forward.1} parent=1 // pred_region
      _
    $region45: #{custom_clip_forward.1} parent=1 // pred_fallthru
      _
    // Predicated region
    $region46: #{custom_clip_forward.1} parent=1 // pred_check
      _
    $region47: #{custom_clip_forward.1} parent=1 // pred_check_branch
      %43 = sbr.rel (0) target = $region49
    $region48: #{custom_clip_forward.1} parent=1 // pred_region
      _
    $region49: #{custom_clip_forward.1} parent=1 // pred_fallthru
      _
    // Predicated region
    $region50: #{custom_clip_forward.1} parent=1 // pred_check
      _
    $region51: #{custom_clip_forward.1} parent=1 // pred_check_branch
      %45 = sbr.rel (0) target = $region53
    $region52: #{custom_clip_forward.1} parent=1 // pred_region
      _
    $region53: #{custom_clip_forward.1} parent=1 // pred_fallthru
      _
    %v47 = vld [vmem:[%s2] sm:$0xf]
    %v48 = vld [vmem:[%s3] sm:$0xf]
    %v49 = vld [vmem:[%s3 + $0x4] sm:$0xf]
    %v50 = vld [vmem:[%s3 + $0x8] sm:$0xf]
    %v51 = vld [vmem:[%s3 + $0xc] sm:$0xf]
    %v52 = vld [vmem:[%s4] sm:$0xff]
    %v53 = vld [vmem:[%s5] sm:$0xff]
    %v54 = vld [vmem:[%s5 + $0x8] sm:$0x7]
    %v55 = vld [vmem:[%s5 + $0x10] sm:$0xff]
    %v56 = vld [vmem:[%s5 + $0x18] sm:$0x7]
    %v57 = vld [vmem:[%s5 + $0x20] sm:$0xff]
    %v58 = vld [vmem:[%s5 + $0x28] sm:$0x7]
    %v59 = vld [vmem:[%s5 + $0x30] sm:$0xff]
    %v60 = vld [vmem:[%s5 + $0x38] sm:$0x7]
    %v61 = vld [vmem:[%s5 + $0x40] sm:$0xff]
    %v62 = vld [vmem:[%s5 + $0x48] sm:$0x7]
    %v63 = vld [vmem:[%s5 + $0x50] sm:$0xff]
    %v64 = vld [vmem:[%s5 + $0x58] sm:$0x7]
    %v65 = vld [vmem:[%s5 + $0x60] sm:$0xff]
    %v66 = vld [vmem:[%s5 + $0x68] sm:$0x7]
    %v67 = vld [vmem:[%s5 + $0x70] sm:$0xff]
    %v68 = vld [vmem:[%s5 + $0x78] sm:$0x7]
    %v69 = vld [vmem:[%s6] sm:$0xff]
    %v70 = vld [vmem:[%s6 + $0x8] sm:$0xff]
    %v71 = vlaneseq
    %v72 = vand.u32 %v71, 127
    %v73 = vld [vmem:[%s1] sm:$0xff]
    %74 = vset.pattern.permute.xlu0 0
    %75 = vperm.xlu0 %74, %v73
    %v76 = vpop.permute.xlu0 %75
    %vm77 = vcmp.eq.s32.totalorder %v72, %v76
    %v78 = vsel %vm77, 1, 0
    %v79 = vcvt.s32.f32 %v78
    %vm80 = vcmask 1042432
    %v81 = vsel %vm80, %v54, 0.0
    %v82 = vadd.f32 %v53, %v81
    %v83 = vrot.slane %v82, 4
    %v84 = vadd.f32 %v82, %v83
    %v85 = vrot.slane %v84, 2
    %v86 = vadd.f32 %v84, %v85
    %v87 = vrot.slane %v86, 1
    %v88 = vadd.f32 %v86, %v87
    %v89 = vsel %vm80, %v56, 0.0
    %v90 = vadd.f32 %v55, %v89
    %v91 = vrot.slane %v90, 4
    %v92 = vadd.f32 %v90, %v91
    %v93 = vrot.slane %v92, 2
    %v94 = vadd.f32 %v92, %v93
    %v95 = vrot.slane %v94, 1
    %v96 = vadd.f32 %v94, %v95
    %v97 = vsel %vm80, %v58, 0.0
    %v98 = vadd.f32 %v57, %v97
    %v99 = vrot.slane %v98, 4
    %v100 = vadd.f32 %v98, %v99
    %v101 = vrot.slane %v100, 2
    %v102 = vadd.f32 %v100, %v101
    %v103 = vrot.slane %v102, 1
    %v104 = vadd.f32 %v102, %v103
    %v105 = vsel %vm80, %v60, 0.0
    %v106 = vadd.f32 %v59, %v105
    %v107 = vrot.slane %v106, 4
    %v108 = vadd.f32 %v106, %v107
    %v109 = vrot.slane %v108, 2
    %v110 = vadd.f32 %v108, %v109
    %v111 = vrot.slane %v110, 1
    %v112 = vadd.f32 %v110, %v111
    %v113 = vsel %vm80, %v62, 0.0
    %v114 = vadd.f32 %v61, %v113
    %v115 = vrot.slane %v114, 4
    %v116 = vadd.f32 %v114, %v115
    %v117 = vrot.slane %v116, 2
    %v118 = vadd.f32 %v116, %v117
    %v119 = vrot.slane %v118, 1
    %v120 = vadd.f32 %v118, %v119
    %v121 = vsel %vm80, %v64, 0.0
    %v122 = vadd.f32 %v63, %v121
    %v123 = vrot.slane %v122, 4
    %v124 = vadd.f32 %v122, %v123
    %v125 = vrot.slane %v124, 2
    %v126 = vadd.f32 %v124, %v125
    %v127 = vrot.slane %v126, 1
    %v128 = vadd.f32 %v126, %v127
    %v129 = vsel %vm80, %v66, 0.0
    %v130 = vadd.f32 %v65, %v129
    %v131 = vrot.slane %v130, 4
    %v132 = vadd.f32 %v130, %v131
    %v133 = vrot.slane %v132, 2
    %v134 = vadd.f32 %v132, %v133
    %v135 = vrot.slane %v134, 1
    %v136 = vadd.f32 %v134, %v135
    %v137 = vsel %vm80, %v68, 0.0
    %v138 = vadd.f32 %v67, %v137
    %v139 = vrot.slane %v138, 4
    %v140 = vadd.f32 %v138, %v139
    %v141 = vrot.slane %v140, 2
    %v142 = vadd.f32 %v140, %v141
    %v143 = vrot.slane %v142, 1
    %v144 = vadd.f32 %v142, %v143
    %vm153 = vcmask 1041409
    %v154 = vsel %vm153, %v96, %v88
    %vm155 = vcmask 1042434
    %v156 = vsel %vm155, %v104, %v154
    %vm157 = vcmask 1043459
    %v158 = vsel %vm157, %v112, %v156
    %vm159 = vcmask 1044484
    %v160 = vsel %vm159, %v120, %v158
    %vm161 = vcmask 1045509
    %v162 = vsel %vm161, %v128, %v160
    %vm163 = vcmask 1046534
    %v164 = vsel %vm163, %v136, %v162
    %vm165 = vcmask 1047559
    %v166 = vsel %vm165, %v144, %v164
    %v168 = vadd.f32 %v52, %v166
    %vm169 = vcmask 1043456
    %v170 = vsel %vm169, %v47, 0.0
    %v171 = vrot.slane %v170, 4
    %v172 = vadd.f32 %v170, %v171
    %v173 = vrot.slane %v172, 2
    %v174 = vadd.f32 %v172, %v173
    %v175 = vrot.slane %v174, 1
    %v176 = vadd.f32 %v174, %v175
    %v177 = vsel %vm169, %v48, 0.0
    %v178 = vrot.slane %v177, 4
    %v179 = vadd.f32 %v177, %v178
    %v180 = vrot.slane %v179, 2
    %v181 = vadd.f32 %v179, %v180
    %v182 = vrot.slane %v181, 1
    %v183 = vadd.f32 %v181, %v182
    %v184 = vsel %vm169, %v49, 0.0
    %v185 = vrot.slane %v184, 4
    %v186 = vadd.f32 %v184, %v185
    %v187 = vrot.slane %v186, 2
    %v188 = vadd.f32 %v186, %v187
    %v189 = vrot.slane %v188, 1
    %v190 = vadd.f32 %v188, %v189
    %v191 = vsel %vm169, %v50, 0.0
    %v192 = vrot.slane %v191, 4
    %v193 = vadd.f32 %v191, %v192
    %v194 = vrot.slane %v193, 2
    %v195 = vadd.f32 %v193, %v194
    %v196 = vrot.slane %v195, 1
    %v197 = vadd.f32 %v195, %v196
    %v198 = vsel %vm169, %v51, 0.0
    %v199 = vrot.slane %v198, 4
    %v200 = vadd.f32 %v198, %v199
    %v201 = vrot.slane %v200, 2
    %v202 = vadd.f32 %v200, %v201
    %v203 = vrot.slane %v202, 1
    %v204 = vadd.f32 %v202, %v203
    %v209 = vsel %vm155, %v190, %v183
    %v210 = vsel %vm157, %v197, %v209
    %v211 = vsel %vm159, %v204, %v210
    %vm213 = vcmask 1040384
    %v214 = vsel %vm213, %v176, %v211
    %v216 = vcombine.high %v168, %v168
    %v218 = vunpack.c.l.s4 1966171168
    %v219 = vunpack.c.0.s8 %v218
    %v220 = vlaneseq
    %v221 = vshrl.u32 %v220, 7
    %v222 = vsub.s32 %v219, %v221
    %v223 = vrot.slane %v168, %v222
    %v225 = vunpack.c.l.s4 1966171168
    %v226 = vunpack.c.0.s8 %v225
    %v227 = vlaneseq
    %v228 = vshrl.u32 %v227, 7
    %v229 = vsub.s32 %v226, %v228
    %v230 = vrot.slane %v216, %v229
    %v231 = vcombine.high %v223, %v223
    %v232 = vcombine.high %v230, %v230
    %v234 = vunpack.c.l.s4 1966171168
    %v235 = vunpack.c.0.s8 %v234
    %v236 = vlaneseq
    %v237 = vshrl.u32 %v236, 7
    %v238 = vsub.s32 %v235, %v237
    %v239 = vrot.slane %v223, %v238
    %v241 = vunpack.c.l.s4 1966171168
    %v242 = vunpack.c.0.s8 %v241
    %v243 = vlaneseq
    %v244 = vshrl.u32 %v243, 7
    %v245 = vsub.s32 %v242, %v244
    %v246 = vrot.slane %v230, %v245
    %v248 = vunpack.c.l.s4 1966171168
    %v249 = vunpack.c.0.s8 %v248
    %v250 = vlaneseq
    %v251 = vshrl.u32 %v250, 7
    %v252 = vsub.s32 %v249, %v251
    %v253 = vrot.slane %v231, %v252
    %v255 = vunpack.c.l.s4 1966171168
    %v256 = vunpack.c.0.s8 %v255
    %v257 = vlaneseq
    %v258 = vshrl.u32 %v257, 7
    %v259 = vsub.s32 %v256, %v258
    %v260 = vrot.slane %v232, %v259
    %v261 = vcombine.high %v239, %v239
    %v262 = vcombine.high %v246, %v246
    %v263 = vcombine.high %v253, %v253
    %v264 = vcombine.high %v260, %v260
    %v265 = vlaneseq
    %v266 = vshrl.u32 %v265, 7
    %v267 = vsub.s32 0, %v266
    %v268 = vrot.slane %v239, %v267
    %v269 = vlaneseq
    %v270 = vshrl.u32 %v269, 7
    %v271 = vsub.s32 0, %v270
    %v272 = vrot.slane %v253, %v271
    %v273 = vlaneseq
    %v274 = vshrl.u32 %v273, 7
    %v275 = vsub.s32 0, %v274
    %v276 = vrot.slane %v261, %v275
    %v277 = vlaneseq
    %v278 = vshrl.u32 %v277, 7
    %v279 = vsub.s32 0, %v278
    %v280 = vrot.slane %v263, %v279
    %v281 = vlaneseq
    %v282 = vshrl.u32 %v281, 7
    %v283 = vsub.s32 0, %v282
    %v284 = vrot.slane %v246, %v283
    %v285 = vlaneseq
    %v286 = vshrl.u32 %v285, 7
    %v287 = vsub.s32 0, %v286
    %v288 = vrot.slane %v260, %v287
    %v289 = vlaneseq
    %v290 = vshrl.u32 %v289, 7
    %v291 = vsub.s32 0, %v290
    %v292 = vrot.slane %v262, %v291
    %v293 = vlaneseq
    %v294 = vshrl.u32 %v293, 7
    %v295 = vsub.s32 0, %v294
    %v296 = vrot.slane %v264, %v295
    %v305 = vadd.f32 %v268, %v214
    %v306 = vadd.f32 %v272, %v214
    %v307 = vadd.f32 %v276, %v214
    %v308 = vadd.f32 %v280, %v214
    %v309 = vadd.f32 %v284, %v214
    %v310 = vadd.f32 %v288, %v214
    %v311 = vadd.f32 %v292, %v214
    %v312 = vadd.f32 %v296, %v214
    %v313 = vmul.f32 %v305, 0.0625
    %v314 = vmul.f32 %v306, 0.0625
    %v315 = vmul.f32 %v307, 0.0625
    %v316 = vmul.f32 %v308, 0.0625
    %v317 = vmul.f32 %v309, 0.0625
    %v318 = vmul.f32 %v310, 0.0625
    %v319 = vmul.f32 %v311, 0.0625
    %v320 = vmul.f32 %v312, 0.0625
    %v321 = vadd.f32 %v69, %v70
    %v322 = vrot.slane %v321, 4
    %v323 = vadd.f32 %v321, %v322
    %v324 = vrot.slane %v323, 2
    %v325 = vadd.f32 %v323, %v324
    %v326 = vrot.slane %v325, 1
    %v327 = vadd.f32 %v325, %v326
    %v328 = vrcp.pop 16.0
    %v329 = vmul.f32 %v327, %v328
    %331 = vset.pattern.permute.xlu0 0
    %332 = vperm.xlu0 %331, %v79
    %v333 = vpop.permute.xlu0 %332
    %v335 = vmul.f32 %v333, %v52
    %v336 = vlaneseq
    %v337 = vshrl.u32 %v336, 7
    %v338 = vsub.s32 0, %v337
    %v339 = vrot.slane %v79, %v338
    %s341 = sor.u32 256, 1
    %342 = vbcast.lane.b32.xlu0 %v339, %s341
    %v343 = vpop.permute.xlu0 %342
    %v344 = vlaneseq
    %v345 = vshrl.u32 %v344, 7
    %v346 = vsub.s32 1, %v345
    %v347 = vrot.slane %v79, %v346
    %s349 = sor.u32 256, 1
    %350 = vbcast.lane.b32.xlu0 %v347, %s349
    %v351 = vpop.permute.xlu0 %350
    %v352 = vlaneseq
    %v353 = vshrl.u32 %v352, 7
    %v354 = vsub.s32 2, %v353
    %v355 = vrot.slane %v79, %v354
    %s357 = sor.u32 256, 1
    %358 = vbcast.lane.b32.xlu0 %v355, %s357
    %v359 = vpop.permute.xlu0 %358
    %v360 = vlaneseq
    %v361 = vshrl.u32 %v360, 7
    %v362 = vsub.s32 3, %v361
    %v363 = vrot.slane %v79, %v362
    %s365 = sor.u32 256, 1
    %366 = vbcast.lane.b32.xlu0 %v363, %s365
    %v367 = vpop.permute.xlu0 %366
    %v368 = vlaneseq
    %v369 = vshrl.u32 %v368, 7
    %v370 = vsub.s32 4, %v369
    %v371 = vrot.slane %v79, %v370
    %s373 = sor.u32 256, 1
    %374 = vbcast.lane.b32.xlu0 %v371, %s373
    %v375 = vpop.permute.xlu0 %374
    %v376 = vlaneseq
    %v377 = vshrl.u32 %v376, 7
    %v378 = vsub.s32 5, %v377
    %v379 = vrot.slane %v79, %v378
    %s381 = sor.u32 256, 1
    %382 = vbcast.lane.b32.xlu0 %v379, %s381
    %v383 = vpop.permute.xlu0 %382
    %v384 = vlaneseq
    %v385 = vshrl.u32 %v384, 7
    %v386 = vsub.s32 6, %v385
    %v387 = vrot.slane %v79, %v386
    %s389 = sor.u32 256, 1
    %390 = vbcast.lane.b32.xlu0 %v387, %s389
    %v391 = vpop.permute.xlu0 %390
    %v392 = vlaneseq
    %v393 = vshrl.u32 %v392, 7
    %v394 = vsub.s32 7, %v393
    %v395 = vrot.slane %v79, %v394
    %s397 = sor.u32 256, 1
    %398 = vbcast.lane.b32.xlu0 %v395, %s397
    %v399 = vpop.permute.xlu0 %398
    %v400 = vmul.f32 %v343, %v47
    %v401 = vmul.f32 %v343, %v48
    %v402 = vmul.f32 %v343, %v49
    %v403 = vmul.f32 %v343, %v50
    %v404 = vmul.f32 %v343, %v51
    %v405 = vmul.f32 %v351, %v47
    %v406 = vmul.f32 %v351, %v48
    %v407 = vmul.f32 %v351, %v49
    %v408 = vmul.f32 %v351, %v50
    %v409 = vmul.f32 %v351, %v51
    %v410 = vmul.f32 %v359, %v47
    %v411 = vmul.f32 %v359, %v48
    %v412 = vmul.f32 %v359, %v49
    %v413 = vmul.f32 %v359, %v50
    %v414 = vmul.f32 %v359, %v51
    %v415 = vmul.f32 %v367, %v47
    %v416 = vmul.f32 %v367, %v48
    %v417 = vmul.f32 %v367, %v49
    %v418 = vmul.f32 %v367, %v50
    %v419 = vmul.f32 %v367, %v51
    %v420 = vmul.f32 %v375, %v47
    %v421 = vmul.f32 %v375, %v48
    %v422 = vmul.f32 %v375, %v49
    %v423 = vmul.f32 %v375, %v50
    %v424 = vmul.f32 %v375, %v51
    %v425 = vmul.f32 %v383, %v47
    %v426 = vmul.f32 %v383, %v48
    %v427 = vmul.f32 %v383, %v49
    %v428 = vmul.f32 %v383, %v50
    %v429 = vmul.f32 %v383, %v51
    %v430 = vmul.f32 %v391, %v47
    %v431 = vmul.f32 %v391, %v48
    %v432 = vmul.f32 %v391, %v49
    %v433 = vmul.f32 %v391, %v50
    %v434 = vmul.f32 %v391, %v51
    %v435 = vmul.f32 %v399, %v47
    %v436 = vmul.f32 %v399, %v48
    %v437 = vmul.f32 %v399, %v49
    %v438 = vmul.f32 %v399, %v50
    %v439 = vmul.f32 %v399, %v51
    %v440 = vsel %vm169, %v400, 0.0
    %v441 = vrot.slane %v440, 4
    %v442 = vadd.f32 %v440, %v441
    %v443 = vrot.slane %v442, 2
    %v444 = vadd.f32 %v442, %v443
    %v445 = vrot.slane %v444, 1
    %v446 = vadd.f32 %v444, %v445
    %v447 = vsel %vm169, %v401, 0.0
    %v448 = vrot.slane %v447, 4
    %v449 = vadd.f32 %v447, %v448
    %v450 = vrot.slane %v449, 2
    %v451 = vadd.f32 %v449, %v450
    %v452 = vrot.slane %v451, 1
    %v453 = vadd.f32 %v451, %v452
    %v454 = vsel %vm169, %v402, 0.0
    %v455 = vrot.slane %v454, 4
    %v456 = vadd.f32 %v454, %v455
    %v457 = vrot.slane %v456, 2
    %v458 = vadd.f32 %v456, %v457
    %v459 = vrot.slane %v458, 1
    %v460 = vadd.f32 %v458, %v459
    %v461 = vsel %vm169, %v403, 0.0
    %v462 = vrot.slane %v461, 4
    %v463 = vadd.f32 %v461, %v462
    %v464 = vrot.slane %v463, 2
    %v465 = vadd.f32 %v463, %v464
    %v466 = vrot.slane %v465, 1
    %v467 = vadd.f32 %v465, %v466
    %v468 = vsel %vm169, %v404, 0.0
    %v469 = vrot.slane %v468, 4
    %v470 = vadd.f32 %v468, %v469
    %v471 = vrot.slane %v470, 2
    %v472 = vadd.f32 %v470, %v471
    %v473 = vrot.slane %v472, 1
    %v474 = vadd.f32 %v472, %v473
    %v475 = vsel %vm169, %v405, 0.0
    %v476 = vrot.slane %v475, 4
    %v477 = vadd.f32 %v475, %v476
    %v478 = vrot.slane %v477, 2
    %v479 = vadd.f32 %v477, %v478
    %v480 = vrot.slane %v479, 1
    %v481 = vadd.f32 %v479, %v480
    %v482 = vsel %vm169, %v406, 0.0
    %v483 = vrot.slane %v482, 4
    %v484 = vadd.f32 %v482, %v483
    %v485 = vrot.slane %v484, 2
    %v486 = vadd.f32 %v484, %v485
    %v487 = vrot.slane %v486, 1
    %v488 = vadd.f32 %v486, %v487
    %v489 = vsel %vm169, %v407, 0.0
    %v490 = vrot.slane %v489, 4
    %v491 = vadd.f32 %v489, %v490
    %v492 = vrot.slane %v491, 2
    %v493 = vadd.f32 %v491, %v492
    %v494 = vrot.slane %v493, 1
    %v495 = vadd.f32 %v493, %v494
    %v496 = vsel %vm169, %v408, 0.0
    %v497 = vrot.slane %v496, 4
    %v498 = vadd.f32 %v496, %v497
    %v499 = vrot.slane %v498, 2
    %v500 = vadd.f32 %v498, %v499
    %v501 = vrot.slane %v500, 1
    %v502 = vadd.f32 %v500, %v501
    %v503 = vsel %vm169, %v409, 0.0
    %v504 = vrot.slane %v503, 4
    %v505 = vadd.f32 %v503, %v504
    %v506 = vrot.slane %v505, 2
    %v507 = vadd.f32 %v505, %v506
    %v508 = vrot.slane %v507, 1
    %v509 = vadd.f32 %v507, %v508
    %v510 = vsel %vm169, %v410, 0.0
    %v511 = vrot.slane %v510, 4
    %v512 = vadd.f32 %v510, %v511
    %v513 = vrot.slane %v512, 2
    %v514 = vadd.f32 %v512, %v513
    %v515 = vrot.slane %v514, 1
    %v516 = vadd.f32 %v514, %v515
    %v517 = vsel %vm169, %v411, 0.0
    %v518 = vrot.slane %v517, 4
    %v519 = vadd.f32 %v517, %v518
    %v520 = vrot.slane %v519, 2
    %v521 = vadd.f32 %v519, %v520
    %v522 = vrot.slane %v521, 1
    %v523 = vadd.f32 %v521, %v522
    %v524 = vsel %vm169, %v412, 0.0
    %v525 = vrot.slane %v524, 4
    %v526 = vadd.f32 %v524, %v525
    %v527 = vrot.slane %v526, 2
    %v528 = vadd.f32 %v526, %v527
    %v529 = vrot.slane %v528, 1
    %v530 = vadd.f32 %v528, %v529
    %v531 = vsel %vm169, %v413, 0.0
    %v532 = vrot.slane %v531, 4
    %v533 = vadd.f32 %v531, %v532
    %v534 = vrot.slane %v533, 2
    %v535 = vadd.f32 %v533, %v534
    %v536 = vrot.slane %v535, 1
    %v537 = vadd.f32 %v535, %v536
    %v538 = vsel %vm169, %v414, 0.0
    %v539 = vrot.slane %v538, 4
    %v540 = vadd.f32 %v538, %v539
    %v541 = vrot.slane %v540, 2
    %v542 = vadd.f32 %v540, %v541
    %v543 = vrot.slane %v542, 1
    %v544 = vadd.f32 %v542, %v543
    %v545 = vsel %vm169, %v415, 0.0
    %v546 = vrot.slane %v545, 4
    %v547 = vadd.f32 %v545, %v546
    %v548 = vrot.slane %v547, 2
    %v549 = vadd.f32 %v547, %v548
    %v550 = vrot.slane %v549, 1
    %v551 = vadd.f32 %v549, %v550
    %v552 = vsel %vm169, %v416, 0.0
    %v553 = vrot.slane %v552, 4
    %v554 = vadd.f32 %v552, %v553
    %v555 = vrot.slane %v554, 2
    %v556 = vadd.f32 %v554, %v555
    %v557 = vrot.slane %v556, 1
    %v558 = vadd.f32 %v556, %v557
    %v559 = vsel %vm169, %v417, 0.0
    %v560 = vrot.slane %v559, 4
    %v561 = vadd.f32 %v559, %v560
    %v562 = vrot.slane %v561, 2
    %v563 = vadd.f32 %v561, %v562
    %v564 = vrot.slane %v563, 1
    %v565 = vadd.f32 %v563, %v564
    %v566 = vsel %vm169, %v418, 0.0
    %v567 = vrot.slane %v566, 4
    %v568 = vadd.f32 %v566, %v567
    %v569 = vrot.slane %v568, 2
    %v570 = vadd.f32 %v568, %v569
    %v571 = vrot.slane %v570, 1
    %v572 = vadd.f32 %v570, %v571
    %v573 = vsel %vm169, %v419, 0.0
    %v574 = vrot.slane %v573, 4
    %v575 = vadd.f32 %v573, %v574
    %v576 = vrot.slane %v575, 2
    %v577 = vadd.f32 %v575, %v576
    %v578 = vrot.slane %v577, 1
    %v579 = vadd.f32 %v577, %v578
    %v580 = vsel %vm169, %v420, 0.0
    %v581 = vrot.slane %v580, 4
    %v582 = vadd.f32 %v580, %v581
    %v583 = vrot.slane %v582, 2
    %v584 = vadd.f32 %v582, %v583
    %v585 = vrot.slane %v584, 1
    %v586 = vadd.f32 %v584, %v585
    %v587 = vsel %vm169, %v421, 0.0
    %v588 = vrot.slane %v587, 4
    %v589 = vadd.f32 %v587, %v588
    %v590 = vrot.slane %v589, 2
    %v591 = vadd.f32 %v589, %v590
    %v592 = vrot.slane %v591, 1
    %v593 = vadd.f32 %v591, %v592
    %v594 = vsel %vm169, %v422, 0.0
    %v595 = vrot.slane %v594, 4
    %v596 = vadd.f32 %v594, %v595
    %v597 = vrot.slane %v596, 2
    %v598 = vadd.f32 %v596, %v597
    %v599 = vrot.slane %v598, 1
    %v600 = vadd.f32 %v598, %v599
    %v601 = vsel %vm169, %v423, 0.0
    %v602 = vrot.slane %v601, 4
    %v603 = vadd.f32 %v601, %v602
    %v604 = vrot.slane %v603, 2
    %v605 = vadd.f32 %v603, %v604
    %v606 = vrot.slane %v605, 1
    %v607 = vadd.f32 %v605, %v606
    %v608 = vsel %vm169, %v424, 0.0
    %v609 = vrot.slane %v608, 4
    %v610 = vadd.f32 %v608, %v609
    %v611 = vrot.slane %v610, 2
    %v612 = vadd.f32 %v610, %v611
    %v613 = vrot.slane %v612, 1
    %v614 = vadd.f32 %v612, %v613
    %v615 = vsel %vm169, %v425, 0.0
    %v616 = vrot.slane %v615, 4
    %v617 = vadd.f32 %v615, %v616
    %v618 = vrot.slane %v617, 2
    %v619 = vadd.f32 %v617, %v618
    %v620 = vrot.slane %v619, 1
    %v621 = vadd.f32 %v619, %v620
    %v622 = vsel %vm169, %v426, 0.0
    %v623 = vrot.slane %v622, 4
    %v624 = vadd.f32 %v622, %v623
    %v625 = vrot.slane %v624, 2
    %v626 = vadd.f32 %v624, %v625
    %v627 = vrot.slane %v626, 1
    %v628 = vadd.f32 %v626, %v627
    %v629 = vsel %vm169, %v427, 0.0
    %v630 = vrot.slane %v629, 4
    %v631 = vadd.f32 %v629, %v630
    %v632 = vrot.slane %v631, 2
    %v633 = vadd.f32 %v631, %v632
    %v634 = vrot.slane %v633, 1
    %v635 = vadd.f32 %v633, %v634
    %v636 = vsel %vm169, %v428, 0.0
    %v637 = vrot.slane %v636, 4
    %v638 = vadd.f32 %v636, %v637
    %v639 = vrot.slane %v638, 2
    %v640 = vadd.f32 %v638, %v639
    %v641 = vrot.slane %v640, 1
    %v642 = vadd.f32 %v640, %v641
    %v643 = vsel %vm169, %v429, 0.0
    %v644 = vrot.slane %v643, 4
    %v645 = vadd.f32 %v643, %v644
    %v646 = vrot.slane %v645, 2
    %v647 = vadd.f32 %v645, %v646
    %v648 = vrot.slane %v647, 1
    %v649 = vadd.f32 %v647, %v648
    %v650 = vsel %vm169, %v430, 0.0
    %v651 = vrot.slane %v650, 4
    %v652 = vadd.f32 %v650, %v651
    %v653 = vrot.slane %v652, 2
    %v654 = vadd.f32 %v652, %v653
    %v655 = vrot.slane %v654, 1
    %v656 = vadd.f32 %v654, %v655
    %v657 = vsel %vm169, %v431, 0.0
    %v658 = vrot.slane %v657, 4
    %v659 = vadd.f32 %v657, %v658
    %v660 = vrot.slane %v659, 2
    %v661 = vadd.f32 %v659, %v660
    %v662 = vrot.slane %v661, 1
    %v663 = vadd.f32 %v661, %v662
    %v664 = vsel %vm169, %v432, 0.0
    %v665 = vrot.slane %v664, 4
    %v666 = vadd.f32 %v664, %v665
    %v667 = vrot.slane %v666, 2
    %v668 = vadd.f32 %v666, %v667
    %v669 = vrot.slane %v668, 1
    %v670 = vadd.f32 %v668, %v669
    %v671 = vsel %vm169, %v433, 0.0
    %v672 = vrot.slane %v671, 4
    %v673 = vadd.f32 %v671, %v672
    %v674 = vrot.slane %v673, 2
    %v675 = vadd.f32 %v673, %v674
    %v676 = vrot.slane %v675, 1
    %v677 = vadd.f32 %v675, %v676
    %v678 = vsel %vm169, %v434, 0.0
    %v679 = vrot.slane %v678, 4
    %v680 = vadd.f32 %v678, %v679
    %v681 = vrot.slane %v680, 2
    %v682 = vadd.f32 %v680, %v681
    %v683 = vrot.slane %v682, 1
    %v684 = vadd.f32 %v682, %v683
    %v685 = vsel %vm169, %v435, 0.0
    %v686 = vrot.slane %v685, 4
    %v687 = vadd.f32 %v685, %v686
    %v688 = vrot.slane %v687, 2
    %v689 = vadd.f32 %v687, %v688
    %v690 = vrot.slane %v689, 1
    %v691 = vadd.f32 %v689, %v690
    %v692 = vsel %vm169, %v436, 0.0
    %v693 = vrot.slane %v692, 4
    %v694 = vadd.f32 %v692, %v693
    %v695 = vrot.slane %v694, 2
    %v696 = vadd.f32 %v694, %v695
    %v697 = vrot.slane %v696, 1
    %v698 = vadd.f32 %v696, %v697
    %v699 = vsel %vm169, %v437, 0.0
    %v700 = vrot.slane %v699, 4
    %v701 = vadd.f32 %v699, %v700
    %v702 = vrot.slane %v701, 2
    %v703 = vadd.f32 %v701, %v702
    %v704 = vrot.slane %v703, 1
    %v705 = vadd.f32 %v703, %v704
    %v706 = vsel %vm169, %v438, 0.0
    %v707 = vrot.slane %v706, 4
    %v708 = vadd.f32 %v706, %v707
    %v709 = vrot.slane %v708, 2
    %v710 = vadd.f32 %v708, %v709
    %v711 = vrot.slane %v710, 1
    %v712 = vadd.f32 %v710, %v711
    %v713 = vsel %vm169, %v439, 0.0
    %v714 = vrot.slane %v713, 4
    %v715 = vadd.f32 %v713, %v714
    %v716 = vrot.slane %v715, 2
    %v717 = vadd.f32 %v715, %v716
    %v718 = vrot.slane %v717, 1
    %v719 = vadd.f32 %v717, %v718
    %s721 = sor.u32 256, 5
    %722 = vbcast.lane.b32.xlu0 %v339, %s721
    %v723 = vpop.permute.xlu0 %722
    %s725 = sor.u32 256, 13
    %726 = vbcast.lane.b32.xlu0 %v339, %s725
    %v727 = vpop.permute.xlu0 %726
    %s729 = sor.u32 256, 5
    %730 = vbcast.lane.b32.xlu0 %v347, %s729
    %v731 = vpop.permute.xlu0 %730
    %s733 = sor.u32 256, 13
    %734 = vbcast.lane.b32.xlu0 %v347, %s733
    %v735 = vpop.permute.xlu0 %734
    %s737 = sor.u32 256, 5
    %738 = vbcast.lane.b32.xlu0 %v355, %s737
    %v739 = vpop.permute.xlu0 %738
    %s741 = sor.u32 256, 13
    %742 = vbcast.lane.b32.xlu0 %v355, %s741
    %v743 = vpop.permute.xlu0 %742
    %s745 = sor.u32 256, 5
    %746 = vbcast.lane.b32.xlu0 %v363, %s745
    %v747 = vpop.permute.xlu0 %746
    %s749 = sor.u32 256, 13
    %750 = vbcast.lane.b32.xlu0 %v363, %s749
    %v751 = vpop.permute.xlu0 %750
    %s753 = sor.u32 256, 5
    %754 = vbcast.lane.b32.xlu0 %v371, %s753
    %v755 = vpop.permute.xlu0 %754
    %s757 = sor.u32 256, 13
    %758 = vbcast.lane.b32.xlu0 %v371, %s757
    %v759 = vpop.permute.xlu0 %758
    %s761 = sor.u32 256, 5
    %762 = vbcast.lane.b32.xlu0 %v379, %s761
    %v763 = vpop.permute.xlu0 %762
    %s765 = sor.u32 256, 13
    %766 = vbcast.lane.b32.xlu0 %v379, %s765
    %v767 = vpop.permute.xlu0 %766
    %s769 = sor.u32 256, 5
    %770 = vbcast.lane.b32.xlu0 %v387, %s769
    %v771 = vpop.permute.xlu0 %770
    %s773 = sor.u32 256, 13
    %774 = vbcast.lane.b32.xlu0 %v387, %s773
    %v775 = vpop.permute.xlu0 %774
    %s777 = sor.u32 256, 5
    %778 = vbcast.lane.b32.xlu0 %v395, %s777
    %v779 = vpop.permute.xlu0 %778
    %s781 = sor.u32 256, 13
    %782 = vbcast.lane.b32.xlu0 %v395, %s781
    %v783 = vpop.permute.xlu0 %782
    %v784 = vmul.f32 %v723, %v53
    %v785 = vmul.f32 %v727, %v54
    %v786 = vmul.f32 %v731, %v55
    %v787 = vmul.f32 %v735, %v56
    %v788 = vmul.f32 %v739, %v57
    %v789 = vmul.f32 %v743, %v58
    %v790 = vmul.f32 %v747, %v59
    %v791 = vmul.f32 %v751, %v60
    %v792 = vmul.f32 %v755, %v61
    %v793 = vmul.f32 %v759, %v62
    %v794 = vmul.f32 %v763, %v63
    %v795 = vmul.f32 %v767, %v64
    %v796 = vmul.f32 %v771, %v65
    %v797 = vmul.f32 %v775, %v66
    %v798 = vmul.f32 %v779, %v67
    %v799 = vmul.f32 %v783, %v68
    %v800 = vsel %vm80, %v785, 0.0
    %v801 = vadd.f32 %v784, %v800
    %v802 = vrot.slane %v801, 4
    %v803 = vadd.f32 %v801, %v802
    %v804 = vrot.slane %v803, 2
    %v805 = vadd.f32 %v803, %v804
    %v806 = vrot.slane %v805, 1
    %v807 = vadd.f32 %v805, %v806
    %v808 = vsel %vm80, %v787, 0.0
    %v809 = vadd.f32 %v786, %v808
    %v810 = vrot.slane %v809, 4
    %v811 = vadd.f32 %v809, %v810
    %v812 = vrot.slane %v811, 2
    %v813 = vadd.f32 %v811, %v812
    %v814 = vrot.slane %v813, 1
    %v815 = vadd.f32 %v813, %v814
    %v816 = vsel %vm80, %v789, 0.0
    %v817 = vadd.f32 %v788, %v816
    %v818 = vrot.slane %v817, 4
    %v819 = vadd.f32 %v817, %v818
    %v820 = vrot.slane %v819, 2
    %v821 = vadd.f32 %v819, %v820
    %v822 = vrot.slane %v821, 1
    %v823 = vadd.f32 %v821, %v822
    %v824 = vsel %vm80, %v791, 0.0
    %v825 = vadd.f32 %v790, %v824
    %v826 = vrot.slane %v825, 4
    %v827 = vadd.f32 %v825, %v826
    %v828 = vrot.slane %v827, 2
    %v829 = vadd.f32 %v827, %v828
    %v830 = vrot.slane %v829, 1
    %v831 = vadd.f32 %v829, %v830
    %v832 = vsel %vm80, %v793, 0.0
    %v833 = vadd.f32 %v792, %v832
    %v834 = vrot.slane %v833, 4
    %v835 = vadd.f32 %v833, %v834
    %v836 = vrot.slane %v835, 2
    %v837 = vadd.f32 %v835, %v836
    %v838 = vrot.slane %v837, 1
    %v839 = vadd.f32 %v837, %v838
    %v840 = vsel %vm80, %v795, 0.0
    %v841 = vadd.f32 %v794, %v840
    %v842 = vrot.slane %v841, 4
    %v843 = vadd.f32 %v841, %v842
    %v844 = vrot.slane %v843, 2
    %v845 = vadd.f32 %v843, %v844
    %v846 = vrot.slane %v845, 1
    %v847 = vadd.f32 %v845, %v846
    %v848 = vsel %vm80, %v797, 0.0
    %v849 = vadd.f32 %v796, %v848
    %v850 = vrot.slane %v849, 4
    %v851 = vadd.f32 %v849, %v850
    %v852 = vrot.slane %v851, 2
    %v853 = vadd.f32 %v851, %v852
    %v854 = vrot.slane %v853, 1
    %v855 = vadd.f32 %v853, %v854
    %v856 = vsel %vm80, %v799, 0.0
    %v857 = vadd.f32 %v798, %v856
    %v858 = vrot.slane %v857, 4
    %v859 = vadd.f32 %v857, %v858
    %v860 = vrot.slane %v859, 2
    %v861 = vadd.f32 %v859, %v860
    %v862 = vrot.slane %v861, 1
    %v863 = vadd.f32 %v861, %v862
    %vm864 = vcmask 130048
    %v865 = vsel %vm864, %v79, 0
    %867 = vmatprep.subr.mxu0 0.0
    %868 = vmatpush1.msra.mxu0 %v69
    %869 = vmatprep.subr.mxu0 0.0
    %870 = vmatpush1.msra.mxu0 %v70
    %871 = vmatprep.subr.mxu0 0.0
    %872 = vmatpush1.msra.mxu0 0.0
    %873 = vmatprep.subr.mxu0 0.0
    %874 = vmatpush1.msra.mxu0 0.0
    %875 = vmatprep.subr.mxu0 0.0
    %876 = vmatpush1.msra.mxu0 0.0
    %877 = vmatprep.subr.mxu0 0.0
    %878 = vmatpush1.msra.mxu0 0.0
    %879 = vmatprep.subr.mxu0 0.0
    %880 = vmatpush1.msra.mxu0 0.0
    %881 = vmatprep.subr.mxu0 0.0
    %882 = vmatpush1.msra.mxu0 0.0
    %883 = vmatprep.subr.mxu0 0.0
    %884 = vmatpush1.msra.mxu0 0.0
    %885 = vmatprep.subr.mxu0 0.0
    %886 = vmatpush1.msra.mxu0 0.0
    %887 = vmatprep.subr.mxu0 0.0
    %888 = vmatpush1.msra.mxu0 0.0
    %889 = vmatprep.subr.mxu0 0.0
    %890 = vmatpush1.msra.mxu0 0.0
    %891 = vmatprep.subr.mxu0 0.0
    %892 = vmatpush1.msra.mxu0 0.0
    %893 = vmatprep.subr.mxu0 0.0
    %894 = vmatpush1.msra.mxu0 0.0
    %895 = vmatprep.subr.mxu0 0.0
    %896 = vmatpush1.msra.mxu0 0.0
    %897 = vmatprep.subr.mxu0 0.0
    %898 = vmatpush1.msra.mxu0 0.0
    %899 = vmatprep.subr.mxu0 0.0
    %900 = vmatpush1.msra.mxu0 0.0
    %901 = vmatprep.subr.mxu0 0.0
    %902 = vmatpush1.msra.mxu0 0.0
    %903 = vmatprep.subr.mxu0 0.0
    %904 = vmatpush1.msra.mxu0 0.0
    %905 = vmatprep.subr.mxu0 0.0
    %906 = vmatpush1.msra.mxu0 0.0
    %907 = vmatprep.subr.mxu0 0.0
    %908 = vmatpush1.msra.mxu0 0.0
    %909 = vmatprep.subr.mxu0 0.0
    %910 = vmatpush1.msra.mxu0 0.0
    %911 = vmatprep.subr.mxu0 0.0
    %912 = vmatpush1.msra.mxu0 0.0
    %913 = vmatprep.subr.mxu0 0.0
    %914 = vmatpush1.msra.mxu0 0.0
    %915 = vmatprep.subr.mxu0 0.0
    %916 = vmatpush1.msra.mxu0 0.0
    %917 = vmatprep.subr.mxu0 0.0
    %918 = vmatpush1.msra.mxu0 0.0
    %919 = vmatprep.subr.mxu0 0.0
    %920 = vmatpush1.msra.mxu0 0.0
    %921 = vmatprep.subr.mxu0 0.0
    %922 = vmatpush1.msra.mxu0 0.0
    %923 = vmatprep.subr.mxu0 0.0
    %924 = vmatpush1.msra.mxu0 0.0
    %925 = vmatprep.subr.mxu0 0.0
    %926 = vmatpush1.msra.mxu0 0.0
    %927 = vmatprep.subr.mxu0 0.0
    %928 = vmatpush1.msra.mxu0 0.0
    %929 = vmatprep.subr.mxu0 0.0
    %930 = vmatpush1.msra.mxu0 0.0
    %931 = vmatprep.mubr.f32.mxu0 0.0
    %932 = vmatmul.mubr.f32.gmra.mrb[0].mxu0 %v865
    %v933 = vpop.f32.mrb[0].mxu0
    %v934 = vadd.f32 0.0, %v933
    %v935 = vpop.f32.mrb[0].mxu0
    %936 = vdwg.mxu0
    %v945 = vrot.slane %v313, 1
    %v946 = vrot.slane %v313, 2
    %v947 = vrot.slane %v313, 3
    %v948 = vrot.slane %v313, 4
    %v949 = vrot.slane %v314, 1
    %v950 = vrot.slane %v314, 2
    %v951 = vrot.slane %v314, 3
    %v952 = vrot.slane %v314, 4
    %v953 = vrot.slane %v315, 1
    %v954 = vrot.slane %v315, 2
    %v955 = vrot.slane %v315, 3
    %v956 = vrot.slane %v315, 4
    %v957 = vrot.slane %v316, 1
    %v958 = vrot.slane %v316, 2
    %v959 = vrot.slane %v316, 3
    %v960 = vrot.slane %v316, 4
    %v961 = vrot.slane %v317, 1
    %v962 = vrot.slane %v317, 2
    %v963 = vrot.slane %v317, 3
    %v964 = vrot.slane %v317, 4
    %v965 = vrot.slane %v318, 1
    %v966 = vrot.slane %v318, 2
    %v967 = vrot.slane %v318, 3
    %v968 = vrot.slane %v318, 4
    %v969 = vrot.slane %v319, 1
    %v970 = vrot.slane %v319, 2
    %v971 = vrot.slane %v319, 3
    %v972 = vrot.slane %v319, 4
    %v973 = vrot.slane %v320, 1
    %v974 = vrot.slane %v320, 2
    %v975 = vrot.slane %v320, 3
    %v976 = vrot.slane %v320, 4
    %v1017 = vadd.f32 %v446, %v313
    %v1018 = vadd.f32 %v453, %v945
    %v1019 = vadd.f32 %v460, %v946
    %v1020 = vadd.f32 %v467, %v947
    %v1021 = vadd.f32 %v474, %v948
    %v1022 = vadd.f32 %v481, %v314
    %v1023 = vadd.f32 %v488, %v949
    %v1024 = vadd.f32 %v495, %v950
    %v1025 = vadd.f32 %v502, %v951
    %v1026 = vadd.f32 %v509, %v952
    %v1027 = vadd.f32 %v516, %v315
    %v1028 = vadd.f32 %v523, %v953
    %v1029 = vadd.f32 %v530, %v954
    %v1030 = vadd.f32 %v537, %v955
    %v1031 = vadd.f32 %v544, %v956
    %v1032 = vadd.f32 %v551, %v316
    %v1033 = vadd.f32 %v558, %v957
    %v1034 = vadd.f32 %v565, %v958
    %v1035 = vadd.f32 %v572, %v959
    %v1036 = vadd.f32 %v579, %v960
    %v1037 = vadd.f32 %v586, %v317
    %v1038 = vadd.f32 %v593, %v961
    %v1039 = vadd.f32 %v600, %v962
    %v1040 = vadd.f32 %v607, %v963
    %v1041 = vadd.f32 %v614, %v964
    %v1042 = vadd.f32 %v621, %v318
    %v1043 = vadd.f32 %v628, %v965
    %v1044 = vadd.f32 %v635, %v966
    %v1045 = vadd.f32 %v642, %v967
    %v1046 = vadd.f32 %v649, %v968
    %v1047 = vadd.f32 %v656, %v319
    %v1048 = vadd.f32 %v663, %v969
    %v1049 = vadd.f32 %v670, %v970
    %v1050 = vadd.f32 %v677, %v971
    %v1051 = vadd.f32 %v684, %v972
    %v1052 = vadd.f32 %v691, %v320
    %v1053 = vadd.f32 %v698, %v973
    %v1054 = vadd.f32 %v705, %v974
    %v1055 = vadd.f32 %v712, %v975
    %v1056 = vadd.f32 %v719, %v976
    %v1065 = vsel %vm153, %v815, %v807
    %v1066 = vsel %vm155, %v823, %v1065
    %v1067 = vsel %vm157, %v831, %v1066
    %v1068 = vsel %vm159, %v839, %v1067
    %v1069 = vsel %vm161, %v847, %v1068
    %v1070 = vsel %vm163, %v855, %v1069
    %v1071 = vsel %vm165, %v863, %v1070
    %v1073 = vadd.f32 %v335, %v1071
    %v1074 = vadd.f32 %v1073, %v934
    %v1076 = vcombine.high %v1074, %v1074
    %v1078 = vunpack.c.l.s4 1966171168
    %v1079 = vunpack.c.0.s8 %v1078
    %v1080 = vlaneseq
    %v1081 = vshrl.u32 %v1080, 7
    %v1082 = vsub.s32 %v1079, %v1081
    %v1083 = vrot.slane %v1074, %v1082
    %v1085 = vunpack.c.l.s4 1966171168
    %v1086 = vunpack.c.0.s8 %v1085
    %v1087 = vlaneseq
    %v1088 = vshrl.u32 %v1087, 7
    %v1089 = vsub.s32 %v1086, %v1088
    %v1090 = vrot.slane %v1076, %v1089
    %v1091 = vcombine.high %v1083, %v1083
    %v1092 = vcombine.high %v1090, %v1090
    %v1094 = vunpack.c.l.s4 1966171168
    %v1095 = vunpack.c.0.s8 %v1094
    %v1096 = vlaneseq
    %v1097 = vshrl.u32 %v1096, 7
    %v1098 = vsub.s32 %v1095, %v1097
    %v1099 = vrot.slane %v1083, %v1098
    %v1101 = vunpack.c.l.s4 1966171168
    %v1102 = vunpack.c.0.s8 %v1101
    %v1103 = vlaneseq
    %v1104 = vshrl.u32 %v1103, 7
    %v1105 = vsub.s32 %v1102, %v1104
    %v1106 = vrot.slane %v1090, %v1105
    %v1108 = vunpack.c.l.s4 1966171168
    %v1109 = vunpack.c.0.s8 %v1108
    %v1110 = vlaneseq
    %v1111 = vshrl.u32 %v1110, 7
    %v1112 = vsub.s32 %v1109, %v1111
    %v1113 = vrot.slane %v1091, %v1112
    %v1115 = vunpack.c.l.s4 1966171168
    %v1116 = vunpack.c.0.s8 %v1115
    %v1117 = vlaneseq
    %v1118 = vshrl.u32 %v1117, 7
    %v1119 = vsub.s32 %v1116, %v1118
    %v1120 = vrot.slane %v1092, %v1119
    %v1121 = vcombine.high %v1099, %v1099
    %v1122 = vcombine.high %v1106, %v1106
    %v1123 = vcombine.high %v1113, %v1113
    %v1124 = vcombine.high %v1120, %v1120
    %v1125 = vlaneseq
    %v1126 = vshrl.u32 %v1125, 7
    %v1127 = vsub.s32 0, %v1126
    %v1128 = vrot.slane %v1099, %v1127
    %v1129 = vlaneseq
    %v1130 = vshrl.u32 %v1129, 7
    %v1131 = vsub.s32 0, %v1130
    %v1132 = vrot.slane %v1113, %v1131
    %v1133 = vlaneseq
    %v1134 = vshrl.u32 %v1133, 7
    %v1135 = vsub.s32 0, %v1134
    %v1136 = vrot.slane %v1121, %v1135
    %v1137 = vlaneseq
    %v1138 = vshrl.u32 %v1137, 7
    %v1139 = vsub.s32 0, %v1138
    %v1140 = vrot.slane %v1123, %v1139
    %v1141 = vlaneseq
    %v1142 = vshrl.u32 %v1141, 7
    %v1143 = vsub.s32 0, %v1142
    %v1144 = vrot.slane %v1106, %v1143
    %v1145 = vlaneseq
    %v1146 = vshrl.u32 %v1145, 7
    %v1147 = vsub.s32 0, %v1146
    %v1148 = vrot.slane %v1120, %v1147
    %v1149 = vlaneseq
    %v1150 = vshrl.u32 %v1149, 7
    %v1151 = vsub.s32 0, %v1150
    %v1152 = vrot.slane %v1122, %v1151
    %v1153 = vlaneseq
    %v1154 = vshrl.u32 %v1153, 7
    %v1155 = vsub.s32 0, %v1154
    %v1156 = vrot.slane %v1124, %v1155
    %v1165 = vadd.f32 %v1017, %v1128
    %v1166 = vadd.f32 %v1018, %v1128
    %v1167 = vadd.f32 %v1019, %v1128
    %v1168 = vadd.f32 %v1020, %v1128
    %v1169 = vadd.f32 %v1021, %v1128
    %v1170 = vadd.f32 %v1022, %v1132
    %v1171 = vadd.f32 %v1023, %v1132
    %v1172 = vadd.f32 %v1024, %v1132
    %v1173 = vadd.f32 %v1025, %v1132
    %v1174 = vadd.f32 %v1026, %v1132
    %v1175 = vadd.f32 %v1027, %v1136
    %v1176 = vadd.f32 %v1028, %v1136
    %v1177 = vadd.f32 %v1029, %v1136
    %v1178 = vadd.f32 %v1030, %v1136
    %v1179 = vadd.f32 %v1031, %v1136
    %v1180 = vadd.f32 %v1032, %v1140
    %v1181 = vadd.f32 %v1033, %v1140
    %v1182 = vadd.f32 %v1034, %v1140
    %v1183 = vadd.f32 %v1035, %v1140
    %v1184 = vadd.f32 %v1036, %v1140
    %v1185 = vadd.f32 %v1037, %v1144
    %v1186 = vadd.f32 %v1038, %v1144
    %v1187 = vadd.f32 %v1039, %v1144
    %v1188 = vadd.f32 %v1040, %v1144
    %v1189 = vadd.f32 %v1041, %v1144
    %v1190 = vadd.f32 %v1042, %v1148
    %v1191 = vadd.f32 %v1043, %v1148
    %v1192 = vadd.f32 %v1044, %v1148
    %v1193 = vadd.f32 %v1045, %v1148
    %v1194 = vadd.f32 %v1046, %v1148
    %v1195 = vadd.f32 %v1047, %v1152
    %v1196 = vadd.f32 %v1048, %v1152
    %v1197 = vadd.f32 %v1049, %v1152
    %v1198 = vadd.f32 %v1050, %v1152
    %v1199 = vadd.f32 %v1051, %v1152
    %v1200 = vadd.f32 %v1052, %v1156
    %v1201 = vadd.f32 %v1053, %v1156
    %v1202 = vadd.f32 %v1054, %v1156
    %v1203 = vadd.f32 %v1055, %v1156
    %v1204 = vadd.f32 %v1056, %v1156
    %v1205 = vadd.f32 %v1165, %v329
    %v1206 = vadd.f32 %v1166, %v329
    %v1207 = vadd.f32 %v1167, %v329
    %v1208 = vadd.f32 %v1168, %v329
    %v1209 = vadd.f32 %v1169, %v329
    %v1210 = vadd.f32 %v1170, %v329
    %v1211 = vadd.f32 %v1171, %v329
    %v1212 = vadd.f32 %v1172, %v329
    %v1213 = vadd.f32 %v1173, %v329
    %v1214 = vadd.f32 %v1174, %v329
    %v1215 = vadd.f32 %v1175, %v329
    %v1216 = vadd.f32 %v1176, %v329
    %v1217 = vadd.f32 %v1177, %v329
    %v1218 = vadd.f32 %v1178, %v329
    %v1219 = vadd.f32 %v1179, %v329
    %v1220 = vadd.f32 %v1180, %v329
    %v1221 = vadd.f32 %v1181, %v329
    %v1222 = vadd.f32 %v1182, %v329
    %v1223 = vadd.f32 %v1183, %v329
    %v1224 = vadd.f32 %v1184, %v329
    %v1225 = vadd.f32 %v1185, %v329
    %v1226 = vadd.f32 %v1186, %v329
    %v1227 = vadd.f32 %v1187, %v329
    %v1228 = vadd.f32 %v1188, %v329
    %v1229 = vadd.f32 %v1189, %v329
    %v1230 = vadd.f32 %v1190, %v329
    %v1231 = vadd.f32 %v1191, %v329
    %v1232 = vadd.f32 %v1192, %v329
    %v1233 = vadd.f32 %v1193, %v329
    %v1234 = vadd.f32 %v1194, %v329
    %v1235 = vadd.f32 %v1195, %v329
    %v1236 = vadd.f32 %v1196, %v329
    %v1237 = vadd.f32 %v1197, %v329
    %v1238 = vadd.f32 %v1198, %v329
    %v1239 = vadd.f32 %v1199, %v329
    %v1240 = vadd.f32 %v1200, %v329
    %v1241 = vadd.f32 %v1201, %v329
    %v1242 = vadd.f32 %v1202, %v329
    %v1243 = vadd.f32 %v1203, %v329
    %v1244 = vadd.f32 %v1204, %v329
    %v1285 = vrot.slane %v1206, 7
    %v1286 = vsel %vm153, %v1285, %v1205
    %v1287 = vrot.slane %v1207, 6
    %v1288 = vsel %vm155, %v1287, %v1286
    %v1289 = vrot.slane %v1208, 5
    %v1290 = vsel %vm157, %v1289, %v1288
    %v1291 = vrot.slane %v1209, 4
    %v1292 = vsel %vm159, %v1291, %v1290
    %v1293 = vrot.slane %v1211, 7
    %v1294 = vsel %vm153, %v1293, %v1210
    %v1295 = vrot.slane %v1212, 6
    %v1296 = vsel %vm155, %v1295, %v1294
    %v1297 = vrot.slane %v1213, 5
    %v1298 = vsel %vm157, %v1297, %v1296
    %v1299 = vrot.slane %v1214, 4
    %v1300 = vsel %vm159, %v1299, %v1298
    %v1301 = vrot.slane %v1216, 7
    %v1302 = vsel %vm153, %v1301, %v1215
    %v1303 = vrot.slane %v1217, 6
    %v1304 = vsel %vm155, %v1303, %v1302
    %v1305 = vrot.slane %v1218, 5
    %v1306 = vsel %vm157, %v1305, %v1304
    %v1307 = vrot.slane %v1219, 4
    %v1308 = vsel %vm159, %v1307, %v1306
    %v1309 = vrot.slane %v1221, 7
    %v1310 = vsel %vm153, %v1309, %v1220
    %v1311 = vrot.slane %v1222, 6
    %v1312 = vsel %vm155, %v1311, %v1310
    %v1313 = vrot.slane %v1223, 5
    %v1314 = vsel %vm157, %v1313, %v1312
    %v1315 = vrot.slane %v1224, 4
    %v1316 = vsel %vm159, %v1315, %v1314
    %v1317 = vrot.slane %v1226, 7
    %v1318 = vsel %vm153, %v1317, %v1225
    %v1319 = vrot.slane %v1227, 6
    %v1320 = vsel %vm155, %v1319, %v1318
    %v1321 = vrot.slane %v1228, 5
    %v1322 = vsel %vm157, %v1321, %v1320
    %v1323 = vrot.slane %v1229, 4
    %v1324 = vsel %vm159, %v1323, %v1322
    %v1325 = vrot.slane %v1231, 7
    %v1326 = vsel %vm153, %v1325, %v1230
    %v1327 = vrot.slane %v1232, 6
    %v1328 = vsel %vm155, %v1327, %v1326
    %v1329 = vrot.slane %v1233, 5
    %v1330 = vsel %vm157, %v1329, %v1328
    %v1331 = vrot.slane %v1234, 4
    %v1332 = vsel %vm159, %v1331, %v1330
    %v1333 = vrot.slane %v1236, 7
    %v1334 = vsel %vm153, %v1333, %v1235
    %v1335 = vrot.slane %v1237, 6
    %v1336 = vsel %vm155, %v1335, %v1334
    %v1337 = vrot.slane %v1238, 5
    %v1338 = vsel %vm157, %v1337, %v1336
    %v1339 = vrot.slane %v1239, 4
    %v1340 = vsel %vm159, %v1339, %v1338
    %v1341 = vrot.slane %v1241, 7
    %v1342 = vsel %vm153, %v1341, %v1240
    %v1343 = vrot.slane %v1242, 6
    %v1344 = vsel %vm155, %v1343, %v1342
    %v1345 = vrot.slane %v1243, 5
    %v1346 = vsel %vm157, %v1345, %v1344
    %v1347 = vrot.slane %v1244, 4
    %v1348 = vsel %vm159, %v1347, %v1346
    %vm1357 = vcmask 1044480
    %v1358 = vsel %vm1357, %v1292, 0.0
    %1359 = vadd.xlane.f32.xlu0 %v1358
    %v1360 = vpop.xlane.xlu0 %1359
    %v1361 = vsel %vm1357, %v1300, 0.0
    %1362 = vadd.xlane.f32.xlu0 %v1361
    %v1363 = vpop.xlane.xlu0 %1362
    %v1364 = vsel %vm1357, %v1308, 0.0
    %1365 = vadd.xlane.f32.xlu0 %v1364
    %v1366 = vpop.xlane.xlu0 %1365
    %v1367 = vsel %vm1357, %v1316, 0.0
    %1368 = vadd.xlane.f32.xlu0 %v1367
    %v1369 = vpop.xlane.xlu0 %1368
    %v1370 = vsel %vm1357, %v1324, 0.0
    %1371 = vadd.xlane.f32.xlu0 %v1370
    %v1372 = vpop.xlane.xlu0 %1371
    %v1373 = vsel %vm1357, %v1332, 0.0
    %1374 = vadd.xlane.f32.xlu0 %v1373
    %v1375 = vpop.xlane.xlu0 %1374
    %v1376 = vsel %vm1357, %v1340, 0.0
    %1377 = vadd.xlane.f32.xlu0 %v1376
    %v1378 = vpop.xlane.xlu0 %1377
    %v1379 = vsel %vm1357, %v1348, 0.0
    %1380 = vadd.xlane.f32.xlu0 %v1379
    %v1381 = vpop.xlane.xlu0 %1380
    %v1382 = vrcp.pop 128.0
    %v1383 = vmul.f32 %v1360, %v1382
    %v1384 = vmul.f32 %v1363, %v1382
    %v1385 = vmul.f32 %v1366, %v1382
    %v1386 = vmul.f32 %v1369, %v1382
    %v1387 = vmul.f32 %v1372, %v1382
    %v1388 = vmul.f32 %v1375, %v1382
    %v1389 = vmul.f32 %v1378, %v1382
    %v1390 = vmul.f32 %v1381, %v1382
    %v1399 = vrot.slane %v1383, 1
    %v1400 = vrot.slane %v1383, 2
    %v1401 = vrot.slane %v1383, 3
    %v1402 = vrot.slane %v1383, 4
    %v1403 = vrot.slane %v1384, 1
    %v1404 = vrot.slane %v1384, 2
    %v1405 = vrot.slane %v1384, 3
    %v1406 = vrot.slane %v1384, 4
    %v1407 = vrot.slane %v1385, 1
    %v1408 = vrot.slane %v1385, 2
    %v1409 = vrot.slane %v1385, 3
    %v1410 = vrot.slane %v1385, 4
    %v1411 = vrot.slane %v1386, 1
    %v1412 = vrot.slane %v1386, 2
    %v1413 = vrot.slane %v1386, 3
    %v1414 = vrot.slane %v1386, 4
    %v1415 = vrot.slane %v1387, 1
    %v1416 = vrot.slane %v1387, 2
    %v1417 = vrot.slane %v1387, 3
    %v1418 = vrot.slane %v1387, 4
    %v1419 = vrot.slane %v1388, 1
    %v1420 = vrot.slane %v1388, 2
    %v1421 = vrot.slane %v1388, 3
    %v1422 = vrot.slane %v1388, 4
    %v1423 = vrot.slane %v1389, 1
    %v1424 = vrot.slane %v1389, 2
    %v1425 = vrot.slane %v1389, 3
    %v1426 = vrot.slane %v1389, 4
    %v1427 = vrot.slane %v1390, 1
    %v1428 = vrot.slane %v1390, 2
    %v1429 = vrot.slane %v1390, 3
    %v1430 = vrot.slane %v1390, 4
    %v1471 = vsub.f32 %v1205, %v1383
    %v1472 = vsub.f32 %v1206, %v1399
    %v1473 = vsub.f32 %v1207, %v1400
    %v1474 = vsub.f32 %v1208, %v1401
    %v1475 = vsub.f32 %v1209, %v1402
    %v1476 = vsub.f32 %v1210, %v1384
    %v1477 = vsub.f32 %v1211, %v1403
    %v1478 = vsub.f32 %v1212, %v1404
    %v1479 = vsub.f32 %v1213, %v1405
    %v1480 = vsub.f32 %v1214, %v1406
    %v1481 = vsub.f32 %v1215, %v1385
    %v1482 = vsub.f32 %v1216, %v1407
    %v1483 = vsub.f32 %v1217, %v1408
    %v1484 = vsub.f32 %v1218, %v1409
    %v1485 = vsub.f32 %v1219, %v1410
    %v1486 = vsub.f32 %v1220, %v1386
    %v1487 = vsub.f32 %v1221, %v1411
    %v1488 = vsub.f32 %v1222, %v1412
    %v1489 = vsub.f32 %v1223, %v1413
    %v1490 = vsub.f32 %v1224, %v1414
    %v1491 = vsub.f32 %v1225, %v1387
    %v1492 = vsub.f32 %v1226, %v1415
    %v1493 = vsub.f32 %v1227, %v1416
    %v1494 = vsub.f32 %v1228, %v1417
    %v1495 = vsub.f32 %v1229, %v1418
    %v1496 = vsub.f32 %v1230, %v1388
    %v1497 = vsub.f32 %v1231, %v1419
    %v1498 = vsub.f32 %v1232, %v1420
    %v1499 = vsub.f32 %v1233, %v1421
    %v1500 = vsub.f32 %v1234, %v1422
    %v1501 = vsub.f32 %v1235, %v1389
    %v1502 = vsub.f32 %v1236, %v1423
    %v1503 = vsub.f32 %v1237, %v1424
    %v1504 = vsub.f32 %v1238, %v1425
    %v1505 = vsub.f32 %v1239, %v1426
    %v1506 = vsub.f32 %v1240, %v1390
    %v1507 = vsub.f32 %v1241, %v1427
    %v1508 = vsub.f32 %v1242, %v1428
    %v1509 = vsub.f32 %v1243, %v1429
    %v1510 = vsub.f32 %v1244, %v1430
    %v1511 = vmul.f32 %v1471, %v1471
    %v1512 = vmul.f32 %v1472, %v1472
    %v1513 = vmul.f32 %v1473, %v1473
    %v1514 = vmul.f32 %v1474, %v1474
    %v1515 = vmul.f32 %v1475, %v1475
    %v1516 = vmul.f32 %v1476, %v1476
    %v1517 = vmul.f32 %v1477, %v1477
    %v1518 = vmul.f32 %v1478, %v1478
    %v1519 = vmul.f32 %v1479, %v1479
    %v1520 = vmul.f32 %v1480, %v1480
    %v1521 = vmul.f32 %v1481, %v1481
    %v1522 = vmul.f32 %v1482, %v1482
    %v1523 = vmul.f32 %v1483, %v1483
    %v1524 = vmul.f32 %v1484, %v1484
    %v1525 = vmul.f32 %v1485, %v1485
    %v1526 = vmul.f32 %v1486, %v1486
    %v1527 = vmul.f32 %v1487, %v1487
    %v1528 = vmul.f32 %v1488, %v1488
    %v1529 = vmul.f32 %v1489, %v1489
    %v1530 = vmul.f32 %v1490, %v1490
    %v1531 = vmul.f32 %v1491, %v1491
    %v1532 = vmul.f32 %v1492, %v1492
    %v1533 = vmul.f32 %v1493, %v1493
    %v1534 = vmul.f32 %v1494, %v1494
    %v1535 = vmul.f32 %v1495, %v1495
    %v1536 = vmul.f32 %v1496, %v1496
    %v1537 = vmul.f32 %v1497, %v1497
    %v1538 = vmul.f32 %v1498, %v1498
    %v1539 = vmul.f32 %v1499, %v1499
    %v1540 = vmul.f32 %v1500, %v1500
    %v1541 = vmul.f32 %v1501, %v1501
    %v1542 = vmul.f32 %v1502, %v1502
    %v1543 = vmul.f32 %v1503, %v1503
    %v1544 = vmul.f32 %v1504, %v1504
    %v1545 = vmul.f32 %v1505, %v1505
    %v1546 = vmul.f32 %v1506, %v1506
    %v1547 = vmul.f32 %v1507, %v1507
    %v1548 = vmul.f32 %v1508, %v1508
    %v1549 = vmul.f32 %v1509, %v1509
    %v1550 = vmul.f32 %v1510, %v1510
    %v1591 = vrot.slane %v1512, 7
    %v1592 = vsel %vm153, %v1591, %v1511
    %v1593 = vrot.slane %v1513, 6
    %v1594 = vsel %vm155, %v1593, %v1592
    %v1595 = vrot.slane %v1514, 5
    %v1596 = vsel %vm157, %v1595, %v1594
    %v1597 = vrot.slane %v1515, 4
    %v1598 = vsel %vm159, %v1597, %v1596
    %v1599 = vrot.slane %v1517, 7
    %v1600 = vsel %vm153, %v1599, %v1516
    %v1601 = vrot.slane %v1518, 6
    %v1602 = vsel %vm155, %v1601, %v1600
    %v1603 = vrot.slane %v1519, 5
    %v1604 = vsel %vm157, %v1603, %v1602
    %v1605 = vrot.slane %v1520, 4
    %v1606 = vsel %vm159, %v1605, %v1604
    %v1607 = vrot.slane %v1522, 7
    %v1608 = vsel %vm153, %v1607, %v1521
    %v1609 = vrot.slane %v1523, 6
    %v1610 = vsel %vm155, %v1609, %v1608
    %v1611 = vrot.slane %v1524, 5
    %v1612 = vsel %vm157, %v1611, %v1610
    %v1613 = vrot.slane %v1525, 4
    %v1614 = vsel %vm159, %v1613, %v1612
    %v1615 = vrot.slane %v1527, 7
    %v1616 = vsel %vm153, %v1615, %v1526
    %v1617 = vrot.slane %v1528, 6
    %v1618 = vsel %vm155, %v1617, %v1616
    %v1619 = vrot.slane %v1529, 5
    %v1620 = vsel %vm157, %v1619, %v1618
    %v1621 = vrot.slane %v1530, 4
    %v1622 = vsel %vm159, %v1621, %v1620
    %v1623 = vrot.slane %v1532, 7
    %v1624 = vsel %vm153, %v1623, %v1531
    %v1625 = vrot.slane %v1533, 6
    %v1626 = vsel %vm155, %v1625, %v1624
    %v1627 = vrot.slane %v1534, 5
    %v1628 = vsel %vm157, %v1627, %v1626
    %v1629 = vrot.slane %v1535, 4
    %v1630 = vsel %vm159, %v1629, %v1628
    %v1631 = vrot.slane %v1537, 7
    %v1632 = vsel %vm153, %v1631, %v1536
    %v1633 = vrot.slane %v1538, 6
    %v1634 = vsel %vm155, %v1633, %v1632
    %v1635 = vrot.slane %v1539, 5
    %v1636 = vsel %vm157, %v1635, %v1634
    %v1637 = vrot.slane %v1540, 4
    %v1638 = vsel %vm159, %v1637, %v1636
    %v1639 = vrot.slane %v1542, 7
    %v1640 = vsel %vm153, %v1639, %v1541
    %v1641 = vrot.slane %v1543, 6
    %v1642 = vsel %vm155, %v1641, %v1640
    %v1643 = vrot.slane %v1544, 5
    %v1644 = vsel %vm157, %v1643, %v1642
    %v1645 = vrot.slane %v1545, 4
    %v1646 = vsel %vm159, %v1645, %v1644
    %v1647 = vrot.slane %v1547, 7
    %v1648 = vsel %vm153, %v1647, %v1546
    %v1649 = vrot.slane %v1548, 6
    %v1650 = vsel %vm155, %v1649, %v1648
    %v1651 = vrot.slane %v1549, 5
    %v1652 = vsel %vm157, %v1651, %v1650
    %v1653 = vrot.slane %v1550, 4
    %v1654 = vsel %vm159, %v1653, %v1652
    %v1663 = vsel %vm1357, %v1598, 0.0
    %1664 = vadd.xlane.f32.xlu0 %v1663
    %v1665 = vpop.xlane.xlu0 %1664
    %v1666 = vsel %vm1357, %v1606, 0.0
    %1667 = vadd.xlane.f32.xlu0 %v1666
    %v1668 = vpop.xlane.xlu0 %1667
    %v1669 = vsel %vm1357, %v1614, 0.0
    %1670 = vadd.xlane.f32.xlu0 %v1669
    %v1671 = vpop.xlane.xlu0 %1670
    %v1672 = vsel %vm1357, %v1622, 0.0
    %1673 = vadd.xlane.f32.xlu0 %v1672
    %v1674 = vpop.xlane.xlu0 %1673
    %v1675 = vsel %vm1357, %v1630, 0.0
    %1676 = vadd.xlane.f32.xlu0 %v1675
    %v1677 = vpop.xlane.xlu0 %1676
    %v1678 = vsel %vm1357, %v1638, 0.0
    %1679 = vadd.xlane.f32.xlu0 %v1678
    %v1680 = vpop.xlane.xlu0 %1679
    %v1681 = vsel %vm1357, %v1646, 0.0
    %1682 = vadd.xlane.f32.xlu0 %v1681
    %v1683 = vpop.xlane.xlu0 %1682
    %v1684 = vsel %vm1357, %v1654, 0.0
    %1685 = vadd.xlane.f32.xlu0 %v1684
    %v1686 = vpop.xlane.xlu0 %1685
    %v1687 = vmul.f32 %v1665, %v1382
    %v1688 = vmul.f32 %v1668, %v1382
    %v1689 = vmul.f32 %v1671, %v1382
    %v1690 = vmul.f32 %v1674, %v1382
    %v1691 = vmul.f32 %v1677, %v1382
    %v1692 = vmul.f32 %v1680, %v1382
    %v1693 = vmul.f32 %v1683, %v1382
    %v1694 = vmul.f32 %v1686, %v1382
    %v1695 = vadd.f32 %v1687, 1e-05
    %v1696 = vadd.f32 %v1688, 1e-05
    %v1697 = vadd.f32 %v1689, 1e-05
    %v1698 = vadd.f32 %v1690, 1e-05
    %v1699 = vadd.f32 %v1691, 1e-05
    %v1700 = vadd.f32 %v1692, 1e-05
    %v1701 = vadd.f32 %v1693, 1e-05
    %v1702 = vadd.f32 %v1694, 1e-05
    %v1703 = vrsqrt.pop %v1695
    %v1704 = vrsqrt.pop %v1696
    %v1705 = vrsqrt.pop %v1697
    %v1706 = vrsqrt.pop %v1698
    %v1707 = vrsqrt.pop %v1699
    %v1708 = vrsqrt.pop %v1700
    %v1709 = vrsqrt.pop %v1701
    %v1710 = vrsqrt.pop %v1702
    %v1719 = vrot.slane %v1703, 1
    %v1720 = vrot.slane %v1703, 2
    %v1721 = vrot.slane %v1703, 3
    %v1722 = vrot.slane %v1703, 4
    %v1723 = vrot.slane %v1704, 1
    %v1724 = vrot.slane %v1704, 2
    %v1725 = vrot.slane %v1704, 3
    %v1726 = vrot.slane %v1704, 4
    %v1727 = vrot.slane %v1705, 1
    %v1728 = vrot.slane %v1705, 2
    %v1729 = vrot.slane %v1705, 3
    %v1730 = vrot.slane %v1705, 4
    %v1731 = vrot.slane %v1706, 1
    %v1732 = vrot.slane %v1706, 2
    %v1733 = vrot.slane %v1706, 3
    %v1734 = vrot.slane %v1706, 4
    %v1735 = vrot.slane %v1707, 1
    %v1736 = vrot.slane %v1707, 2
    %v1737 = vrot.slane %v1707, 3
    %v1738 = vrot.slane %v1707, 4
    %v1739 = vrot.slane %v1708, 1
    %v1740 = vrot.slane %v1708, 2
    %v1741 = vrot.slane %v1708, 3
    %v1742 = vrot.slane %v1708, 4
    %v1743 = vrot.slane %v1709, 1
    %v1744 = vrot.slane %v1709, 2
    %v1745 = vrot.slane %v1709, 3
    %v1746 = vrot.slane %v1709, 4
    %v1747 = vrot.slane %v1710, 1
    %v1748 = vrot.slane %v1710, 2
    %v1749 = vrot.slane %v1710, 3
    %v1750 = vrot.slane %v1710, 4
    %v1791 = vmul.f32 %v1471, %v1703
    %v1792 = vmul.f32 %v1472, %v1719
    %v1793 = vmul.f32 %v1473, %v1720
    %v1794 = vmul.f32 %v1474, %v1721
    %v1795 = vmul.f32 %v1475, %v1722
    %v1796 = vmul.f32 %v1476, %v1704
    %v1797 = vmul.f32 %v1477, %v1723
    %v1798 = vmul.f32 %v1478, %v1724
    %v1799 = vmul.f32 %v1479, %v1725
    %v1800 = vmul.f32 %v1480, %v1726
    %v1801 = vmul.f32 %v1481, %v1705
    %v1802 = vmul.f32 %v1482, %v1727
    %v1803 = vmul.f32 %v1483, %v1728
    %v1804 = vmul.f32 %v1484, %v1729
    %v1805 = vmul.f32 %v1485, %v1730
    %v1806 = vmul.f32 %v1486, %v1706
    %v1807 = vmul.f32 %v1487, %v1731
    %v1808 = vmul.f32 %v1488, %v1732
    %v1809 = vmul.f32 %v1489, %v1733
    %v1810 = vmul.f32 %v1490, %v1734
    %v1811 = vmul.f32 %v1491, %v1707
    %v1812 = vmul.f32 %v1492, %v1735
    %v1813 = vmul.f32 %v1493, %v1736
    %v1814 = vmul.f32 %v1494, %v1737
    %v1815 = vmul.f32 %v1495, %v1738
    %v1816 = vmul.f32 %v1496, %v1708
    %v1817 = vmul.f32 %v1497, %v1739
    %v1818 = vmul.f32 %v1498, %v1740
    %v1819 = vmul.f32 %v1499, %v1741
    %v1820 = vmul.f32 %v1500, %v1742
    %v1821 = vmul.f32 %v1501, %v1709
    %v1822 = vmul.f32 %v1502, %v1743
    %v1823 = vmul.f32 %v1503, %v1744
    %v1824 = vmul.f32 %v1504, %v1745
    %v1825 = vmul.f32 %v1505, %v1746
    %v1826 = vmul.f32 %v1506, %v1710
    %v1827 = vmul.f32 %v1507, %v1747
    %v1828 = vmul.f32 %v1508, %v1748
    %v1829 = vmul.f32 %v1509, %v1749
    %v1830 = vmul.f32 %v1510, %v1750
    %v1831 = vld [vmem:[%s7] sm:$0x1]
    %v1833 = vlaneseq
    %v1834 = vshrl.u32 %v1833, 7
    %v1835 = vsub.s32 0, %v1834
    %v1836 = vrot.slane %v1831, %v1835
    %v1838 = vmul.f32 %v1791, %v1836
    %v1839 = vmul.f32 %v1792, %v1836
    %v1840 = vmul.f32 %v1793, %v1836
    %v1841 = vmul.f32 %v1794, %v1836
    %v1842 = vmul.f32 %v1795, %v1836
    %v1843 = vmul.f32 %v1796, %v1836
    %v1844 = vmul.f32 %v1797, %v1836
    %v1845 = vmul.f32 %v1798, %v1836
    %v1846 = vmul.f32 %v1799, %v1836
    %v1847 = vmul.f32 %v1800, %v1836
    %v1848 = vmul.f32 %v1801, %v1836
    %v1849 = vmul.f32 %v1802, %v1836
    %v1850 = vmul.f32 %v1803, %v1836
    %v1851 = vmul.f32 %v1804, %v1836
    %v1852 = vmul.f32 %v1805, %v1836
    %v1853 = vmul.f32 %v1806, %v1836
    %v1854 = vmul.f32 %v1807, %v1836
    %v1855 = vmul.f32 %v1808, %v1836
    %v1856 = vmul.f32 %v1809, %v1836
    %v1857 = vmul.f32 %v1810, %v1836
    %v1858 = vmul.f32 %v1811, %v1836
    %v1859 = vmul.f32 %v1812, %v1836
    %v1860 = vmul.f32 %v1813, %v1836
    %v1861 = vmul.f32 %v1814, %v1836
    %v1862 = vmul.f32 %v1815, %v1836
    %v1863 = vmul.f32 %v1816, %v1836
    %v1864 = vmul.f32 %v1817, %v1836
    %v1865 = vmul.f32 %v1818, %v1836
    %v1866 = vmul.f32 %v1819, %v1836
    %v1867 = vmul.f32 %v1820, %v1836
    %v1868 = vmul.f32 %v1821, %v1836
    %v1869 = vmul.f32 %v1822, %v1836
    %v1870 = vmul.f32 %v1823, %v1836
    %v1871 = vmul.f32 %v1824, %v1836
    %v1872 = vmul.f32 %v1825, %v1836
    %v1873 = vmul.f32 %v1826, %v1836
    %v1874 = vmul.f32 %v1827, %v1836
    %v1875 = vmul.f32 %v1828, %v1836
    %v1876 = vmul.f32 %v1829, %v1836
    %v1877 = vmul.f32 %v1830, %v1836
    %v1878 = vld [vmem:[%s8] sm:$0x1]
    %v1880 = vlaneseq
    %v1881 = vshrl.u32 %v1880, 7
    %v1882 = vsub.s32 0, %v1881
    %v1883 = vrot.slane %v1878, %v1882
    %v1885 = vadd.f32 %v1838, %v1883
    %v1886 = vadd.f32 %v1839, %v1883
    %v1887 = vadd.f32 %v1840, %v1883
    %v1888 = vadd.f32 %v1841, %v1883
    %v1889 = vadd.f32 %v1842, %v1883
    %v1890 = vadd.f32 %v1843, %v1883
    %v1891 = vadd.f32 %v1844, %v1883
    %v1892 = vadd.f32 %v1845, %v1883
    %v1893 = vadd.f32 %v1846, %v1883
    %v1894 = vadd.f32 %v1847, %v1883
    %v1895 = vadd.f32 %v1848, %v1883
    %v1896 = vadd.f32 %v1849, %v1883
    %v1897 = vadd.f32 %v1850, %v1883
    %v1898 = vadd.f32 %v1851, %v1883
    %v1899 = vadd.f32 %v1852, %v1883
    %v1900 = vadd.f32 %v1853, %v1883
    %v1901 = vadd.f32 %v1854, %v1883
    %v1902 = vadd.f32 %v1855, %v1883
    %v1903 = vadd.f32 %v1856, %v1883
    %v1904 = vadd.f32 %v1857, %v1883
    %v1905 = vadd.f32 %v1858, %v1883
    %v1906 = vadd.f32 %v1859, %v1883
    %v1907 = vadd.f32 %v1860, %v1883
    %v1908 = vadd.f32 %v1861, %v1883
    %v1909 = vadd.f32 %v1862, %v1883
    %v1910 = vadd.f32 %v1863, %v1883
    %v1911 = vadd.f32 %v1864, %v1883
    %v1912 = vadd.f32 %v1865, %v1883
    %v1913 = vadd.f32 %v1866, %v1883
    %v1914 = vadd.f32 %v1867, %v1883
    %v1915 = vadd.f32 %v1868, %v1883
    %v1916 = vadd.f32 %v1869, %v1883
    %v1917 = vadd.f32 %v1870, %v1883
    %v1918 = vadd.f32 %v1871, %v1883
    %v1919 = vadd.f32 %v1872, %v1883
    %v1920 = vadd.f32 %v1873, %v1883
    %v1921 = vadd.f32 %v1874, %v1883
    %v1922 = vadd.f32 %v1875, %v1883
    %v1923 = vadd.f32 %v1876, %v1883
    %v1924 = vadd.f32 %v1877, %v1883
    %v1925 = vpack.c.bf16 %v1885, %v1885
    %v1926 = vpack.c.bf16 %v1886, %v1886
    %v1927 = vpack.c.bf16 %v1887, %v1887
    %v1928 = vpack.c.bf16 %v1888, %v1888
    %v1929 = vpack.c.bf16 %v1889, %v1889
    %v1930 = vpack.c.bf16 %v1890, %v1890
    %v1931 = vpack.c.bf16 %v1891, %v1891
    %v1932 = vpack.c.bf16 %v1892, %v1892
    %v1933 = vpack.c.bf16 %v1893, %v1893
    %v1934 = vpack.c.bf16 %v1894, %v1894
    %v1935 = vpack.c.bf16 %v1895, %v1895
    %v1936 = vpack.c.bf16 %v1896, %v1896
    %v1937 = vpack.c.bf16 %v1897, %v1897
    %v1938 = vpack.c.bf16 %v1898, %v1898
    %v1939 = vpack.c.bf16 %v1899, %v1899
    %v1940 = vpack.c.bf16 %v1900, %v1900
    %v1941 = vpack.c.bf16 %v1901, %v1901
    %v1942 = vpack.c.bf16 %v1902, %v1902
    %v1943 = vpack.c.bf16 %v1903, %v1903
    %v1944 = vpack.c.bf16 %v1904, %v1904
    %v1945 = vpack.c.bf16 %v1905, %v1905
    %v1946 = vpack.c.bf16 %v1906, %v1906
    %v1947 = vpack.c.bf16 %v1907, %v1907
    %v1948 = vpack.c.bf16 %v1908, %v1908
    %v1949 = vpack.c.bf16 %v1909, %v1909
    %v1950 = vpack.c.bf16 %v1910, %v1910
    %v1951 = vpack.c.bf16 %v1911, %v1911
    %v1952 = vpack.c.bf16 %v1912, %v1912
    %v1953 = vpack.c.bf16 %v1913, %v1913
    %v1954 = vpack.c.bf16 %v1914, %v1914
    %v1955 = vpack.c.bf16 %v1915, %v1915
    %v1956 = vpack.c.bf16 %v1916, %v1916
    %v1957 = vpack.c.bf16 %v1917, %v1917
    %v1958 = vpack.c.bf16 %v1918, %v1918
    %v1959 = vpack.c.bf16 %v1919, %v1919
    %v1960 = vpack.c.bf16 %v1920, %v1920
    %v1961 = vpack.c.bf16 %v1921, %v1921
    %v1962 = vpack.c.bf16 %v1922, %v1922
    %v1963 = vpack.c.bf16 %v1923, %v1923
    %v1964 = vpack.c.bf16 %v1924, %v1924
    %v1965 = vld [vmem:[%s9] sm:$0xff]
    %v1966 = vld [vmem:[%s9 + $0x8] sm:$0xff]
    %v1967 = vld [vmem:[%s9 + $0x10] sm:$0xff]
    %v1968 = vld [vmem:[%s9 + $0x18] sm:$0xff]
    %v1969 = vld [vmem:[%s9 + $0x20] sm:$0xff]
    %v1970 = vld [vmem:[%s9 + $0x28] sm:$0xff]
    %v1971 = vld [vmem:[%s9 + $0x30] sm:$0xff]
    %v1972 = vld [vmem:[%s9 + $0x38] sm:$0xff]
    %v1973 = vld [vmem:[%s9 + $0x40] sm:$0xff]
    %v1974 = vld [vmem:[%s9 + $0x48] sm:$0xff]
    %v1975 = vld [vmem:[%s9 + $0x50] sm:$0xff]
    %v1976 = vld [vmem:[%s9 + $0x58] sm:$0xff]
    %v1977 = vld [vmem:[%s9 + $0x60] sm:$0xff]
    %v1978 = vld [vmem:[%s9 + $0x68] sm:$0xff]
    %v1979 = vld [vmem:[%s9 + $0x70] sm:$0xff]
    %v1980 = vld [vmem:[%s9 + $0x78] sm:$0xff]
    %v1981 = vpack.c.bf16 %v1966, %v1965
    %v1982 = vpack.c.bf16 %v1968, %v1967
    %v1983 = vpack.c.bf16 %v1970, %v1969
    %v1984 = vpack.c.bf16 %v1972, %v1971
    %v1985 = vpack.c.bf16 %v1974, %v1973
    %v1986 = vpack.c.bf16 %v1976, %v1975
    %v1987 = vpack.c.bf16 %v1978, %v1977
    %v1988 = vpack.c.bf16 %v1980, %v1979
    %v2029 = vunpack.c.l.b16 %v1925
    %v2030 = vunpack.c.l.b16 %v1926
    %v2031 = vunpack.c.l.b16 %v1927
    %v2032 = vunpack.c.l.b16 %v1928
    %v2033 = vunpack.c.l.b16 %v1929
    %v2034 = vunpack.c.l.b16 %v1930
    %v2035 = vunpack.c.l.b16 %v1931
    %v2036 = vunpack.c.l.b16 %v1932
    %v2037 = vunpack.c.l.b16 %v1933
    %v2038 = vunpack.c.l.b16 %v1934
    %v2039 = vunpack.c.l.b16 %v1935
    %v2040 = vunpack.c.l.b16 %v1936
    %v2041 = vunpack.c.l.b16 %v1937
    %v2042 = vunpack.c.l.b16 %v1938
    %v2043 = vunpack.c.l.b16 %v1939
    %v2044 = vunpack.c.l.b16 %v1940
    %v2045 = vunpack.c.l.b16 %v1941
    %v2046 = vunpack.c.l.b16 %v1942
    %v2047 = vunpack.c.l.b16 %v1943
    %v2048 = vunpack.c.l.b16 %v1944
    %v2049 = vunpack.c.l.b16 %v1945
    %v2050 = vunpack.c.l.b16 %v1946
    %v2051 = vunpack.c.l.b16 %v1947
    %v2052 = vunpack.c.l.b16 %v1948
    %v2053 = vunpack.c.l.b16 %v1949
    %v2054 = vunpack.c.l.b16 %v1950
    %v2055 = vunpack.c.l.b16 %v1951
    %v2056 = vunpack.c.l.b16 %v1952
    %v2057 = vunpack.c.l.b16 %v1953
    %v2058 = vunpack.c.l.b16 %v1954
    %v2059 = vunpack.c.l.b16 %v1955
    %v2060 = vunpack.c.l.b16 %v1956
    %v2061 = vunpack.c.l.b16 %v1957
    %v2062 = vunpack.c.l.b16 %v1958
    %v2063 = vunpack.c.l.b16 %v1959
    %v2064 = vunpack.c.l.b16 %v1960
    %v2065 = vunpack.c.l.b16 %v1961
    %v2066 = vunpack.c.l.b16 %v1962
    %v2067 = vunpack.c.l.b16 %v1963
    %v2068 = vunpack.c.l.b16 %v1964
    %v2069 = vrot.slane %v2030, 7
    %v2070 = vsel %vm153, %v2069, %v2029
    %v2071 = vrot.slane %v2031, 6
    %v2072 = vsel %vm155, %v2071, %v2070
    %v2073 = vrot.slane %v2032, 5
    %v2074 = vsel %vm157, %v2073, %v2072
    %v2075 = vrot.slane %v2033, 4
    %v2076 = vsel %vm159, %v2075, %v2074
    %v2077 = vrot.slane %v2034, 3
    %v2078 = vsel %vm161, %v2077, %v2076
    %v2079 = vrot.slane %v2035, 2
    %v2080 = vsel %vm163, %v2079, %v2078
    %v2081 = vrot.slane %v2036, 1
    %v2082 = vsel %vm165, %v2081, %v2080
    %v2083 = vrot.slane %v2038, 7
    %v2084 = vsel %vm153, %v2083, %v2037
    %v2085 = vrot.slane %v2039, 6
    %v2086 = vsel %vm155, %v2085, %v2084
    %v2087 = vrot.slane %v2040, 5
    %v2088 = vsel %vm157, %v2087, %v2086
    %v2089 = vrot.slane %v2041, 4
    %v2090 = vsel %vm159, %v2089, %v2088
    %v2091 = vrot.slane %v2042, 3
    %v2092 = vsel %vm161, %v2091, %v2090
    %v2093 = vrot.slane %v2043, 2
    %v2094 = vsel %vm163, %v2093, %v2092
    %v2095 = vrot.slane %v2044, 1
    %v2096 = vsel %vm165, %v2095, %v2094
    %v2097 = vrot.slane %v2046, 7
    %v2098 = vsel %vm153, %v2097, %v2045
    %v2099 = vrot.slane %v2047, 6
    %v2100 = vsel %vm155, %v2099, %v2098
    %v2101 = vrot.slane %v2048, 5
    %v2102 = vsel %vm157, %v2101, %v2100
    %v2103 = vrot.slane %v2049, 4
    %v2104 = vsel %vm159, %v2103, %v2102
    %v2105 = vrot.slane %v2050, 3
    %v2106 = vsel %vm161, %v2105, %v2104
    %v2107 = vrot.slane %v2051, 2
    %v2108 = vsel %vm163, %v2107, %v2106
    %v2109 = vrot.slane %v2052, 1
    %v2110 = vsel %vm165, %v2109, %v2108
    %v2111 = vrot.slane %v2054, 7
    %v2112 = vsel %vm153, %v2111, %v2053
    %v2113 = vrot.slane %v2055, 6
    %v2114 = vsel %vm155, %v2113, %v2112
    %v2115 = vrot.slane %v2056, 5
    %v2116 = vsel %vm157, %v2115, %v2114
    %v2117 = vrot.slane %v2057, 4
    %v2118 = vsel %vm159, %v2117, %v2116
    %v2119 = vrot.slane %v2058, 3
    %v2120 = vsel %vm161, %v2119, %v2118
    %v2121 = vrot.slane %v2059, 2
    %v2122 = vsel %vm163, %v2121, %v2120
    %v2123 = vrot.slane %v2060, 1
    %v2124 = vsel %vm165, %v2123, %v2122
    %v2125 = vrot.slane %v2062, 7
    %v2126 = vsel %vm153, %v2125, %v2061
    %v2127 = vrot.slane %v2063, 6
    %v2128 = vsel %vm155, %v2127, %v2126
    %v2129 = vrot.slane %v2064, 5
    %v2130 = vsel %vm157, %v2129, %v2128
    %v2131 = vrot.slane %v2065, 4
    %v2132 = vsel %vm159, %v2131, %v2130
    %v2133 = vrot.slane %v2066, 3
    %v2134 = vsel %vm161, %v2133, %v2132
    %v2135 = vrot.slane %v2067, 2
    %v2136 = vsel %vm163, %v2135, %v2134
    %v2137 = vrot.slane %v2068, 1
    %v2138 = vsel %vm165, %v2137, %v2136
    %v2139 = vpack.c.b16 %v2096, %v2082
    %v2140 = vpack.c.b16 %v2124, %v2110
    %v2141 = vpack.c.b16 %v2138, %v2138
    %2145 = vmatprep.subr.bf16.mxu0 0
    %2146 = vmatpush1.bf16.msra.mxu0 %v1981
    %2147 = vmatprep.subr.bf16.mxu0 0
    %2148 = vmatpush1.bf16.msra.mxu0 %v1982
    %2149 = vmatprep.subr.bf16.mxu0 0
    %2150 = vmatpush1.bf16.msra.mxu0 %v1983
    %2151 = vmatprep.subr.bf16.mxu0 0
    %2152 = vmatpush1.bf16.msra.mxu0 %v1984
    %2153 = vmatprep.subr.bf16.mxu0 0
    %2154 = vmatpush1.bf16.msra.mxu0 %v1985
    %2155 = vmatprep.subr.bf16.mxu0 0
    %2156 = vmatpush1.bf16.msra.mxu0 %v1986
    %2157 = vmatprep.subr.bf16.mxu0 0
    %2158 = vmatpush1.bf16.msra.mxu0 %v1987
    %2159 = vmatprep.subr.bf16.mxu0 0
    %2160 = vmatpush1.bf16.msra.mxu0 %v1988
    %2161 = vmatprep.subr.bf16.mxu0 0
    %2162 = vmatpush1.bf16.msra.mxu0 0
    %2163 = vmatprep.subr.bf16.mxu0 0
    %2164 = vmatpush1.bf16.msra.mxu0 0
    %2165 = vmatprep.subr.bf16.mxu0 0
    %2166 = vmatpush1.bf16.msra.mxu0 0
    %2167 = vmatprep.subr.bf16.mxu0 0
    %2168 = vmatpush1.bf16.msra.mxu0 0
    %2169 = vmatprep.subr.bf16.mxu0 0
    %2170 = vmatpush1.bf16.msra.mxu0 0
    %2171 = vmatprep.subr.bf16.mxu0 0
    %2172 = vmatpush1.bf16.msra.mxu0 0
    %2173 = vmatprep.subr.bf16.mxu0 0
    %2174 = vmatpush1.bf16.msra.mxu0 0
    %2175 = vmatprep.subr.bf16.mxu0 0
    %2176 = vmatpush1.bf16.msra.mxu0 0
    %2177 = vmatprep.mubr.bf16.mxu0 0
    %2178 = vmatmul.mubr.bf16.gmra.mrb[0].mxu0 %v2139
    %v2179 = vpop.f32.mrb[0].mxu0
    %v2180 = vadd.f32 0.0, %v2179
    %v2181 = vpop.f32.mrb[0].mxu0
    %v2182 = vpop.f32.mrb[0].mxu0
    %v2183 = vadd.f32 0.0, %v2182
    %v2184 = vpop.f32.mrb[0].mxu0
    %2185 = vmatprep.mubr.bf16.mxu0 0
    %2186 = vmatmul.mubr.bf16.gmra.mrb[0].mxu0 %v2140
    %v2187 = vpop.f32.mrb[0].mxu0
    %v2188 = vadd.f32 0.0, %v2187
    %v2189 = vpop.f32.mrb[0].mxu0
    %v2190 = vpop.f32.mrb[0].mxu0
    %v2191 = vadd.f32 0.0, %v2190
    %v2192 = vpop.f32.mrb[0].mxu0
    %2193 = vmatprep.mubr.bf16.mxu0 0
    %2194 = vmatmul.mubr.bf16.gmra.mrb[0].mxu0 %v2141
    %v2195 = vpop.f32.mrb[0].mxu0
    %v2196 = vadd.f32 0.0, %v2195
    %v2197 = vpop.f32.mrb[0].mxu0
    %v2198 = vpop.f32.mrb[0].mxu0
    %v2199 = vpop.f32.mrb[0].mxu0
    %2200 = vdwg.mxu0
    %v2206 = vcombine.high %v2180, %v2180
    %v2208 = vunpack.c.l.s4 1966171168
    %v2209 = vunpack.c.0.s8 %v2208
    %v2210 = vlaneseq
    %v2211 = vshrl.u32 %v2210, 7
    %v2212 = vsub.s32 %v2209, %v2211
    %v2213 = vrot.slane %v2180, %v2212
    %v2215 = vunpack.c.l.s4 1966171168
    %v2216 = vunpack.c.0.s8 %v2215
    %v2217 = vlaneseq
    %v2218 = vshrl.u32 %v2217, 7
    %v2219 = vsub.s32 %v2216, %v2218
    %v2220 = vrot.slane %v2206, %v2219
    %v2221 = vcombine.high %v2213, %v2213
    %v2222 = vcombine.high %v2220, %v2220
    %v2224 = vunpack.c.l.s4 1966171168
    %v2225 = vunpack.c.0.s8 %v2224
    %v2226 = vlaneseq
    %v2227 = vshrl.u32 %v2226, 7
    %v2228 = vsub.s32 %v2225, %v2227
    %v2229 = vrot.slane %v2213, %v2228
    %v2231 = vunpack.c.l.s4 1966171168
    %v2232 = vunpack.c.0.s8 %v2231
    %v2233 = vlaneseq
    %v2234 = vshrl.u32 %v2233, 7
    %v2235 = vsub.s32 %v2232, %v2234
    %v2236 = vrot.slane %v2220, %v2235
    %v2238 = vunpack.c.l.s4 1966171168
    %v2239 = vunpack.c.0.s8 %v2238
    %v2240 = vlaneseq
    %v2241 = vshrl.u32 %v2240, 7
    %v2242 = vsub.s32 %v2239, %v2241
    %v2243 = vrot.slane %v2221, %v2242
    %v2245 = vunpack.c.l.s4 1966171168
    %v2246 = vunpack.c.0.s8 %v2245
    %v2247 = vlaneseq
    %v2248 = vshrl.u32 %v2247, 7
    %v2249 = vsub.s32 %v2246, %v2248
    %v2250 = vrot.slane %v2222, %v2249
    %v2251 = vcombine.high %v2229, %v2229
    %v2252 = vcombine.high %v2236, %v2236
    %v2253 = vcombine.high %v2243, %v2243
    %v2254 = vcombine.high %v2250, %v2250
    %v2255 = vcombine.high %v2183, %v2183
    %v2257 = vunpack.c.l.s4 1966171168
    %v2258 = vunpack.c.0.s8 %v2257
    %v2259 = vlaneseq
    %v2260 = vshrl.u32 %v2259, 7
    %v2261 = vsub.s32 %v2258, %v2260
    %v2262 = vrot.slane %v2183, %v2261
    %v2264 = vunpack.c.l.s4 1966171168
    %v2265 = vunpack.c.0.s8 %v2264
    %v2266 = vlaneseq
    %v2267 = vshrl.u32 %v2266, 7
    %v2268 = vsub.s32 %v2265, %v2267
    %v2269 = vrot.slane %v2255, %v2268
    %v2270 = vcombine.high %v2262, %v2262
    %v2271 = vcombine.high %v2269, %v2269
    %v2273 = vunpack.c.l.s4 1966171168
    %v2274 = vunpack.c.0.s8 %v2273
    %v2275 = vlaneseq
    %v2276 = vshrl.u32 %v2275, 7
    %v2277 = vsub.s32 %v2274, %v2276
    %v2278 = vrot.slane %v2262, %v2277
    %v2280 = vunpack.c.l.s4 1966171168
    %v2281 = vunpack.c.0.s8 %v2280
    %v2282 = vlaneseq
    %v2283 = vshrl.u32 %v2282, 7
    %v2284 = vsub.s32 %v2281, %v2283
    %v2285 = vrot.slane %v2269, %v2284
    %v2287 = vunpack.c.l.s4 1966171168
    %v2288 = vunpack.c.0.s8 %v2287
    %v2289 = vlaneseq
    %v2290 = vshrl.u32 %v2289, 7
    %v2291 = vsub.s32 %v2288, %v2290
    %v2292 = vrot.slane %v2270, %v2291
    %v2294 = vunpack.c.l.s4 1966171168
    %v2295 = vunpack.c.0.s8 %v2294
    %v2296 = vlaneseq
    %v2297 = vshrl.u32 %v2296, 7
    %v2298 = vsub.s32 %v2295, %v2297
    %v2299 = vrot.slane %v2271, %v2298
    %v2300 = vcombine.high %v2278, %v2278
    %v2301 = vcombine.high %v2285, %v2285
    %v2302 = vcombine.high %v2292, %v2292
    %v2303 = vcombine.high %v2299, %v2299
    %v2304 = vcombine.high %v2188, %v2188
    %v2306 = vunpack.c.l.s4 1966171168
    %v2307 = vunpack.c.0.s8 %v2306
    %v2308 = vlaneseq
    %v2309 = vshrl.u32 %v2308, 7
    %v2310 = vsub.s32 %v2307, %v2309
    %v2311 = vrot.slane %v2188, %v2310
    %v2313 = vunpack.c.l.s4 1966171168
    %v2314 = vunpack.c.0.s8 %v2313
    %v2315 = vlaneseq
    %v2316 = vshrl.u32 %v2315, 7
    %v2317 = vsub.s32 %v2314, %v2316
    %v2318 = vrot.slane %v2304, %v2317
    %v2319 = vcombine.high %v2311, %v2311
    %v2320 = vcombine.high %v2318, %v2318
    %v2322 = vunpack.c.l.s4 1966171168
    %v2323 = vunpack.c.0.s8 %v2322
    %v2324 = vlaneseq
    %v2325 = vshrl.u32 %v2324, 7
    %v2326 = vsub.s32 %v2323, %v2325
    %v2327 = vrot.slane %v2311, %v2326
    %v2329 = vunpack.c.l.s4 1966171168
    %v2330 = vunpack.c.0.s8 %v2329
    %v2331 = vlaneseq
    %v2332 = vshrl.u32 %v2331, 7
    %v2333 = vsub.s32 %v2330, %v2332
    %v2334 = vrot.slane %v2318, %v2333
    %v2336 = vunpack.c.l.s4 1966171168
    %v2337 = vunpack.c.0.s8 %v2336
    %v2338 = vlaneseq
    %v2339 = vshrl.u32 %v2338, 7
    %v2340 = vsub.s32 %v2337, %v2339
    %v2341 = vrot.slane %v2319, %v2340
    %v2343 = vunpack.c.l.s4 1966171168
    %v2344 = vunpack.c.0.s8 %v2343
    %v2345 = vlaneseq
    %v2346 = vshrl.u32 %v2345, 7
    %v2347 = vsub.s32 %v2344, %v2346
    %v2348 = vrot.slane %v2320, %v2347
    %v2349 = vcombine.high %v2327, %v2327
    %v2350 = vcombine.high %v2334, %v2334
    %v2351 = vcombine.high %v2341, %v2341
    %v2352 = vcombine.high %v2348, %v2348
    %v2353 = vcombine.high %v2191, %v2191
    %v2355 = vunpack.c.l.s4 1966171168
    %v2356 = vunpack.c.0.s8 %v2355
    %v2357 = vlaneseq
    %v2358 = vshrl.u32 %v2357, 7
    %v2359 = vsub.s32 %v2356, %v2358
    %v2360 = vrot.slane %v2191, %v2359
    %v2362 = vunpack.c.l.s4 1966171168
    %v2363 = vunpack.c.0.s8 %v2362
    %v2364 = vlaneseq
    %v2365 = vshrl.u32 %v2364, 7
    %v2366 = vsub.s32 %v2363, %v2365
    %v2367 = vrot.slane %v2353, %v2366
    %v2368 = vcombine.high %v2360, %v2360
    %v2369 = vcombine.high %v2367, %v2367
    %v2371 = vunpack.c.l.s4 1966171168
    %v2372 = vunpack.c.0.s8 %v2371
    %v2373 = vlaneseq
    %v2374 = vshrl.u32 %v2373, 7
    %v2375 = vsub.s32 %v2372, %v2374
    %v2376 = vrot.slane %v2360, %v2375
    %v2378 = vunpack.c.l.s4 1966171168
    %v2379 = vunpack.c.0.s8 %v2378
    %v2380 = vlaneseq
    %v2381 = vshrl.u32 %v2380, 7
    %v2382 = vsub.s32 %v2379, %v2381
    %v2383 = vrot.slane %v2367, %v2382
    %v2385 = vunpack.c.l.s4 1966171168
    %v2386 = vunpack.c.0.s8 %v2385
    %v2387 = vlaneseq
    %v2388 = vshrl.u32 %v2387, 7
    %v2389 = vsub.s32 %v2386, %v2388
    %v2390 = vrot.slane %v2368, %v2389
    %v2392 = vunpack.c.l.s4 1966171168
    %v2393 = vunpack.c.0.s8 %v2392
    %v2394 = vlaneseq
    %v2395 = vshrl.u32 %v2394, 7
    %v2396 = vsub.s32 %v2393, %v2395
    %v2397 = vrot.slane %v2369, %v2396
    %v2398 = vcombine.high %v2376, %v2376
    %v2399 = vcombine.high %v2383, %v2383
    %v2400 = vcombine.high %v2390, %v2390
    %v2401 = vcombine.high %v2397, %v2397
    %v2402 = vcombine.high %v2196, %v2196
    %v2404 = vunpack.c.l.s4 1966171168
    %v2405 = vunpack.c.0.s8 %v2404
    %v2406 = vlaneseq
    %v2407 = vshrl.u32 %v2406, 7
    %v2408 = vsub.s32 %v2405, %v2407
    %v2409 = vrot.slane %v2196, %v2408
    %v2411 = vunpack.c.l.s4 1966171168
    %v2412 = vunpack.c.0.s8 %v2411
    %v2413 = vlaneseq
    %v2414 = vshrl.u32 %v2413, 7
    %v2415 = vsub.s32 %v2412, %v2414
    %v2416 = vrot.slane %v2402, %v2415
    %v2417 = vcombine.high %v2409, %v2409
    %v2418 = vcombine.high %v2416, %v2416
    %v2420 = vunpack.c.l.s4 1966171168
    %v2421 = vunpack.c.0.s8 %v2420
    %v2422 = vlaneseq
    %v2423 = vshrl.u32 %v2422, 7
    %v2424 = vsub.s32 %v2421, %v2423
    %v2425 = vrot.slane %v2409, %v2424
    %v2427 = vunpack.c.l.s4 1966171168
    %v2428 = vunpack.c.0.s8 %v2427
    %v2429 = vlaneseq
    %v2430 = vshrl.u32 %v2429, 7
    %v2431 = vsub.s32 %v2428, %v2430
    %v2432 = vrot.slane %v2416, %v2431
    %v2434 = vunpack.c.l.s4 1966171168
    %v2435 = vunpack.c.0.s8 %v2434
    %v2436 = vlaneseq
    %v2437 = vshrl.u32 %v2436, 7
    %v2438 = vsub.s32 %v2435, %v2437
    %v2439 = vrot.slane %v2417, %v2438
    %v2441 = vunpack.c.l.s4 1966171168
    %v2442 = vunpack.c.0.s8 %v2441
    %v2443 = vlaneseq
    %v2444 = vshrl.u32 %v2443, 7
    %v2445 = vsub.s32 %v2442, %v2444
    %v2446 = vrot.slane %v2418, %v2445
    %v2447 = vcombine.high %v2425, %v2425
    %v2448 = vcombine.high %v2432, %v2432
    %v2449 = vcombine.high %v2439, %v2439
    %v2450 = vcombine.high %v2446, %v2446
    %v2491 = vld [vmem:[%s10] sm:$0xff]
    %v2492 = vld [vmem:[%s10 + $0x8] sm:$0xff]
    %v2493 = vld [vmem:[%s10 + $0x10] sm:$0xff]
    %v2494 = vld [vmem:[%s10 + $0x18] sm:$0xff]
    %v2495 = vld [vmem:[%s10 + $0x20] sm:$0xff]
    %v2496 = vld [vmem:[%s10 + $0x28] sm:$0xff]
    %v2497 = vld [vmem:[%s10 + $0x30] sm:$0xff]
    %v2498 = vld [vmem:[%s10 + $0x38] sm:$0xff]
    %v2499 = vpack.c.bf16 %v2493, %v2491
    %v2500 = vpack.c.bf16 %v2494, %v2492
    %v2501 = vpack.c.bf16 %v2497, %v2495
    %v2502 = vpack.c.bf16 %v2498, %v2496
    %v2503 = vld [vmem:[%s11] sm:$0xff]
    %v2504 = vld [vmem:[%s11 + $0x8] sm:$0xff]
    %v2505 = vld [vmem:[%s11 + $0x10] sm:$0xff]
    %v2506 = vld [vmem:[%s11 + $0x18] sm:$0xff]
    %v2507 = vld [vmem:[%s11 + $0x20] sm:$0xff]
    %v2508 = vld [vmem:[%s11 + $0x28] sm:$0xff]
    %v2509 = vld [vmem:[%s11 + $0x30] sm:$0xff]
    %v2510 = vld [vmem:[%s11 + $0x38] sm:$0xff]
    %v2511 = vld [vmem:[%s11 + $0x40] sm:$0xff]
    %v2512 = vld [vmem:[%s11 + $0x48] sm:$0xff]
    %v2513 = vld [vmem:[%s11 + $0x50] sm:$0xff]
    %v2514 = vld [vmem:[%s11 + $0x58] sm:$0xff]
    %v2515 = vld [vmem:[%s11 + $0x60] sm:$0xff]
    %v2516 = vld [vmem:[%s11 + $0x68] sm:$0xff]
    %v2517 = vld [vmem:[%s11 + $0x70] sm:$0xff]
    %v2518 = vld [vmem:[%s11 + $0x78] sm:$0xff]
    %v2519 = vld [vmem:[%s11 + $0x80] sm:$0xff]
    %v2520 = vld [vmem:[%s11 + $0x88] sm:$0xff]
    %v2521 = vld [vmem:[%s11 + $0x90] sm:$0xff]
    %v2522 = vld [vmem:[%s11 + $0x98] sm:$0xff]
    %v2523 = vld [vmem:[%s11 + $0xa0] sm:$0xff]
    %v2524 = vld [vmem:[%s11 + $0xa8] sm:$0xff]
    %v2525 = vld [vmem:[%s11 + $0xb0] sm:$0xff]
    %v2526 = vld [vmem:[%s11 + $0xb8] sm:$0xff]
    %v2527 = vpack.c.bf16 %v2504, %v2503
    %v2528 = vpack.c.bf16 %v2506, %v2505
    %v2529 = vpack.c.bf16 %v2508, %v2507
    %v2530 = vpack.c.bf16 %v2510, %v2509
    %v2531 = vpack.c.bf16 %v2512, %v2511
    %v2532 = vpack.c.bf16 %v2514, %v2513
    %v2533 = vpack.c.bf16 %v2516, %v2515
    %v2534 = vpack.c.bf16 %v2518, %v2517
    %v2535 = vpack.c.bf16 %v2520, %v2519
    %v2536 = vpack.c.bf16 %v2522, %v2521
    %v2537 = vpack.c.bf16 %v2524, %v2523
    %v2538 = vpack.c.bf16 %v2526, %v2525
    %vm2539 = vcmask 523264
    %v2541 = vsel %vm2539, %v2500, 0
    %v2544 = vsel %vm2539, %v2502, 0
    %2546 = vmatprep.subr.bf16.mxu0 0
    %2547 = vmatpush1.bf16.msra.mxu0 %v2527
    %2548 = vmatprep.subr.bf16.mxu0 0
    %2549 = vmatpush1.bf16.msra.mxu0 %v2528
    %2550 = vmatprep.subr.bf16.mxu0 0
    %2551 = vmatpush1.bf16.msra.mxu0 %v2529
    %2552 = vmatprep.subr.bf16.mxu0 0
    %2553 = vmatpush1.bf16.msra.mxu0 %v2530
    %2554 = vmatprep.subr.bf16.mxu0 0
    %2555 = vmatpush1.bf16.msra.mxu0 %v2531
    %2556 = vmatprep.subr.bf16.mxu0 0
    %2557 = vmatpush1.bf16.msra.mxu0 %v2532
    %2558 = vmatprep.subr.bf16.mxu0 0
    %2559 = vmatpush1.bf16.msra.mxu0 %v2533
    %2560 = vmatprep.subr.bf16.mxu0 0
    %2561 = vmatpush1.bf16.msra.mxu0 %v2534
    %2562 = vmatprep.subr.bf16.mxu0 0
    %2563 = vmatpush1.bf16.msra.mxu0 %v2535
    %2564 = vmatprep.subr.bf16.mxu0 0
    %2565 = vmatpush1.bf16.msra.mxu0 %v2536
    %2566 = vmatprep.subr.bf16.mxu0 0
    %2567 = vmatpush1.bf16.msra.mxu0 %v2537
    %2568 = vmatprep.subr.bf16.mxu0 0
    %2569 = vmatpush1.bf16.msra.mxu0 %v2538
    %2570 = vmatprep.subr.bf16.mxu0 0
    %2571 = vmatpush1.bf16.msra.mxu0 0
    %2572 = vmatprep.subr.bf16.mxu0 0
    %2573 = vmatpush1.bf16.msra.mxu0 0
    %2574 = vmatprep.subr.bf16.mxu0 0
    %2575 = vmatpush1.bf16.msra.mxu0 0
    %2576 = vmatprep.subr.bf16.mxu0 0
    %2577 = vmatpush1.bf16.msra.mxu0 0
    %2578 = vmatprep.mubr.bf16.mxu0 %v2541
    %2579 = vmatmul.mubr.bf16.gmra.mrb[0].mxu0 %v2499
    %v2580 = vpop.f32.mrb[0].mxu0
    %v2581 = vadd.f32 0.0, %v2580
    %v2582 = vpop.f32.mrb[0].mxu0
    %v2583 = vpop.f32.mrb[0].mxu0
    %v2584 = vadd.f32 0.0, %v2583
    %v2585 = vpop.f32.mrb[0].mxu0
    %2586 = vmatprep.mubr.bf16.mxu0 %v2544
    %2587 = vmatmul.mubr.bf16.gmra.mrb[0].mxu0 %v2501
    %v2588 = vpop.f32.mrb[0].mxu0
    %v2589 = vadd.f32 0.0, %v2588
    %v2590 = vpop.f32.mrb[0].mxu0
    %v2591 = vpop.f32.mrb[0].mxu0
    %v2592 = vadd.f32 0.0, %v2591
    %v2593 = vpop.f32.mrb[0].mxu0
    %2594 = vdwg.mxu0
    %v2595 = vadd.f32 %v2581, %v2584
    %v2596 = vrot.slane %v2595, 4
    %v2597 = vadd.f32 %v2595, %v2596
    %v2598 = vrot.slane %v2597, 2
    %v2599 = vadd.f32 %v2597, %v2598
    %v2600 = vrot.slane %v2599, 1
    %v2601 = vadd.f32 %v2599, %v2600
    %v2602 = vadd.f32 %v2589, %v2592
    %v2603 = vrot.slane %v2602, 4
    %v2604 = vadd.f32 %v2602, %v2603
    %v2605 = vrot.slane %v2604, 2
    %v2606 = vadd.f32 %v2604, %v2605
    %v2607 = vrot.slane %v2606, 1
    %v2608 = vadd.f32 %v2606, %v2607
    %v2609 = vmul.f32 %v2601, %v328
    %v2610 = vmul.f32 %v2608, %v328
    %v2611 = vpack.c.bf16 %v2609, %v2609
    %v2612 = vpack.c.bf16 %v2610, %v2610
    %v2613 = vld [vmem:[%s12] sm:$0xff]
    %v2614 = vld [vmem:[%s12 + $0x8] sm:$0xff]
    %v2615 = vld [vmem:[%s12 + $0x10] sm:$0xff]
    %v2616 = vld [vmem:[%s12 + $0x18] sm:$0xff]
    %v2617 = vld [vmem:[%s12 + $0x20] sm:$0xff]
    %v2618 = vld [vmem:[%s12 + $0x28] sm:$0xff]
    %v2619 = vld [vmem:[%s12 + $0x30] sm:$0xff]
    %v2620 = vld [vmem:[%s12 + $0x38] sm:$0xff]
    %v2621 = vld [vmem:[%s12 + $0x40] sm:$0xff]
    %v2622 = vld [vmem:[%s12 + $0x48] sm:$0xff]
    %v2623 = vld [vmem:[%s12 + $0x50] sm:$0xff]
    %v2624 = vld [vmem:[%s12 + $0x58] sm:$0xff]
    %v2625 = vld [vmem:[%s12 + $0x60] sm:$0xff]
    %v2626 = vld [vmem:[%s12 + $0x68] sm:$0xff]
    %v2627 = vld [vmem:[%s12 + $0x70] sm:$0xff]
    %v2628 = vld [vmem:[%s12 + $0x78] sm:$0xff]
    %v2629 = vpack.c.bf16 %v2614, %v2613
    %v2630 = vpack.c.bf16 %v2616, %v2615
    %v2631 = vpack.c.bf16 %v2618, %v2617
    %v2632 = vpack.c.bf16 %v2620, %v2619
    %v2633 = vpack.c.bf16 %v2622, %v2621
    %v2634 = vpack.c.bf16 %v2624, %v2623
    %v2635 = vpack.c.bf16 %v2626, %v2625
    %v2636 = vpack.c.bf16 %v2628, %v2627
    %v2639 = vunpack.c.l.b16 %v2611
    %v2640 = vunpack.c.l.b16 %v2612
    %v2641 = vsel %vm153, %v2640, %v2639
    %v2642 = vpack.c.b16 %v2641, %v2641
    %2644 = vmatprep.subr.bf16.mxu0 0
    %2645 = vmatpush1.bf16.msra.mxu0 %v2629
    %2646 = vmatprep.subr.bf16.mxu0 0
    %2647 = vmatpush1.bf16.msra.mxu0 %v2630
    %2648 = vmatprep.subr.bf16.mxu0 0
    %2649 = vmatpush1.bf16.msra.mxu0 %v2631
    %2650 = vmatprep.subr.bf16.mxu0 0
    %2651 = vmatpush1.bf16.msra.mxu0 %v2632
    %2652 = vmatprep.subr.bf16.mxu0 0
    %2653 = vmatpush1.bf16.msra.mxu0 %v2633
    %2654 = vmatprep.subr.bf16.mxu0 0
    %2655 = vmatpush1.bf16.msra.mxu0 %v2634
    %2656 = vmatprep.subr.bf16.mxu0 0
    %2657 = vmatpush1.bf16.msra.mxu0 %v2635
    %2658 = vmatprep.subr.bf16.mxu0 0
    %2659 = vmatpush1.bf16.msra.mxu0 %v2636
    %2660 = vmatprep.subr.bf16.mxu0 0
    %2661 = vmatpush1.bf16.msra.mxu0 0
    %2662 = vmatprep.subr.bf16.mxu0 0
    %2663 = vmatpush1.bf16.msra.mxu0 0
    %2664 = vmatprep.subr.bf16.mxu0 0
    %2665 = vmatpush1.bf16.msra.mxu0 0
    %2666 = vmatprep.subr.bf16.mxu0 0
    %2667 = vmatpush1.bf16.msra.mxu0 0
    %2668 = vmatprep.subr.bf16.mxu0 0
    %2669 = vmatpush1.bf16.msra.mxu0 0
    %2670 = vmatprep.subr.bf16.mxu0 0
    %2671 = vmatpush1.bf16.msra.mxu0 0
    %2672 = vmatprep.subr.bf16.mxu0 0
    %2673 = vmatpush1.bf16.msra.mxu0 0
    %2674 = vmatprep.subr.bf16.mxu0 0
    %2675 = vmatpush1.bf16.msra.mxu0 0
    %2676 = vmatprep.mubr.bf16.mxu0 0
    %2677 = vmatmul.mubr.bf16.gmra.mrb[0].mxu0 %v2642
    %v2678 = vpop.f32.mrb[0].mxu0
    %v2679 = vadd.f32 0.0, %v2678
    %v2680 = vpop.f32.mrb[0].mxu0
    %v2681 = vpop.f32.mrb[0].mxu0
    %v2682 = vpop.f32.mrb[0].mxu0
    %2683 = vdwg.mxu0
    %v2684 = vmul.f32 %v2679, %v2679
    %vm2685 = vcmask 1041408
    %v2686 = vsel %vm2685, %v2684, 0.0
    %2687 = vadd.xlane.f32.xlu0 %v2686
    %v2688 = vpop.xlane.xlu0 %2687
    %v2689 = vrsqrt.pop %v2688
    %v2690 = vmul.f32 %v2688, %v2689
    %vm2691 = vcmp.eq.f32.partialorder %v2688, inf
    %v2692 = vsel %vm2691, %v2688, %v2690
    %vm2693 = vcmp.eq.f32.partialorder %v2688, 0.0
    %v2694 = vand.u32 %v2688, 2147483648
    %v2695 = vsel %vm2693, %v2694, %v2692
    %v2696 = vmax.f32 %v2695, 1e-12
    %v2697 = vrcp.pop %v2696
    %v2698 = vmul.f32 %v2679, %v2697
    %v2699 = vmul.f32 %v2229, %v2229
    %v2700 = vmul.f32 %v2243, %v2243
    %v2701 = vmul.f32 %v2251, %v2251
    %v2702 = vmul.f32 %v2253, %v2253
    %v2703 = vmul.f32 %v2236, %v2236
    %v2704 = vmul.f32 %v2250, %v2250
    %v2705 = vmul.f32 %v2252, %v2252
    %v2706 = vmul.f32 %v2254, %v2254
    %v2707 = vmul.f32 %v2278, %v2278
    %v2708 = vmul.f32 %v2292, %v2292
    %v2709 = vmul.f32 %v2300, %v2300
    %v2710 = vmul.f32 %v2302, %v2302
    %v2711 = vmul.f32 %v2285, %v2285
    %v2712 = vmul.f32 %v2299, %v2299
    %v2713 = vmul.f32 %v2301, %v2301
    %v2714 = vmul.f32 %v2303, %v2303
    %v2715 = vmul.f32 %v2327, %v2327
    %v2716 = vmul.f32 %v2341, %v2341
    %v2717 = vmul.f32 %v2349, %v2349
    %v2718 = vmul.f32 %v2351, %v2351
    %v2719 = vmul.f32 %v2334, %v2334
    %v2720 = vmul.f32 %v2348, %v2348
    %v2721 = vmul.f32 %v2350, %v2350
    %v2722 = vmul.f32 %v2352, %v2352
    %v2723 = vmul.f32 %v2376, %v2376
    %v2724 = vmul.f32 %v2390, %v2390
    %v2725 = vmul.f32 %v2398, %v2398
    %v2726 = vmul.f32 %v2400, %v2400
    %v2727 = vmul.f32 %v2383, %v2383
    %v2728 = vmul.f32 %v2397, %v2397
    %v2729 = vmul.f32 %v2399, %v2399
    %v2730 = vmul.f32 %v2401, %v2401
    %v2731 = vmul.f32 %v2425, %v2425
    %v2732 = vmul.f32 %v2439, %v2439
    %v2733 = vmul.f32 %v2447, %v2447
    %v2734 = vmul.f32 %v2449, %v2449
    %v2735 = vmul.f32 %v2432, %v2432
    %v2736 = vmul.f32 %v2446, %v2446
    %v2737 = vmul.f32 %v2448, %v2448
    %v2738 = vmul.f32 %v2450, %v2450
    %v2779 = vcombine.low %v2699, %v2700
    %v2780 = vcombine.low %v2701, %v2702
    %v2782 = vunpack.c.l.s4 1966171168
    %v2783 = vunpack.c.0.s8 %v2782
    %v2784 = vlaneseq
    %v2785 = vshrl.u32 %v2784, 7
    %v2786 = vsub.s32 %v2783, %v2785
    %v2787 = vrot.slane %v2779, %v2786
    %v2789 = vunpack.c.l.s4 1966171168
    %v2790 = vunpack.c.0.s8 %v2789
    %v2791 = vlaneseq
    %v2792 = vshrl.u32 %v2791, 7
    %v2793 = vsub.s32 %v2790, %v2792
    %v2794 = vrot.slane %v2780, %v2793
    %v2796 = vunpack.c.l.s4 1966171168
    %v2797 = vunpack.c.0.s8 %v2796
    %v2798 = vlaneseq
    %v2799 = vshrl.u32 %v2798, 7
    %v2800 = vsub.s32 %v2797, %v2799
    %v2801 = vrot.slane %v2703, %v2800
    %v2802 = vcombine.low %v2787, %v2794
    %v2804 = vunpack.c.l.s4 1966171168
    %v2805 = vunpack.c.0.s8 %v2804
    %v2806 = vlaneseq
    %v2807 = vshrl.u32 %v2806, 7
    %v2808 = vsub.s32 %v2805, %v2807
    %v2809 = vrot.slane %v2802, %v2808
    %v2811 = vunpack.c.l.s4 1966171168
    %v2812 = vunpack.c.0.s8 %v2811
    %v2813 = vlaneseq
    %v2814 = vshrl.u32 %v2813, 7
    %v2815 = vsub.s32 %v2812, %v2814
    %v2816 = vrot.slane %v2801, %v2815
    %v2817 = vcombine.low %v2809, %v2816
    %v2818 = vcombine.low %v2704, %v2705
    %v2819 = vcombine.low %v2706, %v2707
    %v2821 = vunpack.c.l.s4 1966171168
    %v2822 = vunpack.c.0.s8 %v2821
    %v2823 = vlaneseq
    %v2824 = vshrl.u32 %v2823, 7
    %v2825 = vsub.s32 %v2822, %v2824
    %v2826 = vrot.slane %v2818, %v2825
    %v2828 = vunpack.c.l.s4 1966171168
    %v2829 = vunpack.c.0.s8 %v2828
    %v2830 = vlaneseq
    %v2831 = vshrl.u32 %v2830, 7
    %v2832 = vsub.s32 %v2829, %v2831
    %v2833 = vrot.slane %v2819, %v2832
    %v2835 = vunpack.c.l.s4 1966171168
    %v2836 = vunpack.c.0.s8 %v2835
    %v2837 = vlaneseq
    %v2838 = vshrl.u32 %v2837, 7
    %v2839 = vsub.s32 %v2836, %v2838
    %v2840 = vrot.slane %v2708, %v2839
    %v2841 = vcombine.low %v2826, %v2833
    %v2843 = vunpack.c.l.s4 1966171168
    %v2844 = vunpack.c.0.s8 %v2843
    %v2845 = vlaneseq
    %v2846 = vshrl.u32 %v2845, 7
    %v2847 = vsub.s32 %v2844, %v2846
    %v2848 = vrot.slane %v2841, %v2847
    %v2850 = vunpack.c.l.s4 1966171168
    %v2851 = vunpack.c.0.s8 %v2850
    %v2852 = vlaneseq
    %v2853 = vshrl.u32 %v2852, 7
    %v2854 = vsub.s32 %v2851, %v2853
    %v2855 = vrot.slane %v2840, %v2854
    %v2856 = vcombine.low %v2848, %v2855
    %v2857 = vcombine.low %v2709, %v2710
    %v2858 = vcombine.low %v2711, %v2712
    %v2860 = vunpack.c.l.s4 1966171168
    %v2861 = vunpack.c.0.s8 %v2860
    %v2862 = vlaneseq
    %v2863 = vshrl.u32 %v2862, 7
    %v2864 = vsub.s32 %v2861, %v2863
    %v2865 = vrot.slane %v2857, %v2864
    %v2867 = vunpack.c.l.s4 1966171168
    %v2868 = vunpack.c.0.s8 %v2867
    %v2869 = vlaneseq
    %v2870 = vshrl.u32 %v2869, 7
    %v2871 = vsub.s32 %v2868, %v2870
    %v2872 = vrot.slane %v2858, %v2871
    %v2874 = vunpack.c.l.s4 1966171168
    %v2875 = vunpack.c.0.s8 %v2874
    %v2876 = vlaneseq
    %v2877 = vshrl.u32 %v2876, 7
    %v2878 = vsub.s32 %v2875, %v2877
    %v2879 = vrot.slane %v2713, %v2878
    %v2880 = vcombine.low %v2865, %v2872
    %v2882 = vunpack.c.l.s4 1966171168
    %v2883 = vunpack.c.0.s8 %v2882
    %v2884 = vlaneseq
    %v2885 = vshrl.u32 %v2884, 7
    %v2886 = vsub.s32 %v2883, %v2885
    %v2887 = vrot.slane %v2880, %v2886
    %v2889 = vunpack.c.l.s4 1966171168
    %v2890 = vunpack.c.0.s8 %v2889
    %v2891 = vlaneseq
    %v2892 = vshrl.u32 %v2891, 7
    %v2893 = vsub.s32 %v2890, %v2892
    %v2894 = vrot.slane %v2879, %v2893
    %v2895 = vcombine.low %v2887, %v2894
    %v2896 = vcombine.low %v2714, %v2715
    %v2897 = vcombine.low %v2716, %v2717
    %v2899 = vunpack.c.l.s4 1966171168
    %v2900 = vunpack.c.0.s8 %v2899
    %v2901 = vlaneseq
    %v2902 = vshrl.u32 %v2901, 7
    %v2903 = vsub.s32 %v2900, %v2902
    %v2904 = vrot.slane %v2896, %v2903
    %v2906 = vunpack.c.l.s4 1966171168
    %v2907 = vunpack.c.0.s8 %v2906
    %v2908 = vlaneseq
    %v2909 = vshrl.u32 %v2908, 7
    %v2910 = vsub.s32 %v2907, %v2909
    %v2911 = vrot.slane %v2897, %v2910
    %v2913 = vunpack.c.l.s4 1966171168
    %v2914 = vunpack.c.0.s8 %v2913
    %v2915 = vlaneseq
    %v2916 = vshrl.u32 %v2915, 7
    %v2917 = vsub.s32 %v2914, %v2916
    %v2918 = vrot.slane %v2718, %v2917
    %v2919 = vcombine.low %v2904, %v2911
    %v2921 = vunpack.c.l.s4 1966171168
    %v2922 = vunpack.c.0.s8 %v2921
    %v2923 = vlaneseq
    %v2924 = vshrl.u32 %v2923, 7
    %v2925 = vsub.s32 %v2922, %v2924
    %v2926 = vrot.slane %v2919, %v2925
    %v2928 = vunpack.c.l.s4 1966171168
    %v2929 = vunpack.c.0.s8 %v2928
    %v2930 = vlaneseq
    %v2931 = vshrl.u32 %v2930, 7
    %v2932 = vsub.s32 %v2929, %v2931
    %v2933 = vrot.slane %v2918, %v2932
    %v2934 = vcombine.low %v2926, %v2933
    %v2935 = vcombine.low %v2719, %v2720
    %v2936 = vcombine.low %v2721, %v2722
    %v2938 = vunpack.c.l.s4 1966171168
    %v2939 = vunpack.c.0.s8 %v2938
    %v2940 = vlaneseq
    %v2941 = vshrl.u32 %v2940, 7
    %v2942 = vsub.s32 %v2939, %v2941
    %v2943 = vrot.slane %v2935, %v2942
    %v2945 = vunpack.c.l.s4 1966171168
    %v2946 = vunpack.c.0.s8 %v2945
    %v2947 = vlaneseq
    %v2948 = vshrl.u32 %v2947, 7
    %v2949 = vsub.s32 %v2946, %v2948
    %v2950 = vrot.slane %v2936, %v2949
    %v2952 = vunpack.c.l.s4 1966171168
    %v2953 = vunpack.c.0.s8 %v2952
    %v2954 = vlaneseq
    %v2955 = vshrl.u32 %v2954, 7
    %v2956 = vsub.s32 %v2953, %v2955
    %v2957 = vrot.slane %v2723, %v2956
    %v2958 = vcombine.low %v2943, %v2950
    %v2960 = vunpack.c.l.s4 1966171168
    %v2961 = vunpack.c.0.s8 %v2960
    %v2962 = vlaneseq
    %v2963 = vshrl.u32 %v2962, 7
    %v2964 = vsub.s32 %v2961, %v2963
    %v2965 = vrot.slane %v2958, %v2964
    %v2967 = vunpack.c.l.s4 1966171168
    %v2968 = vunpack.c.0.s8 %v2967
    %v2969 = vlaneseq
    %v2970 = vshrl.u32 %v2969, 7
    %v2971 = vsub.s32 %v2968, %v2970
    %v2972 = vrot.slane %v2957, %v2971
    %v2973 = vcombine.low %v2965, %v2972
    %v2974 = vcombine.low %v2724, %v2725
    %v2975 = vcombine.low %v2726, %v2727
    %v2977 = vunpack.c.l.s4 1966171168
    %v2978 = vunpack.c.0.s8 %v2977
    %v2979 = vlaneseq
    %v2980 = vshrl.u32 %v2979, 7
    %v2981 = vsub.s32 %v2978, %v2980
    %v2982 = vrot.slane %v2974, %v2981
    %v2984 = vunpack.c.l.s4 1966171168
    %v2985 = vunpack.c.0.s8 %v2984
    %v2986 = vlaneseq
    %v2987 = vshrl.u32 %v2986, 7
    %v2988 = vsub.s32 %v2985, %v2987
    %v2989 = vrot.slane %v2975, %v2988
    %v2991 = vunpack.c.l.s4 1966171168
    %v2992 = vunpack.c.0.s8 %v2991
    %v2993 = vlaneseq
    %v2994 = vshrl.u32 %v2993, 7
    %v2995 = vsub.s32 %v2992, %v2994
    %v2996 = vrot.slane %v2728, %v2995
    %v2997 = vcombine.low %v2982, %v2989
    %v2999 = vunpack.c.l.s4 1966171168
    %v3000 = vunpack.c.0.s8 %v2999
    %v3001 = vlaneseq
    %v3002 = vshrl.u32 %v3001, 7
    %v3003 = vsub.s32 %v3000, %v3002
    %v3004 = vrot.slane %v2997, %v3003
    %v3006 = vunpack.c.l.s4 1966171168
    %v3007 = vunpack.c.0.s8 %v3006
    %v3008 = vlaneseq
    %v3009 = vshrl.u32 %v3008, 7
    %v3010 = vsub.s32 %v3007, %v3009
    %v3011 = vrot.slane %v2996, %v3010
    %v3012 = vcombine.low %v3004, %v3011
    %v3013 = vcombine.low %v2729, %v2730
    %v3014 = vcombine.low %v2731, %v2732
    %v3016 = vunpack.c.l.s4 1966171168
    %v3017 = vunpack.c.0.s8 %v3016
    %v3018 = vlaneseq
    %v3019 = vshrl.u32 %v3018, 7
    %v3020 = vsub.s32 %v3017, %v3019
    %v3021 = vrot.slane %v3013, %v3020
    %v3023 = vunpack.c.l.s4 1966171168
    %v3024 = vunpack.c.0.s8 %v3023
    %v3025 = vlaneseq
    %v3026 = vshrl.u32 %v3025, 7
    %v3027 = vsub.s32 %v3024, %v3026
    %v3028 = vrot.slane %v3014, %v3027
    %v3030 = vunpack.c.l.s4 1966171168
    %v3031 = vunpack.c.0.s8 %v3030
    %v3032 = vlaneseq
    %v3033 = vshrl.u32 %v3032, 7
    %v3034 = vsub.s32 %v3031, %v3033
    %v3035 = vrot.slane %v2733, %v3034
    %v3036 = vcombine.low %v3021, %v3028
    %v3038 = vunpack.c.l.s4 1966171168
    %v3039 = vunpack.c.0.s8 %v3038
    %v3040 = vlaneseq
    %v3041 = vshrl.u32 %v3040, 7
    %v3042 = vsub.s32 %v3039, %v3041
    %v3043 = vrot.slane %v3036, %v3042
    %v3045 = vunpack.c.l.s4 1966171168
    %v3046 = vunpack.c.0.s8 %v3045
    %v3047 = vlaneseq
    %v3048 = vshrl.u32 %v3047, 7
    %v3049 = vsub.s32 %v3046, %v3048
    %v3050 = vrot.slane %v3035, %v3049
    %v3051 = vcombine.low %v3043, %v3050
    %v3052 = vcombine.low %v2734, %v2735
    %v3053 = vcombine.low %v2736, %v2737
    %v3055 = vunpack.c.l.s4 1966171168
    %v3056 = vunpack.c.0.s8 %v3055
    %v3057 = vlaneseq
    %v3058 = vshrl.u32 %v3057, 7
    %v3059 = vsub.s32 %v3056, %v3058
    %v3060 = vrot.slane %v3052, %v3059
    %v3062 = vunpack.c.l.s4 1966171168
    %v3063 = vunpack.c.0.s8 %v3062
    %v3064 = vlaneseq
    %v3065 = vshrl.u32 %v3064, 7
    %v3066 = vsub.s32 %v3063, %v3065
    %v3067 = vrot.slane %v3053, %v3066
    %v3069 = vunpack.c.l.s4 1966171168
    %v3070 = vunpack.c.0.s8 %v3069
    %v3071 = vlaneseq
    %v3072 = vshrl.u32 %v3071, 7
    %v3073 = vsub.s32 %v3070, %v3072
    %v3074 = vrot.slane %v2738, %v3073
    %v3075 = vcombine.low %v3060, %v3067
    %v3077 = vunpack.c.l.s4 1966171168
    %v3078 = vunpack.c.0.s8 %v3077
    %v3079 = vlaneseq
    %v3080 = vshrl.u32 %v3079, 7
    %v3081 = vsub.s32 %v3078, %v3080
    %v3082 = vrot.slane %v3075, %v3081
    %v3084 = vunpack.c.l.s4 1966171168
    %v3085 = vunpack.c.0.s8 %v3084
    %v3086 = vlaneseq
    %v3087 = vshrl.u32 %v3086, 7
    %v3088 = vsub.s32 %v3085, %v3087
    %v3089 = vrot.slane %v3074, %v3088
    %v3090 = vcombine.low %v3082, %v3089
    %v3099 = vsel %vm1357, %v2817, 0.0
    %3100 = vadd.xlane.f32.xlu0 %v3099
    %v3101 = vpop.xlane.xlu0 %3100
    %v3102 = vsel %vm1357, %v2856, 0.0
    %3103 = vadd.xlane.f32.xlu0 %v3102
    %v3104 = vpop.xlane.xlu0 %3103
    %v3105 = vsel %vm1357, %v2895, 0.0
    %3106 = vadd.xlane.f32.xlu0 %v3105
    %v3107 = vpop.xlane.xlu0 %3106
    %v3108 = vsel %vm1357, %v2934, 0.0
    %3109 = vadd.xlane.f32.xlu0 %v3108
    %v3110 = vpop.xlane.xlu0 %3109
    %v3111 = vsel %vm1357, %v2973, 0.0
    %3112 = vadd.xlane.f32.xlu0 %v3111
    %v3113 = vpop.xlane.xlu0 %3112
    %v3114 = vsel %vm1357, %v3012, 0.0
    %3115 = vadd.xlane.f32.xlu0 %v3114
    %v3116 = vpop.xlane.xlu0 %3115
    %v3117 = vsel %vm1357, %v3051, 0.0
    %3118 = vadd.xlane.f32.xlu0 %v3117
    %v3119 = vpop.xlane.xlu0 %3118
    %v3120 = vsel %vm1357, %v3090, 0.0
    %3121 = vadd.xlane.f32.xlu0 %v3120
    %v3122 = vpop.xlane.xlu0 %3121
    %v3123 = vrsqrt.pop %v3101
    %v3124 = vmul.f32 %v3101, %v3123
    %vm3125 = vcmp.eq.f32.partialorder %v3101, inf
    %v3126 = vsel %vm3125, %v3101, %v3124
    %vm3127 = vcmp.eq.f32.partialorder %v3101, 0.0
    %v3128 = vand.u32 %v3101, 2147483648
    %v3129 = vsel %vm3127, %v3128, %v3126
    %v3130 = vrsqrt.pop %v3104
    %v3131 = vmul.f32 %v3104, %v3130
    %vm3132 = vcmp.eq.f32.partialorder %v3104, inf
    %v3133 = vsel %vm3132, %v3104, %v3131
    %vm3134 = vcmp.eq.f32.partialorder %v3104, 0.0
    %v3135 = vand.u32 %v3104, 2147483648
    %v3136 = vsel %vm3134, %v3135, %v3133
    %v3137 = vrsqrt.pop %v3107
    %v3138 = vmul.f32 %v3107, %v3137
    %vm3139 = vcmp.eq.f32.partialorder %v3107, inf
    %v3140 = vsel %vm3139, %v3107, %v3138
    %vm3141 = vcmp.eq.f32.partialorder %v3107, 0.0
    %v3142 = vand.u32 %v3107, 2147483648
    %v3143 = vsel %vm3141, %v3142, %v3140
    %v3144 = vrsqrt.pop %v3110
    %v3145 = vmul.f32 %v3110, %v3144
    %vm3146 = vcmp.eq.f32.partialorder %v3110, inf
    %v3147 = vsel %vm3146, %v3110, %v3145
    %vm3148 = vcmp.eq.f32.partialorder %v3110, 0.0
    %v3149 = vand.u32 %v3110, 2147483648
    %v3150 = vsel %vm3148, %v3149, %v3147
    %v3151 = vrsqrt.pop %v3113
    %v3152 = vmul.f32 %v3113, %v3151
    %vm3153 = vcmp.eq.f32.partialorder %v3113, inf
    %v3154 = vsel %vm3153, %v3113, %v3152
    %vm3155 = vcmp.eq.f32.partialorder %v3113, 0.0
    %v3156 = vand.u32 %v3113, 2147483648
    %v3157 = vsel %vm3155, %v3156, %v3154
    %v3158 = vrsqrt.pop %v3116
    %v3159 = vmul.f32 %v3116, %v3158
    %vm3160 = vcmp.eq.f32.partialorder %v3116, inf
    %v3161 = vsel %vm3160, %v3116, %v3159
    %vm3162 = vcmp.eq.f32.partialorder %v3116, 0.0
    %v3163 = vand.u32 %v3116, 2147483648
    %v3164 = vsel %vm3162, %v3163, %v3161
    %v3165 = vrsqrt.pop %v3119
    %v3166 = vmul.f32 %v3119, %v3165
    %vm3167 = vcmp.eq.f32.partialorder %v3119, inf
    %v3168 = vsel %vm3167, %v3119, %v3166
    %vm3169 = vcmp.eq.f32.partialorder %v3119, 0.0
    %v3170 = vand.u32 %v3119, 2147483648
    %v3171 = vsel %vm3169, %v3170, %v3168
    %v3172 = vrsqrt.pop %v3122
    %v3173 = vmul.f32 %v3122, %v3172
    %vm3174 = vcmp.eq.f32.partialorder %v3122, inf
    %v3175 = vsel %vm3174, %v3122, %v3173
    %vm3176 = vcmp.eq.f32.partialorder %v3122, 0.0
    %v3177 = vand.u32 %v3122, 2147483648
    %v3178 = vsel %vm3176, %v3177, %v3175
    %v3179 = vmax.f32 %v3129, 1e-12
    %v3180 = vmax.f32 %v3136, 1e-12
    %v3181 = vmax.f32 %v3143, 1e-12
    %v3182 = vmax.f32 %v3150, 1e-12
    %v3183 = vmax.f32 %v3157, 1e-12
    %v3184 = vmax.f32 %v3164, 1e-12
    %v3185 = vmax.f32 %v3171, 1e-12
    %v3186 = vmax.f32 %v3178, 1e-12
    %v3195 = vlaneseq
    %v3196 = vshrl.u32 %v3195, 7
    %v3197 = vsub.s32 0, %v3196
    %v3198 = vrot.slane %v3179, %v3197
    %v3199 = vlaneseq
    %v3200 = vshrl.u32 %v3199, 7
    %v3201 = vsub.s32 1, %v3200
    %v3202 = vrot.slane %v3179, %v3201
    %v3203 = vlaneseq
    %v3204 = vshrl.u32 %v3203, 7
    %v3205 = vsub.s32 2, %v3204
    %v3206 = vrot.slane %v3179, %v3205
    %v3207 = vlaneseq
    %v3208 = vshrl.u32 %v3207, 7
    %v3209 = vsub.s32 3, %v3208
    %v3210 = vrot.slane %v3179, %v3209
    %v3211 = vlaneseq
    %v3212 = vshrl.u32 %v3211, 7
    %v3213 = vsub.s32 4, %v3212
    %v3214 = vrot.slane %v3179, %v3213
    %v3215 = vlaneseq
    %v3216 = vshrl.u32 %v3215, 7
    %v3217 = vsub.s32 0, %v3216
    %v3218 = vrot.slane %v3180, %v3217
    %v3219 = vlaneseq
    %v3220 = vshrl.u32 %v3219, 7
    %v3221 = vsub.s32 1, %v3220
    %v3222 = vrot.slane %v3180, %v3221
    %v3223 = vlaneseq
    %v3224 = vshrl.u32 %v3223, 7
    %v3225 = vsub.s32 2, %v3224
    %v3226 = vrot.slane %v3180, %v3225
    %v3227 = vlaneseq
    %v3228 = vshrl.u32 %v3227, 7
    %v3229 = vsub.s32 3, %v3228
    %v3230 = vrot.slane %v3180, %v3229
    %v3231 = vlaneseq
    %v3232 = vshrl.u32 %v3231, 7
    %v3233 = vsub.s32 4, %v3232
    %v3234 = vrot.slane %v3180, %v3233
    %v3235 = vlaneseq
    %v3236 = vshrl.u32 %v3235, 7
    %v3237 = vsub.s32 0, %v3236
    %v3238 = vrot.slane %v3181, %v3237
    %v3239 = vlaneseq
    %v3240 = vshrl.u32 %v3239, 7
    %v3241 = vsub.s32 1, %v3240
    %v3242 = vrot.slane %v3181, %v3241
    %v3243 = vlaneseq
    %v3244 = vshrl.u32 %v3243, 7
    %v3245 = vsub.s32 2, %v3244
    %v3246 = vrot.slane %v3181, %v3245
    %v3247 = vlaneseq
    %v3248 = vshrl.u32 %v3247, 7
    %v3249 = vsub.s32 3, %v3248
    %v3250 = vrot.slane %v3181, %v3249
    %v3251 = vlaneseq
    %v3252 = vshrl.u32 %v3251, 7
    %v3253 = vsub.s32 4, %v3252
    %v3254 = vrot.slane %v3181, %v3253
    %v3255 = vlaneseq
    %v3256 = vshrl.u32 %v3255, 7
    %v3257 = vsub.s32 0, %v3256
    %v3258 = vrot.slane %v3182, %v3257
    %v3259 = vlaneseq
    %v3260 = vshrl.u32 %v3259, 7
    %v3261 = vsub.s32 1, %v3260
    %v3262 = vrot.slane %v3182, %v3261
    %v3263 = vlaneseq
    %v3264 = vshrl.u32 %v3263, 7
    %v3265 = vsub.s32 2, %v3264
    %v3266 = vrot.slane %v3182, %v3265
    %v3267 = vlaneseq
    %v3268 = vshrl.u32 %v3267, 7
    %v3269 = vsub.s32 3, %v3268
    %v3270 = vrot.slane %v3182, %v3269
    %v3271 = vlaneseq
    %v3272 = vshrl.u32 %v3271, 7
    %v3273 = vsub.s32 4, %v3272
    %v3274 = vrot.slane %v3182, %v3273
    %v3275 = vlaneseq
    %v3276 = vshrl.u32 %v3275, 7
    %v3277 = vsub.s32 0, %v3276
    %v3278 = vrot.slane %v3183, %v3277
    %v3279 = vlaneseq
    %v3280 = vshrl.u32 %v3279, 7
    %v3281 = vsub.s32 1, %v3280
    %v3282 = vrot.slane %v3183, %v3281
    %v3283 = vlaneseq
    %v3284 = vshrl.u32 %v3283, 7
    %v3285 = vsub.s32 2, %v3284
    %v3286 = vrot.slane %v3183, %v3285
    %v3287 = vlaneseq
    %v3288 = vshrl.u32 %v3287, 7
    %v3289 = vsub.s32 3, %v3288
    %v3290 = vrot.slane %v3183, %v3289
    %v3291 = vlaneseq
    %v3292 = vshrl.u32 %v3291, 7
    %v3293 = vsub.s32 4, %v3292
    %v3294 = vrot.slane %v3183, %v3293
    %v3295 = vlaneseq
    %v3296 = vshrl.u32 %v3295, 7
    %v3297 = vsub.s32 0, %v3296
    %v3298 = vrot.slane %v3184, %v3297
    %v3299 = vlaneseq
    %v3300 = vshrl.u32 %v3299, 7
    %v3301 = vsub.s32 1, %v3300
    %v3302 = vrot.slane %v3184, %v3301
    %v3303 = vlaneseq
    %v3304 = vshrl.u32 %v3303, 7
    %v3305 = vsub.s32 2, %v3304
    %v3306 = vrot.slane %v3184, %v3305
    %v3307 = vlaneseq
    %v3308 = vshrl.u32 %v3307, 7
    %v3309 = vsub.s32 3, %v3308
    %v3310 = vrot.slane %v3184, %v3309
    %v3311 = vlaneseq
    %v3312 = vshrl.u32 %v3311, 7
    %v3313 = vsub.s32 4, %v3312
    %v3314 = vrot.slane %v3184, %v3313
    %v3315 = vlaneseq
    %v3316 = vshrl.u32 %v3315, 7
    %v3317 = vsub.s32 0, %v3316
    %v3318 = vrot.slane %v3185, %v3317
    %v3319 = vlaneseq
    %v3320 = vshrl.u32 %v3319, 7
    %v3321 = vsub.s32 1, %v3320
    %v3322 = vrot.slane %v3185, %v3321
    %v3323 = vlaneseq
    %v3324 = vshrl.u32 %v3323, 7
    %v3325 = vsub.s32 2, %v3324
    %v3326 = vrot.slane %v3185, %v3325
    %v3327 = vlaneseq
    %v3328 = vshrl.u32 %v3327, 7
    %v3329 = vsub.s32 3, %v3328
    %v3330 = vrot.slane %v3185, %v3329
    %v3331 = vlaneseq
    %v3332 = vshrl.u32 %v3331, 7
    %v3333 = vsub.s32 4, %v3332
    %v3334 = vrot.slane %v3185, %v3333
    %v3335 = vlaneseq
    %v3336 = vshrl.u32 %v3335, 7
    %v3337 = vsub.s32 0, %v3336
    %v3338 = vrot.slane %v3186, %v3337
    %v3339 = vlaneseq
    %v3340 = vshrl.u32 %v3339, 7
    %v3341 = vsub.s32 1, %v3340
    %v3342 = vrot.slane %v3186, %v3341
    %v3343 = vlaneseq
    %v3344 = vshrl.u32 %v3343, 7
    %v3345 = vsub.s32 2, %v3344
    %v3346 = vrot.slane %v3186, %v3345
    %v3347 = vlaneseq
    %v3348 = vshrl.u32 %v3347, 7
    %v3349 = vsub.s32 3, %v3348
    %v3350 = vrot.slane %v3186, %v3349
    %v3351 = vlaneseq
    %v3352 = vshrl.u32 %v3351, 7
    %v3353 = vsub.s32 4, %v3352
    %v3354 = vrot.slane %v3186, %v3353
    %v3395 = vrcp.pop %v3198
    %v3396 = vmul.f32 %v2229, %v3395
    %v3397 = vrcp.pop %v3202
    %v3398 = vmul.f32 %v2243, %v3397
    %v3399 = vrcp.pop %v3206
    %v3400 = vmul.f32 %v2251, %v3399
    %v3401 = vrcp.pop %v3210
    %v3402 = vmul.f32 %v2253, %v3401
    %v3403 = vrcp.pop %v3214
    %v3404 = vmul.f32 %v2236, %v3403
    %v3405 = vrcp.pop %v3218
    %v3406 = vmul.f32 %v2250, %v3405
    %v3407 = vrcp.pop %v3222
    %v3408 = vmul.f32 %v2252, %v3407
    %v3409 = vrcp.pop %v3226
    %v3410 = vmul.f32 %v2254, %v3409
    %v3411 = vrcp.pop %v3230
    %v3412 = vmul.f32 %v2278, %v3411
    %v3413 = vrcp.pop %v3234
    %v3414 = vmul.f32 %v2292, %v3413
    %v3415 = vrcp.pop %v3238
    %v3416 = vmul.f32 %v2300, %v3415
    %v3417 = vrcp.pop %v3242
    %v3418 = vmul.f32 %v2302, %v3417
    %v3419 = vrcp.pop %v3246
    %v3420 = vmul.f32 %v2285, %v3419
    %v3421 = vrcp.pop %v3250
    %v3422 = vmul.f32 %v2299, %v3421
    %v3423 = vrcp.pop %v3254
    %v3424 = vmul.f32 %v2301, %v3423
    %v3425 = vrcp.pop %v3258
    %v3426 = vmul.f32 %v2303, %v3425
    %v3427 = vrcp.pop %v3262
    %v3428 = vmul.f32 %v2327, %v3427
    %v3429 = vrcp.pop %v3266
    %v3430 = vmul.f32 %v2341, %v3429
    %v3431 = vrcp.pop %v3270
    %v3432 = vmul.f32 %v2349, %v3431
    %v3433 = vrcp.pop %v3274
    %v3434 = vmul.f32 %v2351, %v3433
    %v3435 = vrcp.pop %v3278
    %v3436 = vmul.f32 %v2334, %v3435
    %v3437 = vrcp.pop %v3282
    %v3438 = vmul.f32 %v2348, %v3437
    %v3439 = vrcp.pop %v3286
    %v3440 = vmul.f32 %v2350, %v3439
    %v3441 = vrcp.pop %v3290
    %v3442 = vmul.f32 %v2352, %v3441
    %v3443 = vrcp.pop %v3294
    %v3444 = vmul.f32 %v2376, %v3443
    %v3445 = vrcp.pop %v3298
    %v3446 = vmul.f32 %v2390, %v3445
    %v3447 = vrcp.pop %v3302
    %v3448 = vmul.f32 %v2398, %v3447
    %v3449 = vrcp.pop %v3306
    %v3450 = vmul.f32 %v2400, %v3449
    %v3451 = vrcp.pop %v3310
    %v3452 = vmul.f32 %v2383, %v3451
    %v3453 = vrcp.pop %v3314
    %v3454 = vmul.f32 %v2397, %v3453
    %v3455 = vrcp.pop %v3318
    %v3456 = vmul.f32 %v2399, %v3455
    %v3457 = vrcp.pop %v3322
    %v3458 = vmul.f32 %v2401, %v3457
    %v3459 = vrcp.pop %v3326
    %v3460 = vmul.f32 %v2425, %v3459
    %v3461 = vrcp.pop %v3330
    %v3462 = vmul.f32 %v2439, %v3461
    %v3463 = vrcp.pop %v3334
    %v3464 = vmul.f32 %v2447, %v3463
    %v3465 = vrcp.pop %v3338
    %v3466 = vmul.f32 %v2449, %v3465
    %v3467 = vrcp.pop %v3342
    %v3468 = vmul.f32 %v2432, %v3467
    %v3469 = vrcp.pop %v3346
    %v3470 = vmul.f32 %v2446, %v3469
    %v3471 = vrcp.pop %v3350
    %v3472 = vmul.f32 %v2448, %v3471
    %v3473 = vrcp.pop %v3354
    %v3474 = vmul.f32 %v2450, %v3473
    %v3475 = vmul.f32 %v3398, %v3398
    %v3476 = vmul.f32 %v3408, %v3408
    %v3477 = vmul.f32 %v3418, %v3418
    %v3478 = vmul.f32 %v3428, %v3428
    %v3479 = vmul.f32 %v3438, %v3438
    %v3480 = vmul.f32 %v3448, %v3448
    %v3481 = vmul.f32 %v3458, %v3458
    %v3482 = vmul.f32 %v3468, %v3468
    %v3491 = vcombine.low %v3475, %v3476
    %v3492 = vcombine.low %v3477, %v3478
    %v3493 = vcombine.low %v3479, %v3480
    %v3494 = vcombine.low %v3481, %v3482
    %v3496 = vunpack.c.l.s4 1966171168
    %v3497 = vunpack.c.0.s8 %v3496
    %v3498 = vlaneseq
    %v3499 = vshrl.u32 %v3498, 7
    %v3500 = vsub.s32 %v3497, %v3499
    %v3501 = vrot.slane %v3491, %v3500
    %v3503 = vunpack.c.l.s4 1966171168
    %v3504 = vunpack.c.0.s8 %v3503
    %v3505 = vlaneseq
    %v3506 = vshrl.u32 %v3505, 7
    %v3507 = vsub.s32 %v3504, %v3506
    %v3508 = vrot.slane %v3492, %v3507
    %v3510 = vunpack.c.l.s4 1966171168
    %v3511 = vunpack.c.0.s8 %v3510
    %v3512 = vlaneseq
    %v3513 = vshrl.u32 %v3512, 7
    %v3514 = vsub.s32 %v3511, %v3513
    %v3515 = vrot.slane %v3493, %v3514
    %v3517 = vunpack.c.l.s4 1966171168
    %v3518 = vunpack.c.0.s8 %v3517
    %v3519 = vlaneseq
    %v3520 = vshrl.u32 %v3519, 7
    %v3521 = vsub.s32 %v3518, %v3520
    %v3522 = vrot.slane %v3494, %v3521
    %v3523 = vcombine.low %v3501, %v3508
    %v3524 = vcombine.low %v3515, %v3522
    %v3526 = vunpack.c.l.s4 1966171168
    %v3527 = vunpack.c.0.s8 %v3526
    %v3528 = vlaneseq
    %v3529 = vshrl.u32 %v3528, 7
    %v3530 = vsub.s32 %v3527, %v3529
    %v3531 = vrot.slane %v3523, %v3530
    %v3533 = vunpack.c.l.s4 1966171168
    %v3534 = vunpack.c.0.s8 %v3533
    %v3535 = vlaneseq
    %v3536 = vshrl.u32 %v3535, 7
    %v3537 = vsub.s32 %v3534, %v3536
    %v3538 = vrot.slane %v3524, %v3537
    %v3539 = vcombine.low %v3531, %v3538
    %3541 = vadd.xlane.f32.xlu0 %v3539
    %v3542 = vpop.xlane.xlu0 %3541
    %v3543 = vmul.f32 %v3398, %v3400
    %v3544 = vmul.f32 %v3408, %v3410
    %v3545 = vmul.f32 %v3418, %v3420
    %v3546 = vmul.f32 %v3428, %v3430
    %v3547 = vmul.f32 %v3438, %v3440
    %v3548 = vmul.f32 %v3448, %v3450
    %v3549 = vmul.f32 %v3458, %v3460
    %v3550 = vmul.f32 %v3468, %v3470
    %v3559 = vcombine.low %v3543, %v3544
    %v3560 = vcombine.low %v3545, %v3546
    %v3561 = vcombine.low %v3547, %v3548
    %v3562 = vcombine.low %v3549, %v3550
    %v3564 = vunpack.c.l.s4 1966171168
    %v3565 = vunpack.c.0.s8 %v3564
    %v3566 = vlaneseq
    %v3567 = vshrl.u32 %v3566, 7
    %v3568 = vsub.s32 %v3565, %v3567
    %v3569 = vrot.slane %v3559, %v3568
    %v3571 = vunpack.c.l.s4 1966171168
    %v3572 = vunpack.c.0.s8 %v3571
    %v3573 = vlaneseq
    %v3574 = vshrl.u32 %v3573, 7
    %v3575 = vsub.s32 %v3572, %v3574
    %v3576 = vrot.slane %v3560, %v3575
    %v3578 = vunpack.c.l.s4 1966171168
    %v3579 = vunpack.c.0.s8 %v3578
    %v3580 = vlaneseq
    %v3581 = vshrl.u32 %v3580, 7
    %v3582 = vsub.s32 %v3579, %v3581
    %v3583 = vrot.slane %v3561, %v3582
    %v3585 = vunpack.c.l.s4 1966171168
    %v3586 = vunpack.c.0.s8 %v3585
    %v3587 = vlaneseq
    %v3588 = vshrl.u32 %v3587, 7
    %v3589 = vsub.s32 %v3586, %v3588
    %v3590 = vrot.slane %v3562, %v3589
    %v3591 = vcombine.low %v3569, %v3576
    %v3592 = vcombine.low %v3583, %v3590
    %v3594 = vunpack.c.l.s4 1966171168
    %v3595 = vunpack.c.0.s8 %v3594
    %v3596 = vlaneseq
    %v3597 = vshrl.u32 %v3596, 7
    %v3598 = vsub.s32 %v3595, %v3597
    %v3599 = vrot.slane %v3591, %v3598
    %v3601 = vunpack.c.l.s4 1966171168
    %v3602 = vunpack.c.0.s8 %v3601
    %v3603 = vlaneseq
    %v3604 = vshrl.u32 %v3603, 7
    %v3605 = vsub.s32 %v3602, %v3604
    %v3606 = vrot.slane %v3592, %v3605
    %v3607 = vcombine.low %v3599, %v3606
    %3609 = vadd.xlane.f32.xlu0 %v3607
    %v3610 = vpop.xlane.xlu0 %3609
    %v3611 = vmul.f32 %v3398, %v3402
    %v3612 = vmul.f32 %v3408, %v3412
    %v3613 = vmul.f32 %v3418, %v3422
    %v3614 = vmul.f32 %v3428, %v3432
    %v3615 = vmul.f32 %v3438, %v3442
    %v3616 = vmul.f32 %v3448, %v3452
    %v3617 = vmul.f32 %v3458, %v3462
    %v3618 = vmul.f32 %v3468, %v3472
    %v3627 = vcombine.low %v3611, %v3612
    %v3628 = vcombine.low %v3613, %v3614
    %v3629 = vcombine.low %v3615, %v3616
    %v3630 = vcombine.low %v3617, %v3618
    %v3632 = vunpack.c.l.s4 1966171168
    %v3633 = vunpack.c.0.s8 %v3632
    %v3634 = vlaneseq
    %v3635 = vshrl.u32 %v3634, 7
    %v3636 = vsub.s32 %v3633, %v3635
    %v3637 = vrot.slane %v3627, %v3636
    %v3639 = vunpack.c.l.s4 1966171168
    %v3640 = vunpack.c.0.s8 %v3639
    %v3641 = vlaneseq
    %v3642 = vshrl.u32 %v3641, 7
    %v3643 = vsub.s32 %v3640, %v3642
    %v3644 = vrot.slane %v3628, %v3643
    %v3646 = vunpack.c.l.s4 1966171168
    %v3647 = vunpack.c.0.s8 %v3646
    %v3648 = vlaneseq
    %v3649 = vshrl.u32 %v3648, 7
    %v3650 = vsub.s32 %v3647, %v3649
    %v3651 = vrot.slane %v3629, %v3650
    %v3653 = vunpack.c.l.s4 1966171168
    %v3654 = vunpack.c.0.s8 %v3653
    %v3655 = vlaneseq
    %v3656 = vshrl.u32 %v3655, 7
    %v3657 = vsub.s32 %v3654, %v3656
    %v3658 = vrot.slane %v3630, %v3657
    %v3659 = vcombine.low %v3637, %v3644
    %v3660 = vcombine.low %v3651, %v3658
    %v3662 = vunpack.c.l.s4 1966171168
    %v3663 = vunpack.c.0.s8 %v3662
    %v3664 = vlaneseq
    %v3665 = vshrl.u32 %v3664, 7
    %v3666 = vsub.s32 %v3663, %v3665
    %v3667 = vrot.slane %v3659, %v3666
    %v3669 = vunpack.c.l.s4 1966171168
    %v3670 = vunpack.c.0.s8 %v3669
    %v3671 = vlaneseq
    %v3672 = vshrl.u32 %v3671, 7
    %v3673 = vsub.s32 %v3670, %v3672
    %v3674 = vrot.slane %v3660, %v3673
    %v3675 = vcombine.low %v3667, %v3674
    %3677 = vadd.xlane.f32.xlu0 %v3675
    %v3678 = vpop.xlane.xlu0 %3677
    %v3679 = vmul.f32 %v3398, %v3404
    %v3680 = vmul.f32 %v3408, %v3414
    %v3681 = vmul.f32 %v3418, %v3424
    %v3682 = vmul.f32 %v3428, %v3434
    %v3683 = vmul.f32 %v3438, %v3444
    %v3684 = vmul.f32 %v3448, %v3454
    %v3685 = vmul.f32 %v3458, %v3464
    %v3686 = vmul.f32 %v3468, %v3474
    %v3695 = vcombine.low %v3679, %v3680
    %v3696 = vcombine.low %v3681, %v3682
    %v3697 = vcombine.low %v3683, %v3684
    %v3698 = vcombine.low %v3685, %v3686
    %v3700 = vunpack.c.l.s4 1966171168
    %v3701 = vunpack.c.0.s8 %v3700
    %v3702 = vlaneseq
    %v3703 = vshrl.u32 %v3702, 7
    %v3704 = vsub.s32 %v3701, %v3703
    %v3705 = vrot.slane %v3695, %v3704
    %v3707 = vunpack.c.l.s4 1966171168
    %v3708 = vunpack.c.0.s8 %v3707
    %v3709 = vlaneseq
    %v3710 = vshrl.u32 %v3709, 7
    %v3711 = vsub.s32 %v3708, %v3710
    %v3712 = vrot.slane %v3696, %v3711
    %v3714 = vunpack.c.l.s4 1966171168
    %v3715 = vunpack.c.0.s8 %v3714
    %v3716 = vlaneseq
    %v3717 = vshrl.u32 %v3716, 7
    %v3718 = vsub.s32 %v3715, %v3717
    %v3719 = vrot.slane %v3697, %v3718
    %v3721 = vunpack.c.l.s4 1966171168
    %v3722 = vunpack.c.0.s8 %v3721
    %v3723 = vlaneseq
    %v3724 = vshrl.u32 %v3723, 7
    %v3725 = vsub.s32 %v3722, %v3724
    %v3726 = vrot.slane %v3698, %v3725
    %v3727 = vcombine.low %v3705, %v3712
    %v3728 = vcombine.low %v3719, %v3726
    %v3730 = vunpack.c.l.s4 1966171168
    %v3731 = vunpack.c.0.s8 %v3730
    %v3732 = vlaneseq
    %v3733 = vshrl.u32 %v3732, 7
    %v3734 = vsub.s32 %v3731, %v3733
    %v3735 = vrot.slane %v3727, %v3734
    %v3737 = vunpack.c.l.s4 1966171168
    %v3738 = vunpack.c.0.s8 %v3737
    %v3739 = vlaneseq
    %v3740 = vshrl.u32 %v3739, 7
    %v3741 = vsub.s32 %v3738, %v3740
    %v3742 = vrot.slane %v3728, %v3741
    %v3743 = vcombine.low %v3735, %v3742
    %3745 = vadd.xlane.f32.xlu0 %v3743
    %v3746 = vpop.xlane.xlu0 %3745
    %v3747 = vmul.f32 %v3400, %v3400
    %v3748 = vmul.f32 %v3410, %v3410
    %v3749 = vmul.f32 %v3420, %v3420
    %v3750 = vmul.f32 %v3430, %v3430
    %v3751 = vmul.f32 %v3440, %v3440
    %v3752 = vmul.f32 %v3450, %v3450
    %v3753 = vmul.f32 %v3460, %v3460
    %v3754 = vmul.f32 %v3470, %v3470
    %v3763 = vcombine.low %v3747, %v3748
    %v3764 = vcombine.low %v3749, %v3750
    %v3765 = vcombine.low %v3751, %v3752
    %v3766 = vcombine.low %v3753, %v3754
    %v3768 = vunpack.c.l.s4 1966171168
    %v3769 = vunpack.c.0.s8 %v3768
    %v3770 = vlaneseq
    %v3771 = vshrl.u32 %v3770, 7
    %v3772 = vsub.s32 %v3769, %v3771
    %v3773 = vrot.slane %v3763, %v3772
    %v3775 = vunpack.c.l.s4 1966171168
    %v3776 = vunpack.c.0.s8 %v3775
    %v3777 = vlaneseq
    %v3778 = vshrl.u32 %v3777, 7
    %v3779 = vsub.s32 %v3776, %v3778
    %v3780 = vrot.slane %v3764, %v3779
    %v3782 = vunpack.c.l.s4 1966171168
    %v3783 = vunpack.c.0.s8 %v3782
    %v3784 = vlaneseq
    %v3785 = vshrl.u32 %v3784, 7
    %v3786 = vsub.s32 %v3783, %v3785
    %v3787 = vrot.slane %v3765, %v3786
    %v3789 = vunpack.c.l.s4 1966171168
    %v3790 = vunpack.c.0.s8 %v3789
    %v3791 = vlaneseq
    %v3792 = vshrl.u32 %v3791, 7
    %v3793 = vsub.s32 %v3790, %v3792
    %v3794 = vrot.slane %v3766, %v3793
    %v3795 = vcombine.low %v3773, %v3780
    %v3796 = vcombine.low %v3787, %v3794
    %v3798 = vunpack.c.l.s4 1966171168
    %v3799 = vunpack.c.0.s8 %v3798
    %v3800 = vlaneseq
    %v3801 = vshrl.u32 %v3800, 7
    %v3802 = vsub.s32 %v3799, %v3801
    %v3803 = vrot.slane %v3795, %v3802
    %v3805 = vunpack.c.l.s4 1966171168
    %v3806 = vunpack.c.0.s8 %v3805
    %v3807 = vlaneseq
    %v3808 = vshrl.u32 %v3807, 7
    %v3809 = vsub.s32 %v3806, %v3808
    %v3810 = vrot.slane %v3796, %v3809
    %v3811 = vcombine.low %v3803, %v3810
    %3813 = vadd.xlane.f32.xlu0 %v3811
    %v3814 = vpop.xlane.xlu0 %3813
    %v3815 = vmul.f32 %v3400, %v3402
    %v3816 = vmul.f32 %v3410, %v3412
    %v3817 = vmul.f32 %v3420, %v3422
    %v3818 = vmul.f32 %v3430, %v3432
    %v3819 = vmul.f32 %v3440, %v3442
    %v3820 = vmul.f32 %v3450, %v3452
    %v3821 = vmul.f32 %v3460, %v3462
    %v3822 = vmul.f32 %v3470, %v3472
    %v3831 = vcombine.low %v3815, %v3816
    %v3832 = vcombine.low %v3817, %v3818
    %v3833 = vcombine.low %v3819, %v3820
    %v3834 = vcombine.low %v3821, %v3822
    %v3836 = vunpack.c.l.s4 1966171168
    %v3837 = vunpack.c.0.s8 %v3836
    %v3838 = vlaneseq
    %v3839 = vshrl.u32 %v3838, 7
    %v3840 = vsub.s32 %v3837, %v3839
    %v3841 = vrot.slane %v3831, %v3840
    %v3843 = vunpack.c.l.s4 1966171168
    %v3844 = vunpack.c.0.s8 %v3843
    %v3845 = vlaneseq
    %v3846 = vshrl.u32 %v3845, 7
    %v3847 = vsub.s32 %v3844, %v3846
    %v3848 = vrot.slane %v3832, %v3847
    %v3850 = vunpack.c.l.s4 1966171168
    %v3851 = vunpack.c.0.s8 %v3850
    %v3852 = vlaneseq
    %v3853 = vshrl.u32 %v3852, 7
    %v3854 = vsub.s32 %v3851, %v3853
    %v3855 = vrot.slane %v3833, %v3854
    %v3857 = vunpack.c.l.s4 1966171168
    %v3858 = vunpack.c.0.s8 %v3857
    %v3859 = vlaneseq
    %v3860 = vshrl.u32 %v3859, 7
    %v3861 = vsub.s32 %v3858, %v3860
    %v3862 = vrot.slane %v3834, %v3861
    %v3863 = vcombine.low %v3841, %v3848
    %v3864 = vcombine.low %v3855, %v3862
    %v3866 = vunpack.c.l.s4 1966171168
    %v3867 = vunpack.c.0.s8 %v3866
    %v3868 = vlaneseq
    %v3869 = vshrl.u32 %v3868, 7
    %v3870 = vsub.s32 %v3867, %v3869
    %v3871 = vrot.slane %v3863, %v3870
    %v3873 = vunpack.c.l.s4 1966171168
    %v3874 = vunpack.c.0.s8 %v3873
    %v3875 = vlaneseq
    %v3876 = vshrl.u32 %v3875, 7
    %v3877 = vsub.s32 %v3874, %v3876
    %v3878 = vrot.slane %v3864, %v3877
    %v3879 = vcombine.low %v3871, %v3878
    %3881 = vadd.xlane.f32.xlu0 %v3879
    %v3882 = vpop.xlane.xlu0 %3881
    %v3883 = vmul.f32 %v3400, %v3404
    %v3884 = vmul.f32 %v3410, %v3414
    %v3885 = vmul.f32 %v3420, %v3424
    %v3886 = vmul.f32 %v3430, %v3434
    %v3887 = vmul.f32 %v3440, %v3444
    %v3888 = vmul.f32 %v3450, %v3454
    %v3889 = vmul.f32 %v3460, %v3464
    %v3890 = vmul.f32 %v3470, %v3474
    %v3899 = vcombine.low %v3883, %v3884
    %v3900 = vcombine.low %v3885, %v3886
    %v3901 = vcombine.low %v3887, %v3888
    %v3902 = vcombine.low %v3889, %v3890
    %v3904 = vunpack.c.l.s4 1966171168
    %v3905 = vunpack.c.0.s8 %v3904
    %v3906 = vlaneseq
    %v3907 = vshrl.u32 %v3906, 7
    %v3908 = vsub.s32 %v3905, %v3907
    %v3909 = vrot.slane %v3899, %v3908
    %v3911 = vunpack.c.l.s4 1966171168
    %v3912 = vunpack.c.0.s8 %v3911
    %v3913 = vlaneseq
    %v3914 = vshrl.u32 %v3913, 7
    %v3915 = vsub.s32 %v3912, %v3914
    %v3916 = vrot.slane %v3900, %v3915
    %v3918 = vunpack.c.l.s4 1966171168
    %v3919 = vunpack.c.0.s8 %v3918
    %v3920 = vlaneseq
    %v3921 = vshrl.u32 %v3920, 7
    %v3922 = vsub.s32 %v3919, %v3921
    %v3923 = vrot.slane %v3901, %v3922
    %v3925 = vunpack.c.l.s4 1966171168
    %v3926 = vunpack.c.0.s8 %v3925
    %v3927 = vlaneseq
    %v3928 = vshrl.u32 %v3927, 7
    %v3929 = vsub.s32 %v3926, %v3928
    %v3930 = vrot.slane %v3902, %v3929
    %v3931 = vcombine.low %v3909, %v3916
    %v3932 = vcombine.low %v3923, %v3930
    %v3934 = vunpack.c.l.s4 1966171168
    %v3935 = vunpack.c.0.s8 %v3934
    %v3936 = vlaneseq
    %v3937 = vshrl.u32 %v3936, 7
    %v3938 = vsub.s32 %v3935, %v3937
    %v3939 = vrot.slane %v3931, %v3938
    %v3941 = vunpack.c.l.s4 1966171168
    %v3942 = vunpack.c.0.s8 %v3941
    %v3943 = vlaneseq
    %v3944 = vshrl.u32 %v3943, 7
    %v3945 = vsub.s32 %v3942, %v3944
    %v3946 = vrot.slane %v3932, %v3945
    %v3947 = vcombine.low %v3939, %v3946
    %3949 = vadd.xlane.f32.xlu0 %v3947
    %v3950 = vpop.xlane.xlu0 %3949
    %v3951 = vmul.f32 %v3402, %v3402
    %v3952 = vmul.f32 %v3412, %v3412
    %v3953 = vmul.f32 %v3422, %v3422
    %v3954 = vmul.f32 %v3432, %v3432
    %v3955 = vmul.f32 %v3442, %v3442
    %v3956 = vmul.f32 %v3452, %v3452
    %v3957 = vmul.f32 %v3462, %v3462
    %v3958 = vmul.f32 %v3472, %v3472
    %v3967 = vcombine.low %v3951, %v3952
    %v3968 = vcombine.low %v3953, %v3954
    %v3969 = vcombine.low %v3955, %v3956
    %v3970 = vcombine.low %v3957, %v3958
    %v3972 = vunpack.c.l.s4 1966171168
    %v3973 = vunpack.c.0.s8 %v3972
    %v3974 = vlaneseq
    %v3975 = vshrl.u32 %v3974, 7
    %v3976 = vsub.s32 %v3973, %v3975
    %v3977 = vrot.slane %v3967, %v3976
    %v3979 = vunpack.c.l.s4 1966171168
    %v3980 = vunpack.c.0.s8 %v3979
    %v3981 = vlaneseq
    %v3982 = vshrl.u32 %v3981, 7
    %v3983 = vsub.s32 %v3980, %v3982
    %v3984 = vrot.slane %v3968, %v3983
    %v3986 = vunpack.c.l.s4 1966171168
    %v3987 = vunpack.c.0.s8 %v3986
    %v3988 = vlaneseq
    %v3989 = vshrl.u32 %v3988, 7
    %v3990 = vsub.s32 %v3987, %v3989
    %v3991 = vrot.slane %v3969, %v3990
    %v3993 = vunpack.c.l.s4 1966171168
    %v3994 = vunpack.c.0.s8 %v3993
    %v3995 = vlaneseq
    %v3996 = vshrl.u32 %v3995, 7
    %v3997 = vsub.s32 %v3994, %v3996
    %v3998 = vrot.slane %v3970, %v3997
    %v3999 = vcombine.low %v3977, %v3984
    %v4000 = vcombine.low %v3991, %v3998
    %v4002 = vunpack.c.l.s4 1966171168
    %v4003 = vunpack.c.0.s8 %v4002
    %v4004 = vlaneseq
    %v4005 = vshrl.u32 %v4004, 7
    %v4006 = vsub.s32 %v4003, %v4005
    %v4007 = vrot.slane %v3999, %v4006
    %v4009 = vunpack.c.l.s4 1966171168
    %v4010 = vunpack.c.0.s8 %v4009
    %v4011 = vlaneseq
    %v4012 = vshrl.u32 %v4011, 7
    %v4013 = vsub.s32 %v4010, %v4012
    %v4014 = vrot.slane %v4000, %v4013
    %v4015 = vcombine.low %v4007, %v4014
    %4017 = vadd.xlane.f32.xlu0 %v4015
    %v4018 = vpop.xlane.xlu0 %4017
    %v4019 = vmul.f32 %v3402, %v3404
    %v4020 = vmul.f32 %v3412, %v3414
    %v4021 = vmul.f32 %v3422, %v3424
    %v4022 = vmul.f32 %v3432, %v3434
    %v4023 = vmul.f32 %v3442, %v3444
    %v4024 = vmul.f32 %v3452, %v3454
    %v4025 = vmul.f32 %v3462, %v3464
    %v4026 = vmul.f32 %v3472, %v3474
    %v4035 = vcombine.low %v4019, %v4020
    %v4036 = vcombine.low %v4021, %v4022
    %v4037 = vcombine.low %v4023, %v4024
    %v4038 = vcombine.low %v4025, %v4026
    %v4040 = vunpack.c.l.s4 1966171168
    %v4041 = vunpack.c.0.s8 %v4040
    %v4042 = vlaneseq
    %v4043 = vshrl.u32 %v4042, 7
    %v4044 = vsub.s32 %v4041, %v4043
    %v4045 = vrot.slane %v4035, %v4044
    %v4047 = vunpack.c.l.s4 1966171168
    %v4048 = vunpack.c.0.s8 %v4047
    %v4049 = vlaneseq
    %v4050 = vshrl.u32 %v4049, 7
    %v4051 = vsub.s32 %v4048, %v4050
    %v4052 = vrot.slane %v4036, %v4051
    %v4054 = vunpack.c.l.s4 1966171168
    %v4055 = vunpack.c.0.s8 %v4054
    %v4056 = vlaneseq
    %v4057 = vshrl.u32 %v4056, 7
    %v4058 = vsub.s32 %v4055, %v4057
    %v4059 = vrot.slane %v4037, %v4058
    %v4061 = vunpack.c.l.s4 1966171168
    %v4062 = vunpack.c.0.s8 %v4061
    %v4063 = vlaneseq
    %v4064 = vshrl.u32 %v4063, 7
    %v4065 = vsub.s32 %v4062, %v4064
    %v4066 = vrot.slane %v4038, %v4065
    %v4067 = vcombine.low %v4045, %v4052
    %v4068 = vcombine.low %v4059, %v4066
    %v4070 = vunpack.c.l.s4 1966171168
    %v4071 = vunpack.c.0.s8 %v4070
    %v4072 = vlaneseq
    %v4073 = vshrl.u32 %v4072, 7
    %v4074 = vsub.s32 %v4071, %v4073
    %v4075 = vrot.slane %v4067, %v4074
    %v4077 = vunpack.c.l.s4 1966171168
    %v4078 = vunpack.c.0.s8 %v4077
    %v4079 = vlaneseq
    %v4080 = vshrl.u32 %v4079, 7
    %v4081 = vsub.s32 %v4078, %v4080
    %v4082 = vrot.slane %v4068, %v4081
    %v4083 = vcombine.low %v4075, %v4082
    %4085 = vadd.xlane.f32.xlu0 %v4083
    %v4086 = vpop.xlane.xlu0 %4085
    %v4087 = vmul.f32 %v3404, %v3404
    %v4088 = vmul.f32 %v3414, %v3414
    %v4089 = vmul.f32 %v3424, %v3424
    %v4090 = vmul.f32 %v3434, %v3434
    %v4091 = vmul.f32 %v3444, %v3444
    %v4092 = vmul.f32 %v3454, %v3454
    %v4093 = vmul.f32 %v3464, %v3464
    %v4094 = vmul.f32 %v3474, %v3474
    %v4103 = vcombine.low %v4087, %v4088
    %v4104 = vcombine.low %v4089, %v4090
    %v4105 = vcombine.low %v4091, %v4092
    %v4106 = vcombine.low %v4093, %v4094
    %v4108 = vunpack.c.l.s4 1966171168
    %v4109 = vunpack.c.0.s8 %v4108
    %v4110 = vlaneseq
    %v4111 = vshrl.u32 %v4110, 7
    %v4112 = vsub.s32 %v4109, %v4111
    %v4113 = vrot.slane %v4103, %v4112
    %v4115 = vunpack.c.l.s4 1966171168
    %v4116 = vunpack.c.0.s8 %v4115
    %v4117 = vlaneseq
    %v4118 = vshrl.u32 %v4117, 7
    %v4119 = vsub.s32 %v4116, %v4118
    %v4120 = vrot.slane %v4104, %v4119
    %v4122 = vunpack.c.l.s4 1966171168
    %v4123 = vunpack.c.0.s8 %v4122
    %v4124 = vlaneseq
    %v4125 = vshrl.u32 %v4124, 7
    %v4126 = vsub.s32 %v4123, %v4125
    %v4127 = vrot.slane %v4105, %v4126
    %v4129 = vunpack.c.l.s4 1966171168
    %v4130 = vunpack.c.0.s8 %v4129
    %v4131 = vlaneseq
    %v4132 = vshrl.u32 %v4131, 7
    %v4133 = vsub.s32 %v4130, %v4132
    %v4134 = vrot.slane %v4106, %v4133
    %v4135 = vcombine.low %v4113, %v4120
    %v4136 = vcombine.low %v4127, %v4134
    %v4138 = vunpack.c.l.s4 1966171168
    %v4139 = vunpack.c.0.s8 %v4138
    %v4140 = vlaneseq
    %v4141 = vshrl.u32 %v4140, 7
    %v4142 = vsub.s32 %v4139, %v4141
    %v4143 = vrot.slane %v4135, %v4142
    %v4145 = vunpack.c.l.s4 1966171168
    %v4146 = vunpack.c.0.s8 %v4145
    %v4147 = vlaneseq
    %v4148 = vshrl.u32 %v4147, 7
    %v4149 = vsub.s32 %v4146, %v4148
    %v4150 = vrot.slane %v4136, %v4149
    %v4151 = vcombine.low %v4143, %v4150
    %4153 = vadd.xlane.f32.xlu0 %v4151
    %v4154 = vpop.xlane.xlu0 %4153
    %v4155 = vmul.f32 %v3814, %v4018
    %v4156 = vmul.f32 %v4155, %v4154
    %v4157 = vmul.f32 %v3814, %v4086
    %v4158 = vmul.f32 %v4157, %v4086
    %v4159 = vsub.f32 %v4156, %v4158
    %v4160 = vmul.f32 %v3882, %v3882
    %v4161 = vmul.f32 %v4160, %v4154
    %v4162 = vsub.f32 %v4159, %v4161
    %v4163 = vmul.f32 %v3882, %v3950
    %v4164 = vmul.f32 %v4163, %v4086
    %v4165 = vadd.f32 %v4162, %v4164
    %v4166 = vadd.f32 %v4165, %v4164
    %v4167 = vmul.f32 %v3950, %v3950
    %v4168 = vmul.f32 %v4167, %v4018
    %v4169 = vsub.f32 %v4166, %v4168
    %v4170 = vsub.f32 0.0, %v3610
    %v4171 = vmul.f32 %v4170, %v4018
    %v4172 = vmul.f32 %v4171, %v4154
    %v4173 = vmul.f32 %v3610, %v4086
    %v4174 = vmul.f32 %v4173, %v4086
    %v4175 = vadd.f32 %v4172, %v4174
    %v4176 = vmul.f32 %v3882, %v3678
    %v4177 = vmul.f32 %v4176, %v4154
    %v4178 = vadd.f32 %v4175, %v4177
    %v4179 = vmul.f32 %v3882, %v3746
    %v4180 = vmul.f32 %v4179, %v4086
    %v4181 = vsub.f32 %v4178, %v4180
    %v4182 = vmul.f32 %v3950, %v3678
    %v4183 = vmul.f32 %v4182, %v4086
    %v4184 = vsub.f32 %v4181, %v4183
    %v4185 = vmul.f32 %v3950, %v3746
    %v4186 = vmul.f32 %v4185, %v4018
    %v4187 = vadd.f32 %v4184, %v4186
    %v4188 = vmul.f32 %v3610, %v3882
    %v4189 = vmul.f32 %v4188, %v4154
    %v4190 = vmul.f32 %v3610, %v3950
    %v4191 = vmul.f32 %v4190, %v4086
    %v4192 = vsub.f32 %v4189, %v4191
    %v4193 = vmul.f32 %v3814, %v3678
    %v4194 = vmul.f32 %v4193, %v4154
    %v4195 = vsub.f32 %v4192, %v4194
    %v4196 = vmul.f32 %v3814, %v3746
    %v4197 = vmul.f32 %v4196, %v4086
    %v4198 = vadd.f32 %v4195, %v4197
    %v4199 = vmul.f32 %v4182, %v3950
    %v4200 = vadd.f32 %v4198, %v4199
    %v4201 = vmul.f32 %v4185, %v3882
    %v4202 = vsub.f32 %v4200, %v4201
    %v4203 = vmul.f32 %v4170, %v3882
    %v4204 = vmul.f32 %v4203, %v4086
    %v4205 = vmul.f32 %v4190, %v4018
    %v4206 = vadd.f32 %v4204, %v4205
    %v4207 = vmul.f32 %v4193, %v4086
    %v4208 = vadd.f32 %v4206, %v4207
    %v4209 = vmul.f32 %v4196, %v4018
    %v4210 = vsub.f32 %v4208, %v4209
    %v4211 = vmul.f32 %v4176, %v3950
    %v4212 = vsub.f32 %v4210, %v4211
    %v4213 = vmul.f32 %v4179, %v3882
    %v4214 = vadd.f32 %v4212, %v4213
    %v4215 = vsub.f32 %v4178, %v4183
    %v4216 = vsub.f32 %v4215, %v4180
    %v4217 = vadd.f32 %v4216, %v4186
    %v4218 = vmul.f32 %v3542, %v4018
    %v4219 = vmul.f32 %v4218, %v4154
    %v4220 = vmul.f32 %v3542, %v4086
    %v4221 = vmul.f32 %v4220, %v4086
    %v4222 = vsub.f32 %v4219, %v4221
    %v4223 = vmul.f32 %v3678, %v3678
    %v4224 = vmul.f32 %v4223, %v4154
    %v4225 = vsub.f32 %v4222, %v4224
    %v4226 = vmul.f32 %v3678, %v3746
    %v4227 = vmul.f32 %v4226, %v4086
    %v4228 = vadd.f32 %v4225, %v4227
    %v4229 = vadd.f32 %v4228, %v4227
    %v4230 = vmul.f32 %v3746, %v3746
    %v4231 = vmul.f32 %v4230, %v4018
    %v4232 = vsub.f32 %v4229, %v4231
    %v4233 = vsub.f32 0.0, %v3542
    %v4234 = vmul.f32 %v4233, %v3882
    %v4235 = vmul.f32 %v4234, %v4154
    %v4236 = vmul.f32 %v3542, %v3950
    %v4237 = vmul.f32 %v4236, %v4086
    %v4238 = vadd.f32 %v4235, %v4237
    %v4239 = vmul.f32 %v3610, %v3678
    %v4240 = vmul.f32 %v4239, %v4154
    %v4241 = vadd.f32 %v4238, %v4240
    %v4242 = vmul.f32 %v3610, %v3746
    %v4243 = vmul.f32 %v4242, %v4086
    %v4244 = vsub.f32 %v4241, %v4243
    %v4245 = vmul.f32 %v4226, %v3950
    %v4246 = vsub.f32 %v4244, %v4245
    %v4247 = vmul.f32 %v4230, %v3882
    %v4248 = vadd.f32 %v4246, %v4247
    %v4249 = vmul.f32 %v3542, %v3882
    %v4250 = vmul.f32 %v4249, %v4086
    %v4251 = vmul.f32 %v4236, %v4018
    %v4252 = vsub.f32 %v4250, %v4251
    %v4253 = vmul.f32 %v4239, %v4086
    %v4254 = vsub.f32 %v4252, %v4253
    %v4255 = vmul.f32 %v4242, %v4018
    %v4256 = vadd.f32 %v4254, %v4255
    %v4257 = vmul.f32 %v4223, %v3950
    %v4258 = vadd.f32 %v4256, %v4257
    %v4259 = vmul.f32 %v4226, %v3882
    %v4260 = vsub.f32 %v4258, %v4259
    %v4261 = vmul.f32 %v4173, %v3950
    %v4262 = vsub.f32 %v4189, %v4261
    %v4263 = vsub.f32 %v4262, %v4194
    %v4264 = vadd.f32 %v4263, %v4199
    %v4265 = vadd.f32 %v4264, %v4197
    %v4266 = vsub.f32 %v4265, %v4201
    %v4267 = vmul.f32 %v4220, %v3950
    %v4268 = vadd.f32 %v4235, %v4267
    %v4269 = vadd.f32 %v4268, %v4240
    %v4270 = vsub.f32 %v4269, %v4245
    %v4271 = vsub.f32 %v4270, %v4243
    %v4272 = vadd.f32 %v4271, %v4247
    %v4273 = vmul.f32 %v3542, %v3814
    %v4274 = vmul.f32 %v4273, %v4154
    %v4275 = vmul.f32 %v4236, %v3950
    %v4276 = vsub.f32 %v4274, %v4275
    %v4277 = vmul.f32 %v3610, %v3610
    %v4278 = vmul.f32 %v4277, %v4154
    %v4279 = vsub.f32 %v4276, %v4278
    %v4280 = vmul.f32 %v4242, %v3950
    %v4281 = vadd.f32 %v4279, %v4280
    %v4282 = vadd.f32 %v4281, %v4280
    %v4283 = vmul.f32 %v4230, %v3814
    %v4284 = vsub.f32 %v4282, %v4283
    %v4285 = vmul.f32 %v4233, %v3814
    %v4286 = vmul.f32 %v4285, %v4086
    %v4287 = vmul.f32 %v4236, %v3882
    %v4288 = vadd.f32 %v4286, %v4287
    %v4289 = vmul.f32 %v4277, %v4086
    %v4290 = vadd.f32 %v4288, %v4289
    %v4291 = vmul.f32 %v4242, %v3882
    %v4292 = vsub.f32 %v4290, %v4291
    %v4293 = vmul.f32 %v4239, %v3950
    %v4294 = vsub.f32 %v4292, %v4293
    %v4295 = vmul.f32 %v4226, %v3814
    %v4296 = vadd.f32 %v4294, %v4295
    %v4297 = vmul.f32 %v3610, %v4018
    %v4298 = vmul.f32 %v4297, %v3950
    %v4299 = vadd.f32 %v4204, %v4298
    %v4300 = vadd.f32 %v4299, %v4207
    %v4301 = vsub.f32 %v4300, %v4211
    %v4302 = vsub.f32 %v4301, %v4209
    %v4303 = vadd.f32 %v4302, %v4213
    %v4304 = vmul.f32 %v4218, %v3950
    %v4305 = vsub.f32 %v4250, %v4304
    %v4306 = vsub.f32 %v4305, %v4253
    %v4307 = vadd.f32 %v4306, %v4257
    %v4308 = vadd.f32 %v4307, %v4255
    %v4309 = vsub.f32 %v4308, %v4259
    %v4310 = vmul.f32 %v4249, %v3950
    %v4311 = vadd.f32 %v4286, %v4310
    %v4312 = vadd.f32 %v4311, %v4289
    %v4313 = vsub.f32 %v4312, %v4293
    %v4314 = vsub.f32 %v4313, %v4291
    %v4315 = vadd.f32 %v4314, %v4295
    %v4316 = vmul.f32 %v4273, %v4018
    %v4317 = vmul.f32 %v4249, %v3882
    %v4318 = vsub.f32 %v4316, %v4317
    %v4319 = vmul.f32 %v4277, %v4018
    %v4320 = vsub.f32 %v4318, %v4319
    %v4321 = vmul.f32 %v4239, %v3882
    %v4322 = vadd.f32 %v4320, %v4321
    %v4323 = vadd.f32 %v4322, %v4321
    %v4324 = vmul.f32 %v4223, %v3814
    %v4325 = vsub.f32 %v4323, %v4324
    %v4326 = vmul.f32 %v3542, %v4169
    %v4327 = vmul.f32 %v3610, %v4217
    %v4328 = vadd.f32 %v4326, %v4327
    %v4329 = vmul.f32 %v3678, %v4266
    %v4330 = vadd.f32 %v4328, %v4329
    %v4331 = vmul.f32 %v3746, %v4303
    %v4332 = vadd.f32 %v4330, %v4331
    %v4365 = vcombine.low %v3398, %v3400
    %v4366 = vcombine.low %v3402, %v3404
    %v4367 = vcombine.low %v3408, %v3410
    %v4368 = vcombine.low %v3412, %v3414
    %v4370 = vunpack.c.l.s4 1966171168
    %v4371 = vunpack.c.0.s8 %v4370
    %v4372 = vlaneseq
    %v4373 = vshrl.u32 %v4372, 7
    %v4374 = vsub.s32 %v4371, %v4373
    %v4375 = vrot.slane %v4365, %v4374
    %v4377 = vunpack.c.l.s4 1966171168
    %v4378 = vunpack.c.0.s8 %v4377
    %v4379 = vlaneseq
    %v4380 = vshrl.u32 %v4379, 7
    %v4381 = vsub.s32 %v4378, %v4380
    %v4382 = vrot.slane %v4366, %v4381
    %v4384 = vunpack.c.l.s4 1966171168
    %v4385 = vunpack.c.0.s8 %v4384
    %v4386 = vlaneseq
    %v4387 = vshrl.u32 %v4386, 7
    %v4388 = vsub.s32 %v4385, %v4387
    %v4389 = vrot.slane %v4367, %v4388
    %v4391 = vunpack.c.l.s4 1966171168
    %v4392 = vunpack.c.0.s8 %v4391
    %v4393 = vlaneseq
    %v4394 = vshrl.u32 %v4393, 7
    %v4395 = vsub.s32 %v4392, %v4394
    %v4396 = vrot.slane %v4368, %v4395
    %v4397 = vcombine.low %v4375, %v4382
    %v4398 = vcombine.low %v4389, %v4396
    %v4400 = vunpack.c.l.s4 1966171168
    %v4401 = vunpack.c.0.s8 %v4400
    %v4402 = vlaneseq
    %v4403 = vshrl.u32 %v4402, 7
    %v4404 = vsub.s32 %v4401, %v4403
    %v4405 = vrot.slane %v4397, %v4404
    %v4407 = vunpack.c.l.s4 1966171168
    %v4408 = vunpack.c.0.s8 %v4407
    %v4409 = vlaneseq
    %v4410 = vshrl.u32 %v4409, 7
    %v4411 = vsub.s32 %v4408, %v4410
    %v4412 = vrot.slane %v4398, %v4411
    %v4413 = vcombine.low %v4405, %v4412
    %v4414 = vcombine.low %v3418, %v3420
    %v4415 = vcombine.low %v3422, %v3424
    %v4416 = vcombine.low %v3428, %v3430
    %v4417 = vcombine.low %v3432, %v3434
    %v4419 = vunpack.c.l.s4 1966171168
    %v4420 = vunpack.c.0.s8 %v4419
    %v4421 = vlaneseq
    %v4422 = vshrl.u32 %v4421, 7
    %v4423 = vsub.s32 %v4420, %v4422
    %v4424 = vrot.slane %v4414, %v4423
    %v4426 = vunpack.c.l.s4 1966171168
    %v4427 = vunpack.c.0.s8 %v4426
    %v4428 = vlaneseq
    %v4429 = vshrl.u32 %v4428, 7
    %v4430 = vsub.s32 %v4427, %v4429
    %v4431 = vrot.slane %v4415, %v4430
    %v4433 = vunpack.c.l.s4 1966171168
    %v4434 = vunpack.c.0.s8 %v4433
    %v4435 = vlaneseq
    %v4436 = vshrl.u32 %v4435, 7
    %v4437 = vsub.s32 %v4434, %v4436
    %v4438 = vrot.slane %v4416, %v4437
    %v4440 = vunpack.c.l.s4 1966171168
    %v4441 = vunpack.c.0.s8 %v4440
    %v4442 = vlaneseq
    %v4443 = vshrl.u32 %v4442, 7
    %v4444 = vsub.s32 %v4441, %v4443
    %v4445 = vrot.slane %v4417, %v4444
    %v4446 = vcombine.low %v4424, %v4431
    %v4447 = vcombine.low %v4438, %v4445
    %v4449 = vunpack.c.l.s4 1966171168
    %v4450 = vunpack.c.0.s8 %v4449
    %v4451 = vlaneseq
    %v4452 = vshrl.u32 %v4451, 7
    %v4453 = vsub.s32 %v4450, %v4452
    %v4454 = vrot.slane %v4446, %v4453
    %v4456 = vunpack.c.l.s4 1966171168
    %v4457 = vunpack.c.0.s8 %v4456
    %v4458 = vlaneseq
    %v4459 = vshrl.u32 %v4458, 7
    %v4460 = vsub.s32 %v4457, %v4459
    %v4461 = vrot.slane %v4447, %v4460
    %v4462 = vcombine.low %v4454, %v4461
    %v4463 = vcombine.low %v3438, %v3440
    %v4464 = vcombine.low %v3442, %v3444
    %v4465 = vcombine.low %v3448, %v3450
    %v4466 = vcombine.low %v3452, %v3454
    %v4468 = vunpack.c.l.s4 1966171168
    %v4469 = vunpack.c.0.s8 %v4468
    %v4470 = vlaneseq
    %v4471 = vshrl.u32 %v4470, 7
    %v4472 = vsub.s32 %v4469, %v4471
    %v4473 = vrot.slane %v4463, %v4472
    %v4475 = vunpack.c.l.s4 1966171168
    %v4476 = vunpack.c.0.s8 %v4475
    %v4477 = vlaneseq
    %v4478 = vshrl.u32 %v4477, 7
    %v4479 = vsub.s32 %v4476, %v4478
    %v4480 = vrot.slane %v4464, %v4479
    %v4482 = vunpack.c.l.s4 1966171168
    %v4483 = vunpack.c.0.s8 %v4482
    %v4484 = vlaneseq
    %v4485 = vshrl.u32 %v4484, 7
    %v4486 = vsub.s32 %v4483, %v4485
    %v4487 = vrot.slane %v4465, %v4486
    %v4489 = vunpack.c.l.s4 1966171168
    %v4490 = vunpack.c.0.s8 %v4489
    %v4491 = vlaneseq
    %v4492 = vshrl.u32 %v4491, 7
    %v4493 = vsub.s32 %v4490, %v4492
    %v4494 = vrot.slane %v4466, %v4493
    %v4495 = vcombine.low %v4473, %v4480
    %v4496 = vcombine.low %v4487, %v4494
    %v4498 = vunpack.c.l.s4 1966171168
    %v4499 = vunpack.c.0.s8 %v4498
    %v4500 = vlaneseq
    %v4501 = vshrl.u32 %v4500, 7
    %v4502 = vsub.s32 %v4499, %v4501
    %v4503 = vrot.slane %v4495, %v4502
    %v4505 = vunpack.c.l.s4 1966171168
    %v4506 = vunpack.c.0.s8 %v4505
    %v4507 = vlaneseq
    %v4508 = vshrl.u32 %v4507, 7
    %v4509 = vsub.s32 %v4506, %v4508
    %v4510 = vrot.slane %v4496, %v4509
    %v4511 = vcombine.low %v4503, %v4510
    %v4512 = vcombine.low %v3458, %v3460
    %v4513 = vcombine.low %v3462, %v3464
    %v4514 = vcombine.low %v3468, %v3470
    %v4515 = vcombine.low %v3472, %v3474
    %v4517 = vunpack.c.l.s4 1966171168
    %v4518 = vunpack.c.0.s8 %v4517
    %v4519 = vlaneseq
    %v4520 = vshrl.u32 %v4519, 7
    %v4521 = vsub.s32 %v4518, %v4520
    %v4522 = vrot.slane %v4512, %v4521
    %v4524 = vunpack.c.l.s4 1966171168
    %v4525 = vunpack.c.0.s8 %v4524
    %v4526 = vlaneseq
    %v4527 = vshrl.u32 %v4526, 7
    %v4528 = vsub.s32 %v4525, %v4527
    %v4529 = vrot.slane %v4513, %v4528
    %v4531 = vunpack.c.l.s4 1966171168
    %v4532 = vunpack.c.0.s8 %v4531
    %v4533 = vlaneseq
    %v4534 = vshrl.u32 %v4533, 7
    %v4535 = vsub.s32 %v4532, %v4534
    %v4536 = vrot.slane %v4514, %v4535
    %v4538 = vunpack.c.l.s4 1966171168
    %v4539 = vunpack.c.0.s8 %v4538
    %v4540 = vlaneseq
    %v4541 = vshrl.u32 %v4540, 7
    %v4542 = vsub.s32 %v4539, %v4541
    %v4543 = vrot.slane %v4515, %v4542
    %v4544 = vcombine.low %v4522, %v4529
    %v4545 = vcombine.low %v4536, %v4543
    %v4547 = vunpack.c.l.s4 1966171168
    %v4548 = vunpack.c.0.s8 %v4547
    %v4549 = vlaneseq
    %v4550 = vshrl.u32 %v4549, 7
    %v4551 = vsub.s32 %v4548, %v4550
    %v4552 = vrot.slane %v4544, %v4551
    %v4554 = vunpack.c.l.s4 1966171168
    %v4555 = vunpack.c.0.s8 %v4554
    %v4556 = vlaneseq
    %v4557 = vshrl.u32 %v4556, 7
    %v4558 = vsub.s32 %v4555, %v4557
    %v4559 = vrot.slane %v4545, %v4558
    %v4560 = vcombine.low %v4552, %v4559
    %4565 = vmatprep.subr.mxu0 0.0
    %4566 = vmatpush1.xpose.msra.mxu0 %v2698
    %4567 = vmatprep.subr.mxu0 0.0
    %4568 = vmatpush1.xpose.msra.mxu0 0.0
    %4569 = vmatprep.subr.mxu0 0.0
    %4570 = vmatpush1.xpose.msra.mxu0 0.0
    %4571 = vmatprep.subr.mxu0 0.0
    %4572 = vmatpush1.xpose.msra.mxu0 0.0
    %4573 = vmatprep.subr.mxu0 0.0
    %4574 = vmatpush1.xpose.msra.mxu0 0.0
    %4575 = vmatprep.subr.mxu0 0.0
    %4576 = vmatpush1.xpose.msra.mxu0 0.0
    %4577 = vmatprep.subr.mxu0 0.0
    %4578 = vmatpush1.xpose.msra.mxu0 0.0
    %4579 = vmatprep.subr.mxu0 0.0
    %4580 = vmatpush1.xpose.msra.mxu0 0.0
    %4581 = vmatprep.subr.mxu0 0.0
    %4582 = vmatpush1.xpose.msra.mxu0 0.0
    %4583 = vmatprep.subr.mxu0 0.0
    %4584 = vmatpush1.xpose.msra.mxu0 0.0
    %4585 = vmatprep.subr.mxu0 0.0
    %4586 = vmatpush1.xpose.msra.mxu0 0.0
    %4587 = vmatprep.subr.mxu0 0.0
    %4588 = vmatpush1.xpose.msra.mxu0 0.0
    %4589 = vmatprep.subr.mxu0 0.0
    %4590 = vmatpush1.xpose.msra.mxu0 0.0
    %4591 = vmatprep.subr.mxu0 0.0
    %4592 = vmatpush1.xpose.msra.mxu0 0.0
    %4593 = vmatprep.subr.mxu0 0.0
    %4594 = vmatpush1.xpose.msra.mxu0 0.0
    %4595 = vmatprep.subr.mxu0 0.0
    %4596 = vmatpush1.xpose.msra.mxu0 0.0
    %4597 = vmatprep.subr.mxu0 0.0
    %4598 = vmatpush1.xpose.msra.mxu0 0.0
    %4599 = vmatprep.subr.mxu0 0.0
    %4600 = vmatpush1.xpose.msra.mxu0 0.0
    %4601 = vmatprep.subr.mxu0 0.0
    %4602 = vmatpush1.xpose.msra.mxu0 0.0
    %4603 = vmatprep.subr.mxu0 0.0
    %4604 = vmatpush1.xpose.msra.mxu0 0.0
    %4605 = vmatprep.subr.mxu0 0.0
    %4606 = vmatpush1.xpose.msra.mxu0 0.0
    %4607 = vmatprep.subr.mxu0 0.0
    %4608 = vmatpush1.xpose.msra.mxu0 0.0
    %4609 = vmatprep.subr.mxu0 0.0
    %4610 = vmatpush1.xpose.msra.mxu0 0.0
    %4611 = vmatprep.subr.mxu0 0.0
    %4612 = vmatpush1.xpose.msra.mxu0 0.0
    %4613 = vmatprep.subr.mxu0 0.0
    %4614 = vmatpush1.xpose.msra.mxu0 0.0
    %4615 = vmatprep.subr.mxu0 0.0
    %4616 = vmatpush1.xpose.msra.mxu0 0.0
    %4617 = vmatprep.subr.mxu0 0.0
    %4618 = vmatpush1.xpose.msra.mxu0 0.0
    %4619 = vmatprep.subr.mxu0 0.0
    %4620 = vmatpush1.xpose.msra.mxu0 0.0
    %4621 = vmatprep.subr.mxu0 0.0
    %4622 = vmatpush1.xpose.msra.mxu0 0.0
    %4623 = vmatprep.subr.mxu0 0.0
    %4624 = vmatpush1.xpose.msra.mxu0 0.0
    %4625 = vmatprep.subr.mxu0 0.0
    %4626 = vmatpush1.xpose.msra.mxu0 0.0
    %4627 = vmatprep.subr.mxu0 0.0
    %4628 = vmatpush1.xpose.msra.mxu0 0.0
    %4629 = vmatprep.mubr.f32.mxu0 0.0
    %4630 = vmatmul.mubr.f32.gmra.mrb[0].mxu0 %v4413
    %v4631 = vpop.f32.mrb[0].mxu0
    %v4632 = vadd.f32 0.0, %v4631
    %v4633 = vpop.f32.mrb[0].mxu0
    %4634 = vmatprep.mubr.f32.mxu0 0.0
    %4635 = vmatmul.mubr.f32.gmra.mrb[0].mxu0 %v4462
    %v4636 = vpop.f32.mrb[0].mxu0
    %v4637 = vadd.f32 0.0, %v4636
    %v4638 = vpop.f32.mrb[0].mxu0
    %4639 = vmatprep.mubr.f32.mxu0 0.0
    %4640 = vmatmul.mubr.f32.gmra.mrb[0].mxu0 %v4511
    %v4641 = vpop.f32.mrb[0].mxu0
    %v4642 = vadd.f32 0.0, %v4641
    %v4643 = vpop.f32.mrb[0].mxu0
    %4644 = vmatprep.mubr.f32.mxu0 0.0
    %4645 = vmatmul.mubr.f32.gmra.mrb[0].mxu0 %v4560
    %v4646 = vpop.f32.mrb[0].mxu0
    %v4647 = vadd.f32 0.0, %v4646
    %v4648 = vpop.f32.mrb[0].mxu0
    %4649 = vdwg.mxu0
    %v4654 = vcombine.high %v4632, %v4632
    %v4655 = vcombine.high %v4637, %v4637
    %v4656 = vcombine.high %v4642, %v4642
    %v4657 = vcombine.high %v4647, %v4647
    %v4662 = vmul.f32 %v4632, %v4632
    %v4663 = vmul.f32 %v4654, %v4654
    %v4664 = vmul.f32 %v4637, %v4637
    %v4665 = vmul.f32 %v4655, %v4655
    %v4666 = vmul.f32 %v4642, %v4642
    %v4667 = vmul.f32 %v4656, %v4656
    %v4668 = vmul.f32 %v4647, %v4647
    %v4669 = vmul.f32 %v4657, %v4657
    %v4678 = vlaneseq
    %v4679 = vshrl.u32 %v4678, 7
    %v4680 = vsub.s32 0, %v4679
    %v4681 = vrot.slane %v4662, %v4680
    %v4682 = vlaneseq
    %v4683 = vshrl.u32 %v4682, 7
    %v4684 = vsub.s32 0, %v4683
    %v4685 = vrot.slane %v4663, %v4684
    %v4686 = vlaneseq
    %v4687 = vshrl.u32 %v4686, 7
    %v4688 = vsub.s32 0, %v4687
    %v4689 = vrot.slane %v4664, %v4688
    %v4690 = vlaneseq
    %v4691 = vshrl.u32 %v4690, 7
    %v4692 = vsub.s32 0, %v4691
    %v4693 = vrot.slane %v4665, %v4692
    %v4694 = vlaneseq
    %v4695 = vshrl.u32 %v4694, 7
    %v4696 = vsub.s32 0, %v4695
    %v4697 = vrot.slane %v4666, %v4696
    %v4698 = vlaneseq
    %v4699 = vshrl.u32 %v4698, 7
    %v4700 = vsub.s32 0, %v4699
    %v4701 = vrot.slane %v4667, %v4700
    %v4702 = vlaneseq
    %v4703 = vshrl.u32 %v4702, 7
    %v4704 = vsub.s32 0, %v4703
    %v4705 = vrot.slane %v4668, %v4704
    %v4706 = vlaneseq
    %v4707 = vshrl.u32 %v4706, 7
    %v4708 = vsub.s32 0, %v4707
    %v4709 = vrot.slane %v4669, %v4708
    %v4710 = vsel %vm153, %v4685, %v4681
    %v4711 = vsel %vm155, %v4689, %v4710
    %v4712 = vsel %vm157, %v4693, %v4711
    %v4713 = vsel %vm159, %v4697, %v4712
    %v4714 = vsel %vm161, %v4701, %v4713
    %v4715 = vsel %vm163, %v4705, %v4714
    %v4716 = vsel %vm165, %v4709, %v4715
    %v4718 = vmul.f32 %v4169, %v4716
    %v4719 = vadd.f32 %v4718, 0.0
    %v4720 = vrot.slane %v4632, 5
    %v4721 = vrot.slane %v4720, 4
    %v4722 = vrot.slane %v4654, 5
    %v4723 = vrot.slane %v4722, 4
    %v4724 = vrot.slane %v4637, 5
    %v4725 = vrot.slane %v4724, 4
    %v4726 = vrot.slane %v4655, 5
    %v4727 = vrot.slane %v4726, 4
    %v4728 = vrot.slane %v4642, 5
    %v4729 = vrot.slane %v4728, 4
    %v4730 = vrot.slane %v4656, 5
    %v4731 = vrot.slane %v4730, 4
    %v4732 = vrot.slane %v4647, 5
    %v4733 = vrot.slane %v4732, 4
    %v4734 = vrot.slane %v4657, 5
    %v4735 = vrot.slane %v4734, 4
    %v4744 = vmul.f32 %v4632, %v4721
    %v4745 = vmul.f32 %v4654, %v4723
    %v4746 = vmul.f32 %v4637, %v4725
    %v4747 = vmul.f32 %v4655, %v4727
    %v4748 = vmul.f32 %v4642, %v4729
    %v4749 = vmul.f32 %v4656, %v4731
    %v4750 = vmul.f32 %v4647, %v4733
    %v4751 = vmul.f32 %v4657, %v4735
    %v4760 = vlaneseq
    %v4761 = vshrl.u32 %v4760, 7
    %v4762 = vsub.s32 0, %v4761
    %v4763 = vrot.slane %v4744, %v4762
    %v4764 = vlaneseq
    %v4765 = vshrl.u32 %v4764, 7
    %v4766 = vsub.s32 0, %v4765
    %v4767 = vrot.slane %v4745, %v4766
    %v4768 = vlaneseq
    %v4769 = vshrl.u32 %v4768, 7
    %v4770 = vsub.s32 0, %v4769
    %v4771 = vrot.slane %v4746, %v4770
    %v4772 = vlaneseq
    %v4773 = vshrl.u32 %v4772, 7
    %v4774 = vsub.s32 0, %v4773
    %v4775 = vrot.slane %v4747, %v4774
    %v4776 = vlaneseq
    %v4777 = vshrl.u32 %v4776, 7
    %v4778 = vsub.s32 0, %v4777
    %v4779 = vrot.slane %v4748, %v4778
    %v4780 = vlaneseq
    %v4781 = vshrl.u32 %v4780, 7
    %v4782 = vsub.s32 0, %v4781
    %v4783 = vrot.slane %v4749, %v4782
    %v4784 = vlaneseq
    %v4785 = vshrl.u32 %v4784, 7
    %v4786 = vsub.s32 0, %v4785
    %v4787 = vrot.slane %v4750, %v4786
    %v4788 = vlaneseq
    %v4789 = vshrl.u32 %v4788, 7
    %v4790 = vsub.s32 0, %v4789
    %v4791 = vrot.slane %v4751, %v4790
    %v4792 = vsel %vm153, %v4767, %v4763
    %v4793 = vsel %vm155, %v4771, %v4792
    %v4794 = vsel %vm157, %v4775, %v4793
    %v4795 = vsel %vm159, %v4779, %v4794
    %v4796 = vsel %vm161, %v4783, %v4795
    %v4797 = vsel %vm163, %v4787, %v4796
    %v4798 = vsel %vm165, %v4791, %v4797
    %v4800 = vmul.f32 %v4187, %v4798
    %v4801 = vadd.f32 %v4719, %v4800
    %v4802 = vrot.slane %v4632, 6
    %v4803 = vrot.slane %v4802, 4
    %v4804 = vrot.slane %v4654, 6
    %v4805 = vrot.slane %v4804, 4
    %v4806 = vrot.slane %v4637, 6
    %v4807 = vrot.slane %v4806, 4
    %v4808 = vrot.slane %v4655, 6
    %v4809 = vrot.slane %v4808, 4
    %v4810 = vrot.slane %v4642, 6
    %v4811 = vrot.slane %v4810, 4
    %v4812 = vrot.slane %v4656, 6
    %v4813 = vrot.slane %v4812, 4
    %v4814 = vrot.slane %v4647, 6
    %v4815 = vrot.slane %v4814, 4
    %v4816 = vrot.slane %v4657, 6
    %v4817 = vrot.slane %v4816, 4
    %v4826 = vmul.f32 %v4632, %v4803
    %v4827 = vmul.f32 %v4654, %v4805
    %v4828 = vmul.f32 %v4637, %v4807
    %v4829 = vmul.f32 %v4655, %v4809
    %v4830 = vmul.f32 %v4642, %v4811
    %v4831 = vmul.f32 %v4656, %v4813
    %v4832 = vmul.f32 %v4647, %v4815
    %v4833 = vmul.f32 %v4657, %v4817
    %v4842 = vlaneseq
    %v4843 = vshrl.u32 %v4842, 7
    %v4844 = vsub.s32 0, %v4843
    %v4845 = vrot.slane %v4826, %v4844
    %v4846 = vlaneseq
    %v4847 = vshrl.u32 %v4846, 7
    %v4848 = vsub.s32 0, %v4847
    %v4849 = vrot.slane %v4827, %v4848
    %v4850 = vlaneseq
    %v4851 = vshrl.u32 %v4850, 7
    %v4852 = vsub.s32 0, %v4851
    %v4853 = vrot.slane %v4828, %v4852
    %v4854 = vlaneseq
    %v4855 = vshrl.u32 %v4854, 7
    %v4856 = vsub.s32 0, %v4855
    %v4857 = vrot.slane %v4829, %v4856
    %v4858 = vlaneseq
    %v4859 = vshrl.u32 %v4858, 7
    %v4860 = vsub.s32 0, %v4859
    %v4861 = vrot.slane %v4830, %v4860
    %v4862 = vlaneseq
    %v4863 = vshrl.u32 %v4862, 7
    %v4864 = vsub.s32 0, %v4863
    %v4865 = vrot.slane %v4831, %v4864
    %v4866 = vlaneseq
    %v4867 = vshrl.u32 %v4866, 7
    %v4868 = vsub.s32 0, %v4867
    %v4869 = vrot.slane %v4832, %v4868
    %v4870 = vlaneseq
    %v4871 = vshrl.u32 %v4870, 7
    %v4872 = vsub.s32 0, %v4871
    %v4873 = vrot.slane %v4833, %v4872
    %v4874 = vsel %vm153, %v4849, %v4845
    %v4875 = vsel %vm155, %v4853, %v4874
    %v4876 = vsel %vm157, %v4857, %v4875
    %v4877 = vsel %vm159, %v4861, %v4876
    %v4878 = vsel %vm161, %v4865, %v4877
    %v4879 = vsel %vm163, %v4869, %v4878
    %v4880 = vsel %vm165, %v4873, %v4879
    %v4882 = vmul.f32 %v4202, %v4880
    %v4883 = vadd.f32 %v4801, %v4882
    %v4884 = vrot.slane %v4632, 7
    %v4885 = vrot.slane %v4884, 4
    %v4886 = vrot.slane %v4654, 7
    %v4887 = vrot.slane %v4886, 4
    %v4888 = vrot.slane %v4637, 7
    %v4889 = vrot.slane %v4888, 4
    %v4890 = vrot.slane %v4655, 7
    %v4891 = vrot.slane %v4890, 4
    %v4892 = vrot.slane %v4642, 7
    %v4893 = vrot.slane %v4892, 4
    %v4894 = vrot.slane %v4656, 7
    %v4895 = vrot.slane %v4894, 4
    %v4896 = vrot.slane %v4647, 7
    %v4897 = vrot.slane %v4896, 4
    %v4898 = vrot.slane %v4657, 7
    %v4899 = vrot.slane %v4898, 4
    %v4908 = vmul.f32 %v4632, %v4885
    %v4909 = vmul.f32 %v4654, %v4887
    %v4910 = vmul.f32 %v4637, %v4889
    %v4911 = vmul.f32 %v4655, %v4891
    %v4912 = vmul.f32 %v4642, %v4893
    %v4913 = vmul.f32 %v4656, %v4895
    %v4914 = vmul.f32 %v4647, %v4897
    %v4915 = vmul.f32 %v4657, %v4899
    %v4924 = vlaneseq
    %v4925 = vshrl.u32 %v4924, 7
    %v4926 = vsub.s32 0, %v4925
    %v4927 = vrot.slane %v4908, %v4926
    %v4928 = vlaneseq
    %v4929 = vshrl.u32 %v4928, 7
    %v4930 = vsub.s32 0, %v4929
    %v4931 = vrot.slane %v4909, %v4930
    %v4932 = vlaneseq
    %v4933 = vshrl.u32 %v4932, 7
    %v4934 = vsub.s32 0, %v4933
    %v4935 = vrot.slane %v4910, %v4934
    %v4936 = vlaneseq
    %v4937 = vshrl.u32 %v4936, 7
    %v4938 = vsub.s32 0, %v4937
    %v4939 = vrot.slane %v4911, %v4938
    %v4940 = vlaneseq
    %v4941 = vshrl.u32 %v4940, 7
    %v4942 = vsub.s32 0, %v4941
    %v4943 = vrot.slane %v4912, %v4942
    %v4944 = vlaneseq
    %v4945 = vshrl.u32 %v4944, 7
    %v4946 = vsub.s32 0, %v4945
    %v4947 = vrot.slane %v4913, %v4946
    %v4948 = vlaneseq
    %v4949 = vshrl.u32 %v4948, 7
    %v4950 = vsub.s32 0, %v4949
    %v4951 = vrot.slane %v4914, %v4950
    %v4952 = vlaneseq
    %v4953 = vshrl.u32 %v4952, 7
    %v4954 = vsub.s32 0, %v4953
    %v4955 = vrot.slane %v4915, %v4954
    %v4956 = vsel %vm153, %v4931, %v4927
    %v4957 = vsel %vm155, %v4935, %v4956
    %v4958 = vsel %vm157, %v4939, %v4957
    %v4959 = vsel %vm159, %v4943, %v4958
    %v4960 = vsel %vm161, %v4947, %v4959
    %v4961 = vsel %vm163, %v4951, %v4960
    %v4962 = vsel %vm165, %v4955, %v4961
    %v4964 = vmul.f32 %v4214, %v4962
    %v4965 = vadd.f32 %v4883, %v4964
    %v4966 = vmul.f32 %v4217, %v4798
    %v4967 = vadd.f32 %v4965, %v4966
    %v4968 = vlaneseq
    %v4969 = vshrl.u32 %v4968, 7
    %v4970 = vsub.s32 1, %v4969
    %v4971 = vrot.slane %v4662, %v4970
    %v4972 = vlaneseq
    %v4973 = vshrl.u32 %v4972, 7
    %v4974 = vsub.s32 1, %v4973
    %v4975 = vrot.slane %v4663, %v4974
    %v4976 = vlaneseq
    %v4977 = vshrl.u32 %v4976, 7
    %v4978 = vsub.s32 1, %v4977
    %v4979 = vrot.slane %v4664, %v4978
    %v4980 = vlaneseq
    %v4981 = vshrl.u32 %v4980, 7
    %v4982 = vsub.s32 1, %v4981
    %v4983 = vrot.slane %v4665, %v4982
    %v4984 = vlaneseq
    %v4985 = vshrl.u32 %v4984, 7
    %v4986 = vsub.s32 1, %v4985
    %v4987 = vrot.slane %v4666, %v4986
    %v4988 = vlaneseq
    %v4989 = vshrl.u32 %v4988, 7
    %v4990 = vsub.s32 1, %v4989
    %v4991 = vrot.slane %v4667, %v4990
    %v4992 = vlaneseq
    %v4993 = vshrl.u32 %v4992, 7
    %v4994 = vsub.s32 1, %v4993
    %v4995 = vrot.slane %v4668, %v4994
    %v4996 = vlaneseq
    %v4997 = vshrl.u32 %v4996, 7
    %v4998 = vsub.s32 1, %v4997
    %v4999 = vrot.slane %v4669, %v4998
    %v5000 = vsel %vm153, %v4975, %v4971
    %v5001 = vsel %vm155, %v4979, %v5000
    %v5002 = vsel %vm157, %v4983, %v5001
    %v5003 = vsel %vm159, %v4987, %v5002
    %v5004 = vsel %vm161, %v4991, %v5003
    %v5005 = vsel %vm163, %v4995, %v5004
    %v5006 = vsel %vm165, %v4999, %v5005
    %v5008 = vmul.f32 %v4232, %v5006
    %v5009 = vadd.f32 %v4967, %v5008
    %v5010 = vlaneseq
    %v5011 = vshrl.u32 %v5010, 7
    %v5012 = vsub.s32 1, %v5011
    %v5013 = vrot.slane %v4744, %v5012
    %v5014 = vlaneseq
    %v5015 = vshrl.u32 %v5014, 7
    %v5016 = vsub.s32 1, %v5015
    %v5017 = vrot.slane %v4745, %v5016
    %v5018 = vlaneseq
    %v5019 = vshrl.u32 %v5018, 7
    %v5020 = vsub.s32 1, %v5019
    %v5021 = vrot.slane %v4746, %v5020
    %v5022 = vlaneseq
    %v5023 = vshrl.u32 %v5022, 7
    %v5024 = vsub.s32 1, %v5023
    %v5025 = vrot.slane %v4747, %v5024
    %v5026 = vlaneseq
    %v5027 = vshrl.u32 %v5026, 7
    %v5028 = vsub.s32 1, %v5027
    %v5029 = vrot.slane %v4748, %v5028
    %v5030 = vlaneseq
    %v5031 = vshrl.u32 %v5030, 7
    %v5032 = vsub.s32 1, %v5031
    %v5033 = vrot.slane %v4749, %v5032
    %v5034 = vlaneseq
    %v5035 = vshrl.u32 %v5034, 7
    %v5036 = vsub.s32 1, %v5035
    %v5037 = vrot.slane %v4750, %v5036
    %v5038 = vlaneseq
    %v5039 = vshrl.u32 %v5038, 7
    %v5040 = vsub.s32 1, %v5039
    %v5041 = vrot.slane %v4751, %v5040
    %v5042 = vsel %vm153, %v5017, %v5013
    %v5043 = vsel %vm155, %v5021, %v5042
    %v5044 = vsel %vm157, %v5025, %v5043
    %v5045 = vsel %vm159, %v5029, %v5044
    %v5046 = vsel %vm161, %v5033, %v5045
    %v5047 = vsel %vm163, %v5037, %v5046
    %v5048 = vsel %vm165, %v5041, %v5047
    %v5050 = vmul.f32 %v4248, %v5048
    %v5051 = vadd.f32 %v5009, %v5050
    %v5052 = vlaneseq
    %v5053 = vshrl.u32 %v5052, 7
    %v5054 = vsub.s32 1, %v5053
    %v5055 = vrot.slane %v4826, %v5054
    %v5056 = vlaneseq
    %v5057 = vshrl.u32 %v5056, 7
    %v5058 = vsub.s32 1, %v5057
    %v5059 = vrot.slane %v4827, %v5058
    %v5060 = vlaneseq
    %v5061 = vshrl.u32 %v5060, 7
    %v5062 = vsub.s32 1, %v5061
    %v5063 = vrot.slane %v4828, %v5062
    %v5064 = vlaneseq
    %v5065 = vshrl.u32 %v5064, 7
    %v5066 = vsub.s32 1, %v5065
    %v5067 = vrot.slane %v4829, %v5066
    %v5068 = vlaneseq
    %v5069 = vshrl.u32 %v5068, 7
    %v5070 = vsub.s32 1, %v5069
    %v5071 = vrot.slane %v4830, %v5070
    %v5072 = vlaneseq
    %v5073 = vshrl.u32 %v5072, 7
    %v5074 = vsub.s32 1, %v5073
    %v5075 = vrot.slane %v4831, %v5074
    %v5076 = vlaneseq
    %v5077 = vshrl.u32 %v5076, 7
    %v5078 = vsub.s32 1, %v5077
    %v5079 = vrot.slane %v4832, %v5078
    %v5080 = vlaneseq
    %v5081 = vshrl.u32 %v5080, 7
    %v5082 = vsub.s32 1, %v5081
    %v5083 = vrot.slane %v4833, %v5082
    %v5084 = vsel %vm153, %v5059, %v5055
    %v5085 = vsel %vm155, %v5063, %v5084
    %v5086 = vsel %vm157, %v5067, %v5085
    %v5087 = vsel %vm159, %v5071, %v5086
    %v5088 = vsel %vm161, %v5075, %v5087
    %v5089 = vsel %vm163, %v5079, %v5088
    %v5090 = vsel %vm165, %v5083, %v5089
    %v5092 = vmul.f32 %v4260, %v5090
    %v5093 = vadd.f32 %v5051, %v5092
    %v5094 = vmul.f32 %v4266, %v4880
    %v5095 = vadd.f32 %v5093, %v5094
    %v5096 = vmul.f32 %v4272, %v5048
    %v5097 = vadd.f32 %v5095, %v5096
    %v5098 = vlaneseq
    %v5099 = vshrl.u32 %v5098, 7
    %v5100 = vsub.s32 2, %v5099
    %v5101 = vrot.slane %v4662, %v5100
    %v5102 = vlaneseq
    %v5103 = vshrl.u32 %v5102, 7
    %v5104 = vsub.s32 2, %v5103
    %v5105 = vrot.slane %v4663, %v5104
    %v5106 = vlaneseq
    %v5107 = vshrl.u32 %v5106, 7
    %v5108 = vsub.s32 2, %v5107
    %v5109 = vrot.slane %v4664, %v5108
    %v5110 = vlaneseq
    %v5111 = vshrl.u32 %v5110, 7
    %v5112 = vsub.s32 2, %v5111
    %v5113 = vrot.slane %v4665, %v5112
    %v5114 = vlaneseq
    %v5115 = vshrl.u32 %v5114, 7
    %v5116 = vsub.s32 2, %v5115
    %v5117 = vrot.slane %v4666, %v5116
    %v5118 = vlaneseq
    %v5119 = vshrl.u32 %v5118, 7
    %v5120 = vsub.s32 2, %v5119
    %v5121 = vrot.slane %v4667, %v5120
    %v5122 = vlaneseq
    %v5123 = vshrl.u32 %v5122, 7
    %v5124 = vsub.s32 2, %v5123
    %v5125 = vrot.slane %v4668, %v5124
    %v5126 = vlaneseq
    %v5127 = vshrl.u32 %v5126, 7
    %v5128 = vsub.s32 2, %v5127
    %v5129 = vrot.slane %v4669, %v5128
    %v5130 = vsel %vm153, %v5105, %v5101
    %v5131 = vsel %vm155, %v5109, %v5130
    %v5132 = vsel %vm157, %v5113, %v5131
    %v5133 = vsel %vm159, %v5117, %v5132
    %v5134 = vsel %vm161, %v5121, %v5133
    %v5135 = vsel %vm163, %v5125, %v5134
    %v5136 = vsel %vm165, %v5129, %v5135
    %v5138 = vmul.f32 %v4284, %v5136
    %v5139 = vadd.f32 %v5097, %v5138
    %v5140 = vlaneseq
    %v5141 = vshrl.u32 %v5140, 7
    %v5142 = vsub.s32 2, %v5141
    %v5143 = vrot.slane %v4744, %v5142
    %v5144 = vlaneseq
    %v5145 = vshrl.u32 %v5144, 7
    %v5146 = vsub.s32 2, %v5145
    %v5147 = vrot.slane %v4745, %v5146
    %v5148 = vlaneseq
    %v5149 = vshrl.u32 %v5148, 7
    %v5150 = vsub.s32 2, %v5149
    %v5151 = vrot.slane %v4746, %v5150
    %v5152 = vlaneseq
    %v5153 = vshrl.u32 %v5152, 7
    %v5154 = vsub.s32 2, %v5153
    %v5155 = vrot.slane %v4747, %v5154
    %v5156 = vlaneseq
    %v5157 = vshrl.u32 %v5156, 7
    %v5158 = vsub.s32 2, %v5157
    %v5159 = vrot.slane %v4748, %v5158
    %v5160 = vlaneseq
    %v5161 = vshrl.u32 %v5160, 7
    %v5162 = vsub.s32 2, %v5161
    %v5163 = vrot.slane %v4749, %v5162
    %v5164 = vlaneseq
    %v5165 = vshrl.u32 %v5164, 7
    %v5166 = vsub.s32 2, %v5165
    %v5167 = vrot.slane %v4750, %v5166
    %v5168 = vlaneseq
    %v5169 = vshrl.u32 %v5168, 7
    %v5170 = vsub.s32 2, %v5169
    %v5171 = vrot.slane %v4751, %v5170
    %v5172 = vsel %vm153, %v5147, %v5143
    %v5173 = vsel %vm155, %v5151, %v5172
    %v5174 = vsel %vm157, %v5155, %v5173
    %v5175 = vsel %vm159, %v5159, %v5174
    %v5176 = vsel %vm161, %v5163, %v5175
    %v5177 = vsel %vm163, %v5167, %v5176
    %v5178 = vsel %vm165, %v5171, %v5177
    %v5180 = vmul.f32 %v4296, %v5178
    %v5181 = vadd.f32 %v5139, %v5180
    %v5182 = vmul.f32 %v4303, %v4962
    %v5183 = vadd.f32 %v5181, %v5182
    %v5184 = vmul.f32 %v4309, %v5090
    %v5185 = vadd.f32 %v5183, %v5184
    %v5186 = vmul.f32 %v4315, %v5178
    %v5187 = vadd.f32 %v5185, %v5186
    %v5188 = vlaneseq
    %v5189 = vshrl.u32 %v5188, 7
    %v5190 = vsub.s32 3, %v5189
    %v5191 = vrot.slane %v4662, %v5190
    %v5192 = vlaneseq
    %v5193 = vshrl.u32 %v5192, 7
    %v5194 = vsub.s32 3, %v5193
    %v5195 = vrot.slane %v4663, %v5194
    %v5196 = vlaneseq
    %v5197 = vshrl.u32 %v5196, 7
    %v5198 = vsub.s32 3, %v5197
    %v5199 = vrot.slane %v4664, %v5198
    %v5200 = vlaneseq
    %v5201 = vshrl.u32 %v5200, 7
    %v5202 = vsub.s32 3, %v5201
    %v5203 = vrot.slane %v4665, %v5202
    %v5204 = vlaneseq
    %v5205 = vshrl.u32 %v5204, 7
    %v5206 = vsub.s32 3, %v5205
    %v5207 = vrot.slane %v4666, %v5206
    %v5208 = vlaneseq
    %v5209 = vshrl.u32 %v5208, 7
    %v5210 = vsub.s32 3, %v5209
    %v5211 = vrot.slane %v4667, %v5210
    %v5212 = vlaneseq
    %v5213 = vshrl.u32 %v5212, 7
    %v5214 = vsub.s32 3, %v5213
    %v5215 = vrot.slane %v4668, %v5214
    %v5216 = vlaneseq
    %v5217 = vshrl.u32 %v5216, 7
    %v5218 = vsub.s32 3, %v5217
    %v5219 = vrot.slane %v4669, %v5218
    %v5220 = vsel %vm153, %v5195, %v5191
    %v5221 = vsel %vm155, %v5199, %v5220
    %v5222 = vsel %vm157, %v5203, %v5221
    %v5223 = vsel %vm159, %v5207, %v5222
    %v5224 = vsel %vm161, %v5211, %v5223
    %v5225 = vsel %vm163, %v5215, %v5224
    %v5226 = vsel %vm165, %v5219, %v5225
    %v5228 = vmul.f32 %v4325, %v5226
    %v5229 = vadd.f32 %v5187, %v5228
    %v5230 = vrcp.pop %v4332
    %v5231 = vmul.f32 %v5229, %v5230
    %v5232 = vmax.f32 %v5231, 0.0
    %v5233 = vrsqrt.pop %v5232
    %v5234 = vmul.f32 %v5232, %v5233
    %vm5235 = vcmp.eq.f32.partialorder %v5232, inf
    %v5236 = vsel %vm5235, %v5232, %v5234
    %vm5237 = vcmp.eq.f32.partialorder %v5232, 0.0
    %v5238 = vand.u32 %v5232, 2147483648
    %v5239 = vsel %vm5237, %v5238, %v5236
    %v5240 = vmul.f32 %v2698, %v2698
    %v5241 = vsel %vm2685, %v5240, 0.0
    %5242 = vadd.xlane.f32.xlu0 %v5241
    %v5243 = vpop.xlane.xlu0 %5242
    %v5244 = vrsqrt.pop %v5243
    %v5245 = vmul.f32 %v5243, %v5244
    %vm5246 = vcmp.eq.f32.partialorder %v5243, inf
    %v5247 = vsel %vm5246, %v5243, %v5245
    %vm5248 = vcmp.eq.f32.partialorder %v5243, 0.0
    %v5249 = vand.u32 %v5243, 2147483648
    %v5250 = vsel %vm5248, %v5249, %v5247
    %v5252 = vlaneseq
    %v5253 = vshrl.u32 %v5252, 7
    %v5254 = vsub.s32 %v72, %v5253
    %v5255 = vrot.slane %v5250, %v5254
    %v5256 = vsel %vm155, %v5255, %v5255
    %v5257 = vsel %vm157, %v5255, %v5256
    %v5258 = vsel %vm159, %v5255, %v5257
    %v5259 = vsel %vm161, %v5255, %v5258
    %v5260 = vsel %vm163, %v5255, %v5259
    %v5261 = vsel %vm165, %v5255, %v5260
    %v5263 = vmul.f32 %v5239, %v5261
    %v5264 = vmax.f32 %v5263, 1e-07
    %v5265 = vrcp.pop %v5264
    %v5266 = vmul.f32 %v5231, %v5265
    %s5267 = sld [smem:[#allocation2]]
    %v5268 = vstv %s5267
    %v5269 = vmul.f32 %v5268, %v5266
    %5270 = vxpose.xlu0.b32.start [1/16] %v5269, 128
    %5271 = vxpose.xlu0.b32.cont [2/16] 0.0, 128
    %5272 = vxpose.xlu0.b32.cont [3/16] 0.0, 128
    %5273 = vxpose.xlu0.b32.cont [4/16] 0.0, 128
    %5274 = vxpose.xlu0.b32.cont [5/16] 0.0, 128
    %5275 = vxpose.xlu0.b32.cont [6/16] 0.0, 128
    %5276 = vxpose.xlu0.b32.cont [7/16] 0.0, 128
    %5277 = vxpose.xlu0.b32.cont [8/16] 0.0, 128
    %5278 = vxpose.xlu0.b32.cont [9/16] 0.0, 128
    %5279 = vxpose.xlu0.b32.cont [10/16] 0.0, 128
    %5280 = vxpose.xlu0.b32.cont [11/16] 0.0, 128
    %5281 = vxpose.xlu0.b32.cont [12/16] 0.0, 128
    %5282 = vxpose.xlu0.b32.cont [13/16] 0.0, 128
    %5283 = vxpose.xlu0.b32.cont [14/16] 0.0, 128
    %5284 = vxpose.xlu0.b32.cont [15/16] 0.0, 128
    %5285 = vxpose.xlu0.b32.end [16/16] 0.0, 128
    %v5286 = vpop.trf.xlu0
    %v5287 = vpop.trf.xlu0
    %v5288 = vpop.trf.xlu0
    %v5289 = vpop.trf.xlu0
    %v5290 = vpop.trf.xlu0
    %v5291 = vpop.trf.xlu0
    %v5292 = vpop.trf.xlu0
    %v5293 = vpop.trf.xlu0
    %v5294 = vpop.trf.xlu0
    %v5295 = vpop.trf.xlu0
    %v5296 = vpop.trf.xlu0
    %v5297 = vpop.trf.xlu0
    %v5298 = vpop.trf.xlu0
    %v5299 = vpop.trf.xlu0
    %v5300 = vpop.trf.xlu0
    %v5301 = vpop.trf.xlu0
    %v5310 = vcombine.low %v3396, %v3406
    %v5311 = vcombine.low %v3416, %v3426
    %v5312 = vcombine.low %v3436, %v3446
    %v5313 = vcombine.low %v3456, %v3466
    %v5315 = vunpack.c.l.s4 1966171168
    %v5316 = vunpack.c.0.s8 %v5315
    %v5317 = vlaneseq
    %v5318 = vshrl.u32 %v5317, 7
    %v5319 = vsub.s32 %v5316, %v5318
    %v5320 = vrot.slane %v5310, %v5319
    %v5322 = vunpack.c.l.s4 1966171168
    %v5323 = vunpack.c.0.s8 %v5322
    %v5324 = vlaneseq
    %v5325 = vshrl.u32 %v5324, 7
    %v5326 = vsub.s32 %v5323, %v5325
    %v5327 = vrot.slane %v5311, %v5326
    %v5329 = vunpack.c.l.s4 1966171168
    %v5330 = vunpack.c.0.s8 %v5329
    %v5331 = vlaneseq
    %v5332 = vshrl.u32 %v5331, 7
    %v5333 = vsub.s32 %v5330, %v5332
    %v5334 = vrot.slane %v5312, %v5333
    %v5336 = vunpack.c.l.s4 1966171168
    %v5337 = vunpack.c.0.s8 %v5336
    %v5338 = vlaneseq
    %v5339 = vshrl.u32 %v5338, 7
    %v5340 = vsub.s32 %v5337, %v5339
    %v5341 = vrot.slane %v5313, %v5340
    %v5342 = vcombine.low %v5320, %v5327
    %v5343 = vcombine.low %v5334, %v5341
    %v5345 = vunpack.c.l.s4 1966171168
    %v5346 = vunpack.c.0.s8 %v5345
    %v5347 = vlaneseq
    %v5348 = vshrl.u32 %v5347, 7
    %v5349 = vsub.s32 %v5346, %v5348
    %v5350 = vrot.slane %v5342, %v5349
    %v5352 = vunpack.c.l.s4 1966171168
    %v5353 = vunpack.c.0.s8 %v5352
    %v5354 = vlaneseq
    %v5355 = vshrl.u32 %v5354, 7
    %v5356 = vsub.s32 %v5353, %v5355
    %v5357 = vrot.slane %v5343, %v5356
    %v5358 = vcombine.low %v5350, %v5357
    %5360 = vmatprep.subr.mxu0 0.0
    %5361 = vmatpush1.xpose.msra.mxu0 %v5358
    %5362 = vmatprep.subr.mxu0 0.0
    %5363 = vmatpush1.xpose.msra.mxu0 0.0
    %5364 = vmatprep.subr.mxu0 0.0
    %5365 = vmatpush1.xpose.msra.mxu0 0.0
    %5366 = vmatprep.subr.mxu0 0.0
    %5367 = vmatpush1.xpose.msra.mxu0 0.0
    %5368 = vmatprep.subr.mxu0 0.0
    %5369 = vmatpush1.xpose.msra.mxu0 0.0
    %5370 = vmatprep.subr.mxu0 0.0
    %5371 = vmatpush1.xpose.msra.mxu0 0.0
    %5372 = vmatprep.subr.mxu0 0.0
    %5373 = vmatpush1.xpose.msra.mxu0 0.0
    %5374 = vmatprep.subr.mxu0 0.0
    %5375 = vmatpush1.xpose.msra.mxu0 0.0
    %5376 = vmatprep.subr.mxu0 0.0
    %5377 = vmatpush1.xpose.msra.mxu0 0.0
    %5378 = vmatprep.subr.mxu0 0.0
    %5379 = vmatpush1.xpose.msra.mxu0 0.0
    %5380 = vmatprep.subr.mxu0 0.0
    %5381 = vmatpush1.xpose.msra.mxu0 0.0
    %5382 = vmatprep.subr.mxu0 0.0
    %5383 = vmatpush1.xpose.msra.mxu0 0.0
    %5384 = vmatprep.subr.mxu0 0.0
    %5385 = vmatpush1.xpose.msra.mxu0 0.0
    %5386 = vmatprep.subr.mxu0 0.0
    %5387 = vmatpush1.xpose.msra.mxu0 0.0
    %5388 = vmatprep.subr.mxu0 0.0
    %5389 = vmatpush1.xpose.msra.mxu0 0.0
    %5390 = vmatprep.subr.mxu0 0.0
    %5391 = vmatpush1.xpose.msra.mxu0 0.0
    %5392 = vmatprep.subr.mxu0 0.0
    %5393 = vmatpush1.xpose.msra.mxu0 0.0
    %5394 = vmatprep.subr.mxu0 0.0
    %5395 = vmatpush1.xpose.msra.mxu0 0.0
    %5396 = vmatprep.subr.mxu0 0.0
    %5397 = vmatpush1.xpose.msra.mxu0 0.0
    %5398 = vmatprep.subr.mxu0 0.0
    %5399 = vmatpush1.xpose.msra.mxu0 0.0
    %5400 = vmatprep.subr.mxu0 0.0
    %5401 = vmatpush1.xpose.msra.mxu0 0.0
    %5402 = vmatprep.subr.mxu0 0.0
    %5403 = vmatpush1.xpose.msra.mxu0 0.0
    %5404 = vmatprep.subr.mxu0 0.0
    %5405 = vmatpush1.xpose.msra.mxu0 0.0
    %5406 = vmatprep.subr.mxu0 0.0
    %5407 = vmatpush1.xpose.msra.mxu0 0.0
    %5408 = vmatprep.subr.mxu0 0.0
    %5409 = vmatpush1.xpose.msra.mxu0 0.0
    %5410 = vmatprep.subr.mxu0 0.0
    %5411 = vmatpush1.xpose.msra.mxu0 0.0
    %5412 = vmatprep.subr.mxu0 0.0
    %5413 = vmatpush1.xpose.msra.mxu0 0.0
    %5414 = vmatprep.subr.mxu0 0.0
    %5415 = vmatpush1.xpose.msra.mxu0 0.0
    %5416 = vmatprep.subr.mxu0 0.0
    %5417 = vmatpush1.xpose.msra.mxu0 0.0
    %5418 = vmatprep.subr.mxu0 0.0
    %5419 = vmatpush1.xpose.msra.mxu0 0.0
    %5420 = vmatprep.subr.mxu0 0.0
    %5421 = vmatpush1.xpose.msra.mxu0 0.0
    %5422 = vmatprep.subr.mxu0 0.0
    %5423 = vmatpush1.xpose.msra.mxu0 0.0
    %5424 = vmatprep.mubr.f32.mxu0 0.0
    %5425 = vmatmul.mubr.f32.gmra.mrb[0].mxu0 %v2698
    %v5426 = vpop.f32.mrb[0].mxu0
    %v5427 = vadd.f32 0.0, %v5426
    %v5428 = vpop.f32.mrb[0].mxu0
    %5429 = vdwg.mxu0
    %v5430 = vmul.f32 %v5268, %v5427
    %v5431 = vmul.f32 %v5286, 0.7
    %v5432 = vmul.f32 %v5430, 0.3
    %v5433 = vadd.f32 %v5431, %v5432
    %vm5434 = vcmask 64512
    %v5435 = vsel %vm5434, %v5433, 0.0
    %5436 = vst [vmem:[#allocation3] sm:$0x3] %v5435
    // Predicated region
    $region54: #{custom_clip_forward.1} parent=1 // pred_check
      _
    $region55: #{custom_clip_forward.1} parent=1 // pred_check_branch
      %5438 = sbr.rel (0) target = $region57
    $region56: #{custom_clip_forward.1} parent=1 // pred_region
      %s5440 = ssub.s32 32, 32
      %5441 = vsyncadd [#allocation4], %s5440
      %s5443 = sshll.u32 [#allocation3], 4
      %s5444 = int_to_ptr.vmem [resolvable:$true] %s5443
      %5446 = dma.vmem_to_hbm [thread:$0]  %s5444, 32, %s13, [#allocation4]
    $region57: #{custom_clip_forward.1} parent=1 // pred_fallthru
      _
    // Predicated region
    $region58: #{custom_clip_forward.1} parent=1 // pred_check
      _
    $region59: #{custom_clip_forward.1} parent=1 // pred_check_branch
      %5448 = sbr.rel (0) target = $region61
    $region60: #{custom_clip_forward.1} parent=1 // pred_region
      %5449 = dma.done [#allocation4], 32
    $region61: #{custom_clip_forward.1} parent=1 // pred_fallthru
      _
    %5450 = vsyncpa [#allocation4], 1

</llo_original>
